<compile_context>
chip_gen: v6e
topology: v6e:2x2x1
jax: 0.10.0
libtpu: 0.0.40
codegen_flags: <defaults>
</compile_context>

<pallas_src>
import math

import jax
import jax.numpy as jnp
from jax import lax
from jax.experimental import pallas as pl
from jax.experimental.pallas import tpu as pltpu


def _layernorm(v, gamma, beta, eps=1e-5):
    mu = jnp.mean(v, axis=-1, keepdims=True)
    var = jnp.mean((v - mu) ** 2, axis=-1, keepdims=True)
    return (v - mu) * lax.rsqrt(var + eps) * gamma + beta


def _make_kernel(nhead: int, head_dim: int):
    H, Dh = nhead, head_dim
    bf16, f32 = jnp.bfloat16, jnp.float32

    # TODO(synk): memory_mask / memory_key_padding_mask are not implemented (the
    # module forward is exercised with the default None masks); Dropout is
    # eval-mode identity.
    def kernel(tgt_ref, mem_ref,
               g2_ref, be2_ref,
               wq_ref, bq_ref, wk_ref, bk_ref, wv_ref, bv_ref,
               wo_ref, bo_ref,
               g3_ref, be3_ref,
               w1_ref, b1_ref, w2_ref, b2_ref,
               o_ref,
               attn_scr):
        NB, Lt, E = tgt_ref.shape
        Lm = mem_ref.shape[1]
        Rt, Rm = NB * Lt, NB * Lm
        dffh = w1_ref.shape[1] // 2

        # Fold batch into the matmul M dimension (leading-dim reshapes only).
        x2 = tgt_ref[...].astype(f32).reshape(Rt, E)          # (Rt, E)
        m2 = mem_ref[...].astype(f32).reshape(Rm, E)          # (Rm, E)

        # ---- LayerNorm2 on the query stream (memory is NOT normed) ----
        tn2 = _layernorm(x2, g2_ref[...], be2_ref[...])       # f32 (Rt, E)
        tn_bf = tn2.astype(bf16)
        m_bf = m2.astype(bf16)

        # ---- Fused full-width Q/K/V projections (1/sqrt(Dh) folded into Wq/bq)
        q2 = jnp.dot(tn_bf, wq_ref[...], preferred_element_type=f32) + bq_ref[...]
        k2 = jnp.dot(m_bf, wk_ref[...], preferred_element_type=f32) + bk_ref[...]
        v2 = jnp.dot(m_bf, wv_ref[...], preferred_element_type=f32) + bv_ref[...]

        # ---- Heads -> leading (batch) dim: (H*NB, L, Dh) via static lane
        #      slices stacked along the free leading axis.
        def split_heads(t2, L):
            t3 = t2.reshape(NB, L, E)                          # leading-dim split
            return jnp.concatenate(
                [t3[:, :, h * Dh:(h + 1) * Dh] for h in range(H)], axis=0
            ).astype(bf16)                                     # (H*NB, L, Dh)

        qh = split_heads(q2, Lt)
        kh = split_heads(k2, Lm)
        vh = split_heads(v2, Lm)

        # ---- One batched score / softmax / PV chain over all heads & batch ----
        # TODO(synk): for long memory lengths add a KV-tile grid axis with
        # flash-style online softmax and pad Lm to a multiple of 128.
        s = jnp.einsum("bqd,bkd->bqk", qh, kh,
                       preferred_element_type=f32)             # (H*NB, Lt, Lm)
        s = s - jnp.max(s, axis=-1, keepdims=True)
        p = jnp.exp(s)
        p = p * pl.reciprocal(jnp.sum(p, axis=-1, keepdims=True), approx=True)
        a = jnp.einsum("bqk,bkd->bqd", p.astype(bf16), vh,
                       preferred_element_type=f32)             # (H*NB, Lt, Dh)

        # ---- Lay head outputs back lane-contiguously via a VMEM scratch, then
        #      a single K=E output projection.
        for h in range(H):
            attn_scr[:, h * Dh:(h + 1) * Dh] = a[h * NB:(h + 1) * NB].reshape(Rt, Dh)
        attn2 = jnp.dot(attn_scr[...].astype(bf16), wo_ref[...],
                        preferred_element_type=f32) + bo_ref[...]

        y2 = tn2 + attn2                                       # residual on normed tgt

        # ---- LayerNorm3 + GLU feed-forward (fused W1, 128-aligned split) ----
        yn2 = _layernorm(y2, g3_ref[...], be3_ref[...])
        yn_bf = yn2.astype(bf16)
        h1 = jnp.dot(yn_bf, w1_ref[...], preferred_element_type=f32) + b1_ref[...]
        glu = (h1[:, :dffh] * jax.nn.sigmoid(h1[:, dffh:])).astype(bf16)
        ff2 = jnp.dot(glu, w2_ref[...], preferred_element_type=f32) + b2_ref[...]

        out2 = yn2 + ff2
        o_ref[...] = out2.reshape(NB, Lt, E).astype(o_ref.dtype)   # lane-dense store

    return kernel


_PARAM_ORDER = ("g2", "be2", "wq", "bq", "wk", "bk", "wv", "bv",
                "wo", "bo", "g3", "be3", "w1", "b1", "w2", "b2")
_BUFFERED_WEIGHTS_OK = True  # flipped off if pl.Buffered(1) is rejected


def prepare_params(params, nhead):
    """One-time parameter prep (hoist out of the per-call path and reuse):
    bf16 matmul weights, f32 row-vector biases / LN params, 1/sqrt(Dh) folded
    into Wq/bq, GLU weight kept fused as a single (E, dim_feedforward) matrix."""
    E = params["wq"].shape[0]
    scale = 1.0 / math.sqrt(E // nhead)
    bf16, f32 = jnp.bfloat16, jnp.float32
    row = lambda b: b.reshape(1, -1).astype(f32)
    return {
        "g2": row(params["g2"]), "be2": row(params["be2"]),
        "wq": (params["wq"] * scale).astype(bf16), "bq": row(params["bq"] * scale),
        "wk": params["wk"].astype(bf16), "bk": row(params["bk"]),
        "wv": params["wv"].astype(bf16), "bv": row(params["bv"]),
        "wo": params["wo"].astype(bf16), "bo": row(params["bo"]),
        "g3": row(params["g3"]), "be3": row(params["be3"]),
        "w1": params["w1"].astype(bf16), "b1": row(params["b1"]),
        "w2": params["w2"].astype(bf16), "b2": row(params["b2"]),
    }


def _build_call(kernel, N, NB, Lt, Lm, E, out_dtype, prep_list, buffered_weights):
    def wspec(arr):
        nd = arr.ndim
        idx = lambda b, _nd=nd: (0,) * _nd
        if buffered_weights:
            # Grid-invariant weights: single buffer (no 2x VMEM / re-DMA).
            return pl.BlockSpec(arr.shape, idx, pipeline_mode=pl.Buffered(1))
        return pl.BlockSpec(arr.shape, idx)

    grid_spec = pltpu.PrefetchScalarGridSpec(
        num_scalar_prefetch=0,
        grid=(N // NB,),
        in_specs=[pl.BlockSpec((NB, Lt, E), lambda b: (b, 0, 0)),
                  pl.BlockSpec((NB, Lm, E), lambda b: (b, 0, 0))]
                 + [wspec(p) for p in prep_list],
        out_specs=pl.BlockSpec((NB, Lt, E), lambda b: (b, 0, 0)),
        scratch_shapes=[pltpu.VMEM((NB * Lt, E), jnp.float32)],
    )
    return pl.pallas_call(
        kernel,
        out_shape=jax.ShapeDtypeStruct((N, Lt, E), out_dtype),
        grid_spec=grid_spec,
        compiler_params=pltpu.CompilerParams(
            dimension_semantics=("parallel",),
            vmem_limit_bytes=32 * 1024 * 1024),
    )


def pds_layer(tgt, memory, prep, *, nhead, batch_block=1):
    """tgt: (Lt, N, E), memory: (Lm, N, E) — PyTorch MultiheadAttention layout.

    `prep` is the output of prepare_params(); prepare it once and reuse across
    calls. batch_block batches per grid step: pick it so batch_block*Lt >= 256
    rows at production batch sizes while keeping N // batch_block >= 2 steps.
    """
    global _BUFFERED_WEIGHTS_OK
    Lt, N, E = tgt.shape
    Lm, Nm, Em = memory.shape
    assert N == Nm and E == Em and E % nhead == 0
    NB = batch_block
    assert N % NB == 0

    # Batch-major blocks so every in-kernel reshape is a leading-dim fold.
    x = jnp.transpose(tgt, (1, 0, 2))      # (N, Lt, E)
    m = jnp.transpose(memory, (1, 0, 2))   # (N, Lm, E)
    prep_list = [prep[k] for k in _PARAM_ORDER]
    kernel = _make_kernel(nhead, E // nhead)

    args = (kernel, N, NB, Lt, Lm, E, tgt.dtype, prep_list)
    if _BUFFERED_WEIGHTS_OK:
        try:
            out = _build_call(*args, buffered_weights=True)(x, m, *prep_list)
        except Exception:
            # This JAX build does not support pl.Buffered on the top-level TPU
            # pipeline; fall back to default (double-buffered) weight specs.
            _BUFFERED_WEIGHTS_OK = False
            out = _build_call(*args, buffered_weights=False)(x, m, *prep_list)
    else:
        out = _build_call(*args, buffered_weights=False)(x, m, *prep_list)

    return jnp.transpose(out, (1, 0, 2))   # back to (Lt, N, E)


def reference_forward(tgt, memory, params, *, nhead):
    """Pure-JAX f32 reference (weights rounded to bf16 like the kernel uses)."""
    E = tgt.shape[-1]
    H, Dh = nhead, E // nhead
    qz = lambda w: w.astype(jnp.bfloat16).astype(jnp.float32)

    x = jnp.transpose(tgt, (1, 0, 2)).astype(jnp.float32)      # (N, Lt, E)
    m = jnp.transpose(memory, (1, 0, 2)).astype(jnp.float32)   # (N, Lm, E)
    N, Lt, _ = x.shape
    Lm = m.shape[1]

    xn = _layernorm(x, params["g2"], params["be2"])
    q = xn @ qz(params["wq"]) + params["bq"]
    k = m @ qz(params["wk"]) + params["bk"]
    v = m @ qz(params["wv"]) + params["bv"]
    q = q.reshape(N, Lt, H, Dh).transpose(0, 2, 1, 3) / math.sqrt(Dh)
    k = k.reshape(N, Lm, H, Dh).transpose(0, 2, 1, 3)
    v = v.reshape(N, Lm, H, Dh).transpose(0, 2, 1, 3)
    s = jnp.einsum("bhqd,bhkd->bhqk", q, k)
    p = jax.nn.softmax(s, axis=-1)
    a = jnp.einsum("bhqk,bhkd->bhqd", p, v).transpose(0, 2, 1, 3).reshape(N, Lt, E)
    attn = a @ qz(params["wo"]) + params["bo"]
    y = xn + attn
    yn = _layernorm(y, params["g3"], params["be3"])
    hff = yn @ qz(params["w1"]) + params["b1"]
    half = hff.shape[-1] // 2
    glu = hff[..., :half] * jax.nn.sigmoid(hff[..., half:])
    out = yn + (glu @ qz(params["w2"]) + params["b2"])
    return jnp.transpose(out, (1, 0, 2))


def init_params(key, d_model, nhead, dim_feedforward):
    """Deterministic synthetic parameters; weights stored as (in, out) so the
    kernel computes x @ W (== x @ W_pt^T)."""
    ks = jax.random.split(key, 12)
    s = 1.0 / math.sqrt(d_model)
    dffh = dim_feedforward // 2
    u = lambda k, shape, b: jax.random.uniform(k, shape, jnp.float32, -b, b)
    return {
        "wq": u(ks[0], (d_model, d_model), s),
        "wk": u(ks[1], (d_model, d_model), s),
        "wv": u(ks[2], (d_model, d_model), s),
        "bq": u(ks[3], (d_model,), s),
        "bk": u(ks[4], (d_model,), s),
        "bv": u(ks[5], (d_model,), s),
        "wo": u(ks[6], (d_model, d_model), s),
        "bo": u(ks[7], (d_model,), s),
        "g2": jnp.ones((d_model,), jnp.float32),
        "be2": jnp.zeros((d_model,), jnp.float32),
        "g3": jnp.ones((d_model,), jnp.float32),
        "be3": jnp.zeros((d_model,), jnp.float32),
        "w1": u(ks[8], (d_model, dim_feedforward), s),
        "b1": u(ks[9], (dim_feedforward,), s),
        "w2": u(ks[10], (dffh, d_model), 1.0 / math.sqrt(dffh)),
        "b2": u(ks[11], (d_model,), 1.0 / math.sqrt(dffh)),
    }


if __name__ == "__main__":
    # Small shapes consistent with the module (PDSLayer defaults scaled down):
    # d_model=128 (multiple of 128 -> lane-dense stores / aligned matmuls),
    # nhead=4, dim_feedforward=256 (GLU split at 128), tgt len 8, memory len 16,
    # batch 2 -> grid=(2,) parallel steps.
    Lt, Lm, N = 8, 16, 2
    D_MODEL, NHEAD, DFF = 128, 4, 256

    key = jax.random.PRNGKey(0)
    k_t, k_m, k_p = jax.random.split(key, 3)
    tgt = jax.random.normal(k_t, (Lt, N, D_MODEL), jnp.float32)     # (seq_t, batch, d_model)
    memory = jax.random.normal(k_m, (Lm, N, D_MODEL), jnp.float32)  # (seq_m, batch, d_model)
    params = init_params(k_p, D_MODEL, NHEAD, DFF)

    prep = prepare_params(params, NHEAD)              # hoisted: prepare once, reuse
    out = pds_layer(tgt, memory, prep, nhead=NHEAD)
    out = jax.block_until_ready(out)

    ref = reference_forward(tgt, memory, params, nhead=NHEAD)
    assert out.shape == (Lt, N, D_MODEL)
    max_err = float(jnp.max(jnp.abs(out - ref)))
    # bf16 matmul operands / bf16 activation casts (f32 accumulation) and an
    # approx softmax reciprocal -> loosened tolerance vs the f32 reference.
    assert jnp.allclose(out, ref, atol=3e-2, rtol=3e-2), \
        f"mismatch vs reference (max abs err {max_err})"

    print("KERNEL_OK")
</pallas_src>

<mosaic_0001>
module attributes {stable_mosaic.version = 11 : i64} {
  func.func @kernel(%arg0: i32, %arg1: memref<1x8x128xf32, #tpu.memory_space<vmem>>, %arg2: memref<1x16x128xf32, #tpu.memory_space<vmem>>, %arg3: memref<1x128xf32, #tpu.memory_space<vmem>>, %arg4: memref<1x128xf32, #tpu.memory_space<vmem>>, %arg5: memref<128x128xbf16, #tpu.memory_space<vmem>>, %arg6: memref<1x128xf32, #tpu.memory_space<vmem>>, %arg7: memref<128x128xbf16, #tpu.memory_space<vmem>>, %arg8: memref<1x128xf32, #tpu.memory_space<vmem>>, %arg9: memref<128x128xbf16, #tpu.memory_space<vmem>>, %arg10: memref<1x128xf32, #tpu.memory_space<vmem>>, %arg11: memref<128x128xbf16, #tpu.memory_space<vmem>>, %arg12: memref<1x128xf32, #tpu.memory_space<vmem>>, %arg13: memref<1x128xf32, #tpu.memory_space<vmem>>, %arg14: memref<1x128xf32, #tpu.memory_space<vmem>>, %arg15: memref<128x256xbf16, #tpu.memory_space<vmem>>, %arg16: memref<1x256xf32, #tpu.memory_space<vmem>>, %arg17: memref<128x128xbf16, #tpu.memory_space<vmem>>, %arg18: memref<1x128xf32, #tpu.memory_space<vmem>>, %arg19: memref<1x8x128xf32, #tpu.memory_space<vmem>>, %arg20: memref<8x128xf32, #tpu.memory_space<vmem>>) attributes {dimension_semantics = [#tpu.dimension_semantics<parallel>], iteration_bounds = array<i64: 2>, scalar_prefetch = 0 : i64, scratch_operands = 1 : i64, tpu.core_type = #tpu.core_type<tc>, window_params = [{transform_indices = @transform_0, window_bounds = array<i64: 1, 8, 128>}, {transform_indices = @transform_1, window_bounds = array<i64: 1, 16, 128>}, {pipeline_mode = #tpu.pipeline_mode<synchronous>, transform_indices = @transform_2, window_bounds = array<i64: 1, 128>}, {pipeline_mode = #tpu.pipeline_mode<synchronous>, transform_indices = @transform_3, window_bounds = array<i64: 1, 128>}, {pipeline_mode = #tpu.pipeline_mode<synchronous>, transform_indices = @transform_4, window_bounds = array<i64: 128, 128>}, {pipeline_mode = #tpu.pipeline_mode<synchronous>, transform_indices = @transform_5, window_bounds = array<i64: 1, 128>}, {pipeline_mode = #tpu.pipeline_mode<synchronous>, transform_indices = @transform_6, window_bounds = array<i64: 128, 128>}, {pipeline_mode = #tpu.pipeline_mode<synchronous>, transform_indices = @transform_7, window_bounds = array<i64: 1, 128>}, {pipeline_mode = #tpu.pipeline_mode<synchronous>, transform_indices = @transform_8, window_bounds = array<i64: 128, 128>}, {pipeline_mode = #tpu.pipeline_mode<synchronous>, transform_indices = @transform_9, window_bounds = array<i64: 1, 128>}, {pipeline_mode = #tpu.pipeline_mode<synchronous>, transform_indices = @transform_10, window_bounds = array<i64: 128, 128>}, {pipeline_mode = #tpu.pipeline_mode<synchronous>, transform_indices = @transform_11, window_bounds = array<i64: 1, 128>}, {pipeline_mode = #tpu.pipeline_mode<synchronous>, transform_indices = @transform_12, window_bounds = array<i64: 1, 128>}, {pipeline_mode = #tpu.pipeline_mode<synchronous>, transform_indices = @transform_13, window_bounds = array<i64: 1, 128>}, {pipeline_mode = #tpu.pipeline_mode<synchronous>, transform_indices = @transform_14, window_bounds = array<i64: 128, 256>}, {pipeline_mode = #tpu.pipeline_mode<synchronous>, transform_indices = @transform_15, window_bounds = array<i64: 1, 256>}, {pipeline_mode = #tpu.pipeline_mode<synchronous>, transform_indices = @transform_16, window_bounds = array<i64: 128, 128>}, {pipeline_mode = #tpu.pipeline_mode<synchronous>, transform_indices = @transform_17, window_bounds = array<i64: 1, 128>}, {transform_indices = @transform_18, window_bounds = array<i64: 1, 8, 128>}]} {
    %c0 = arith.constant 0 : index
    %c0_0 = arith.constant 0 : index
    %c0_1 = arith.constant 0 : index
    %0 = vector.load %arg1[%c0, %c0_0, %c0_1] : memref<1x8x128xf32, #tpu.memory_space<vmem>>, vector<1x8x128xf32>
    %1 = vector.shape_cast %0 : vector<1x8x128xf32> to vector<8x128xf32>
    %c0_2 = arith.constant 0 : index
    %c0_3 = arith.constant 0 : index
    %c0_4 = arith.constant 0 : index
    %2 = vector.load %arg2[%c0_2, %c0_3, %c0_4] : memref<1x16x128xf32, #tpu.memory_space<vmem>>, vector<1x16x128xf32>
    %3 = vector.shape_cast %2 : vector<1x16x128xf32> to vector<16x128xf32>
    %c0_5 = arith.constant 0 : index
    %c0_6 = arith.constant 0 : index
    %4 = vector.load %arg3[%c0_5, %c0_6] : memref<1x128xf32, #tpu.memory_space<vmem>>, vector<1x128xf32>
    %c0_7 = arith.constant 0 : index
    %c0_8 = arith.constant 0 : index
    %5 = vector.load %arg4[%c0_7, %c0_8] : memref<1x128xf32, #tpu.memory_space<vmem>>, vector<1x128xf32>
    %cst = arith.constant dense<0.000000e+00> : vector<8xf32>
    %6 = vector.multi_reduction <add>, %1, %cst [1] : vector<8x128xf32> to vector<8xf32>
    %7 = vector.shape_cast %6 : vector<8xf32> to vector<8x1xf32>
    %cst_9 = arith.constant 1.280000e+02 : f32
    %8 = vector.broadcast %cst_9 : f32 to vector<8x1xf32>
    %9 = arith.divf %7, %8 : vector<8x1xf32>
    %10 = vector.broadcast %9 : vector<8x1xf32> to vector<8x128xf32>
    %11 = arith.subf %1, %10 : vector<8x128xf32>
    %12 = arith.mulf %11, %11 : vector<8x128xf32>
    %cst_10 = arith.constant dense<0.000000e+00> : vector<8xf32>
    %13 = vector.multi_reduction <add>, %12, %cst_10 [1] : vector<8x128xf32> to vector<8xf32>
    %14 = vector.shape_cast %13 : vector<8xf32> to vector<8x1xf32>
    %cst_11 = arith.constant 1.280000e+02 : f32
    %15 = vector.broadcast %cst_11 : f32 to vector<8x1xf32>
    %16 = arith.divf %14, %15 : vector<8x1xf32>
    %17 = vector.broadcast %9 : vector<8x1xf32> to vector<8x128xf32>
    %18 = arith.subf %1, %17 : vector<8x128xf32>
    %cst_12 = arith.constant 9.99999974E-6 : f32
    %19 = vector.broadcast %cst_12 : f32 to vector<8x1xf32>
    %20 = arith.addf %16, %19 : vector<8x1xf32>
    %21 = math.rsqrt %20 : vector<8x1xf32>
    %22 = vector.broadcast %21 : vector<8x1xf32> to vector<8x128xf32>
    %23 = arith.mulf %18, %22 : vector<8x128xf32>
    %24 = vector.broadcast %4 : vector<1x128xf32> to vector<8x128xf32>
    %25 = arith.mulf %23, %24 : vector<8x128xf32>
    %26 = vector.broadcast %5 : vector<1x128xf32> to vector<8x128xf32>
    %27 = arith.addf %25, %26 : vector<8x128xf32>
    %28 = arith.truncf %27 : vector<8x128xf32> to vector<8x128xbf16>
    %29 = arith.truncf %3 : vector<16x128xf32> to vector<16x128xbf16>
    %c0_13 = arith.constant 0 : index
    %c0_14 = arith.constant 0 : index
    %30 = vector.load %arg5[%c0_13, %c0_14] : memref<128x128xbf16, #tpu.memory_space<vmem>>, vector<128x128xbf16>
    %cst_15 = arith.constant dense<0.000000e+00> : vector<8x128xf32>
    %31 = tpu.matmul %28, %30, %cst_15 {dimension_numbers = #tpu.dot_dimension_numbers<[1], [0], [0], [1], [0, 0, 1, 1], [], []>} : vector<8x128xbf16>, vector<128x128xbf16>, vector<8x128xf32> -> vector<8x128xf32>
    %c0_16 = arith.constant 0 : index
    %c0_17 = arith.constant 0 : index
    %32 = vector.load %arg6[%c0_16, %c0_17] : memref<1x128xf32, #tpu.memory_space<vmem>>, vector<1x128xf32>
    %33 = vector.broadcast %32 : vector<1x128xf32> to vector<8x128xf32>
    %34 = arith.addf %31, %33 : vector<8x128xf32>
    %c0_18 = arith.constant 0 : index
    %c0_19 = arith.constant 0 : index
    %35 = vector.load %arg7[%c0_18, %c0_19] : memref<128x128xbf16, #tpu.memory_space<vmem>>, vector<128x128xbf16>
    %cst_20 = arith.constant dense<0.000000e+00> : vector<16x128xf32>
    %36 = tpu.matmul %29, %35, %cst_20 {dimension_numbers = #tpu.dot_dimension_numbers<[1], [0], [0], [1], [0, 0, 1, 1], [], []>} : vector<16x128xbf16>, vector<128x128xbf16>, vector<16x128xf32> -> vector<16x128xf32>
    %c0_21 = arith.constant 0 : index
    %c0_22 = arith.constant 0 : index
    %37 = vector.load %arg8[%c0_21, %c0_22] : memref<1x128xf32, #tpu.memory_space<vmem>>, vector<1x128xf32>
    %38 = vector.broadcast %37 : vector<1x128xf32> to vector<16x128xf32>
    %39 = arith.addf %36, %38 : vector<16x128xf32>
    %c0_23 = arith.constant 0 : index
    %c0_24 = arith.constant 0 : index
    %40 = vector.load %arg9[%c0_23, %c0_24] : memref<128x128xbf16, #tpu.memory_space<vmem>>, vector<128x128xbf16>
    %cst_25 = arith.constant dense<0.000000e+00> : vector<16x128xf32>
    %41 = tpu.matmul %29, %40, %cst_25 {dimension_numbers = #tpu.dot_dimension_numbers<[1], [0], [0], [1], [0, 0, 1, 1], [], []>} : vector<16x128xbf16>, vector<128x128xbf16>, vector<16x128xf32> -> vector<16x128xf32>
    %c0_26 = arith.constant 0 : index
    %c0_27 = arith.constant 0 : index
    %42 = vector.load %arg10[%c0_26, %c0_27] : memref<1x128xf32, #tpu.memory_space<vmem>>, vector<1x128xf32>
    %43 = vector.broadcast %42 : vector<1x128xf32> to vector<16x128xf32>
    %44 = arith.addf %41, %43 : vector<16x128xf32>
    %45 = vector.shape_cast %34 : vector<8x128xf32> to vector<1x8x128xf32>
    %46 = vector.extract_strided_slice %45 {offsets = [0, 0, 0], sizes = [1, 8, 32], strides = [1, 1, 1]} : vector<1x8x128xf32> to vector<1x8x32xf32>
    %47 = vector.extract_strided_slice %45 {offsets = [0, 0, 32], sizes = [1, 8, 32], strides = [1, 1, 1]} : vector<1x8x128xf32> to vector<1x8x32xf32>
    %48 = vector.extract_strided_slice %45 {offsets = [0, 0, 64], sizes = [1, 8, 32], strides = [1, 1, 1]} : vector<1x8x128xf32> to vector<1x8x32xf32>
    %49 = vector.extract_strided_slice %45 {offsets = [0, 0, 96], sizes = [1, 8, 32], strides = [1, 1, 1]} : vector<1x8x128xf32> to vector<1x8x32xf32>
    %50 = tpu.concatenate %46, %47, %48, %49 in 0 : vector<1x8x32xf32>, vector<1x8x32xf32>, vector<1x8x32xf32>, vector<1x8x32xf32> -> vector<4x8x32xf32>
    %51 = arith.truncf %50 : vector<4x8x32xf32> to vector<4x8x32xbf16>
    %52 = vector.shape_cast %39 : vector<16x128xf32> to vector<1x16x128xf32>
    %53 = vector.extract_strided_slice %52 {offsets = [0, 0, 0], sizes = [1, 16, 32], strides = [1, 1, 1]} : vector<1x16x128xf32> to vector<1x16x32xf32>
    %54 = vector.extract_strided_slice %52 {offsets = [0, 0, 32], sizes = [1, 16, 32], strides = [1, 1, 1]} : vector<1x16x128xf32> to vector<1x16x32xf32>
    %55 = vector.extract_strided_slice %52 {offsets = [0, 0, 64], sizes = [1, 16, 32], strides = [1, 1, 1]} : vector<1x16x128xf32> to vector<1x16x32xf32>
    %56 = vector.extract_strided_slice %52 {offsets = [0, 0, 96], sizes = [1, 16, 32], strides = [1, 1, 1]} : vector<1x16x128xf32> to vector<1x16x32xf32>
    %57 = tpu.concatenate %53, %54, %55, %56 in 0 : vector<1x16x32xf32>, vector<1x16x32xf32>, vector<1x16x32xf32>, vector<1x16x32xf32> -> vector<4x16x32xf32>
    %58 = arith.truncf %57 : vector<4x16x32xf32> to vector<4x16x32xbf16>
    %59 = vector.shape_cast %44 : vector<16x128xf32> to vector<1x16x128xf32>
    %60 = vector.extract_strided_slice %59 {offsets = [0, 0, 0], sizes = [1, 16, 32], strides = [1, 1, 1]} : vector<1x16x128xf32> to vector<1x16x32xf32>
    %61 = vector.extract_strided_slice %59 {offsets = [0, 0, 32], sizes = [1, 16, 32], strides = [1, 1, 1]} : vector<1x16x128xf32> to vector<1x16x32xf32>
    %62 = vector.extract_strided_slice %59 {offsets = [0, 0, 64], sizes = [1, 16, 32], strides = [1, 1, 1]} : vector<1x16x128xf32> to vector<1x16x32xf32>
    %63 = vector.extract_strided_slice %59 {offsets = [0, 0, 96], sizes = [1, 16, 32], strides = [1, 1, 1]} : vector<1x16x128xf32> to vector<1x16x32xf32>
    %64 = tpu.concatenate %60, %61, %62, %63 in 0 : vector<1x16x32xf32>, vector<1x16x32xf32>, vector<1x16x32xf32>, vector<1x16x32xf32> -> vector<4x16x32xf32>
    %65 = arith.truncf %64 : vector<4x16x32xf32> to vector<4x16x32xbf16>
    "tpu.trace_start"() <{level = 10 : i32, message = "bqd,bkd->bqk"}> : () -> ()
    %cst_28 = arith.constant dense<0.000000e+00> : vector<4x8x16xf32>
    %66 = tpu.matmul %51, %58, %cst_28 {dimension_numbers = #tpu.dot_dimension_numbers<[2], [2], [1], [1], [0, 0, 0, 1, 1, 1], [0], [0]>} : vector<4x8x32xbf16>, vector<4x16x32xbf16>, vector<4x8x16xf32> -> vector<4x8x16xf32>
    "tpu.trace_stop"() : () -> ()
    %cst_29 = arith.constant dense<0xFF800000> : vector<4x8xf32>
    %67 = vector.multi_reduction <maximumf>, %66, %cst_29 [2] : vector<4x8x16xf32> to vector<4x8xf32>
    %68 = vector.shape_cast %67 : vector<4x8xf32> to vector<4x8x1xf32>
    %69 = vector.broadcast %68 : vector<4x8x1xf32> to vector<4x8x16xf32>
    %70 = arith.subf %66, %69 : vector<4x8x16xf32>
    %71 = math.exp %70 : vector<4x8x16xf32>
    %cst_30 = arith.constant dense<0.000000e+00> : vector<4x8xf32>
    %72 = vector.multi_reduction <add>, %71, %cst_30 [2] : vector<4x8x16xf32> to vector<4x8xf32>
    %73 = vector.shape_cast %72 : vector<4x8xf32> to vector<4x8x1xf32>
    %74 = tpu.reciprocal %73 {approx = true} : vector<4x8x1xf32> -> vector<4x8x1xf32>
    %75 = vector.broadcast %74 : vector<4x8x1xf32> to vector<4x8x16xf32>
    %76 = arith.mulf %71, %75 : vector<4x8x16xf32>
    %77 = arith.truncf %76 : vector<4x8x16xf32> to vector<4x8x16xbf16>
    "tpu.trace_start"() <{level = 10 : i32, message = "bqk,bkd->bqd"}> : () -> ()
    %cst_31 = arith.constant dense<0.000000e+00> : vector<4x8x32xf32>
    %78 = tpu.matmul %77, %65, %cst_31 {dimension_numbers = #tpu.dot_dimension_numbers<[2], [1], [1], [2], [0, 0, 0, 1, 1, 2], [0], [0]>} : vector<4x8x16xbf16>, vector<4x16x32xbf16>, vector<4x8x32xf32> -> vector<4x8x32xf32>
    "tpu.trace_stop"() : () -> ()
    %79 = vector.extract_strided_slice %78 {offsets = [0, 0, 0], sizes = [1, 8, 32], strides = [1, 1, 1]} : vector<4x8x32xf32> to vector<1x8x32xf32>
    %80 = vector.shape_cast %79 : vector<1x8x32xf32> to vector<8x32xf32>
    %c0_32 = arith.constant 0 : index
    %c0_33 = arith.constant 0 : index
    %81 = vector.load %arg20[%c0_32, %c0_33] : memref<8x128xf32, #tpu.memory_space<vmem>>, vector<8x32xf32>
    tpu.vector_store %arg20[%c0_32, %c0_33], %80 {strides = array<i32>} : memref<8x128xf32, #tpu.memory_space<vmem>>, vector<8x32xf32>,
    %82 = vector.extract_strided_slice %78 {offsets = [1, 0, 0], sizes = [1, 8, 32], strides = [1, 1, 1]} : vector<4x8x32xf32> to vector<1x8x32xf32>
    %83 = vector.shape_cast %82 : vector<1x8x32xf32> to vector<8x32xf32>
    %c0_34 = arith.constant 0 : index
    %c32 = arith.constant 32 : index
    %84 = vector.load %arg20[%c0_34, %c32] : memref<8x128xf32, #tpu.memory_space<vmem>>, vector<8x32xf32>
    tpu.vector_store %arg20[%c0_34, %c32], %83 {strides = array<i32>} : memref<8x128xf32, #tpu.memory_space<vmem>>, vector<8x32xf32>,
    %85 = vector.extract_strided_slice %78 {offsets = [2, 0, 0], sizes = [1, 8, 32], strides = [1, 1, 1]} : vector<4x8x32xf32> to vector<1x8x32xf32>
    %86 = vector.shape_cast %85 : vector<1x8x32xf32> to vector<8x32xf32>
    %c0_35 = arith.constant 0 : index
    %c64 = arith.constant 64 : index
    %87 = vector.load %arg20[%c0_35, %c64] : memref<8x128xf32, #tpu.memory_space<vmem>>, vector<8x32xf32>
    tpu.vector_store %arg20[%c0_35, %c64], %86 {strides = array<i32>} : memref<8x128xf32, #tpu.memory_space<vmem>>, vector<8x32xf32>,
    %88 = vector.extract_strided_slice %78 {offsets = [3, 0, 0], sizes = [1, 8, 32], strides = [1, 1, 1]} : vector<4x8x32xf32> to vector<1x8x32xf32>
    %89 = vector.shape_cast %88 : vector<1x8x32xf32> to vector<8x32xf32>
    %c0_36 = arith.constant 0 : index
    %c96 = arith.constant 96 : index
    %90 = vector.load %arg20[%c0_36, %c96] : memref<8x128xf32, #tpu.memory_space<vmem>>, vector<8x32xf32>
    tpu.vector_store %arg20[%c0_36, %c96], %89 {strides = array<i32>} : memref<8x128xf32, #tpu.memory_space<vmem>>, vector<8x32xf32>,
    %c0_37 = arith.constant 0 : index
    %c0_38 = arith.constant 0 : index
    %91 = vector.load %arg20[%c0_37, %c0_38] : memref<8x128xf32, #tpu.memory_space<vmem>>, vector<8x128xf32>
    %92 = arith.truncf %91 : vector<8x128xf32> to vector<8x128xbf16>
    %c0_39 = arith.constant 0 : index
    %c0_40 = arith.constant 0 : index
    %93 = vector.load %arg11[%c0_39, %c0_40] : memref<128x128xbf16, #tpu.memory_space<vmem>>, vector<128x128xbf16>
    %cst_41 = arith.constant dense<0.000000e+00> : vector<8x128xf32>
    %94 = tpu.matmul %92, %93, %cst_41 {dimension_numbers = #tpu.dot_dimension_numbers<[1], [0], [0], [1], [0, 0, 1, 1], [], []>} : vector<8x128xbf16>, vector<128x128xbf16>, vector<8x128xf32> -> vector<8x128xf32>
    %c0_42 = arith.constant 0 : index
    %c0_43 = arith.constant 0 : index
    %95 = vector.load %arg12[%c0_42, %c0_43] : memref<1x128xf32, #tpu.memory_space<vmem>>, vector<1x128xf32>
    %96 = vector.broadcast %95 : vector<1x128xf32> to vector<8x128xf32>
    %97 = arith.addf %94, %96 : vector<8x128xf32>
    %98 = arith.addf %27, %97 : vector<8x128xf32>
    %c0_44 = arith.constant 0 : index
    %c0_45 = arith.constant 0 : index
    %99 = vector.load %arg13[%c0_44, %c0_45] : memref<1x128xf32, #tpu.memory_space<vmem>>, vector<1x128xf32>
    %c0_46 = arith.constant 0 : index
    %c0_47 = arith.constant 0 : index
    %100 = vector.load %arg14[%c0_46, %c0_47] : memref<1x128xf32, #tpu.memory_space<vmem>>, vector<1x128xf32>
    %cst_48 = arith.constant dense<0.000000e+00> : vector<8xf32>
    %101 = vector.multi_reduction <add>, %98, %cst_48 [1] : vector<8x128xf32> to vector<8xf32>
    %102 = vector.shape_cast %101 : vector<8xf32> to vector<8x1xf32>
    %cst_49 = arith.constant 1.280000e+02 : f32
    %103 = vector.broadcast %cst_49 : f32 to vector<8x1xf32>
    %104 = arith.divf %102, %103 : vector<8x1xf32>
    %105 = vector.broadcast %104 : vector<8x1xf32> to vector<8x128xf32>
    %106 = arith.subf %98, %105 : vector<8x128xf32>
    %107 = arith.mulf %106, %106 : vector<8x128xf32>
    %cst_50 = arith.constant dense<0.000000e+00> : vector<8xf32>
    %108 = vector.multi_reduction <add>, %107, %cst_50 [1] : vector<8x128xf32> to vector<8xf32>
    %109 = vector.shape_cast %108 : vector<8xf32> to vector<8x1xf32>
    %cst_51 = arith.constant 1.280000e+02 : f32
    %110 = vector.broadcast %cst_51 : f32 to vector<8x1xf32>
    %111 = arith.divf %109, %110 : vector<8x1xf32>
    %112 = vector.broadcast %104 : vector<8x1xf32> to vector<8x128xf32>
    %113 = arith.subf %98, %112 : vector<8x128xf32>
    %cst_52 = arith.constant 9.99999974E-6 : f32
    %114 = vector.broadcast %cst_52 : f32 to vector<8x1xf32>
    %115 = arith.addf %111, %114 : vector<8x1xf32>
    %116 = math.rsqrt %115 : vector<8x1xf32>
    %117 = vector.broadcast %116 : vector<8x1xf32> to vector<8x128xf32>
    %118 = arith.mulf %113, %117 : vector<8x128xf32>
    %119 = vector.broadcast %99 : vector<1x128xf32> to vector<8x128xf32>
    %120 = arith.mulf %118, %119 : vector<8x128xf32>
    %121 = vector.broadcast %100 : vector<1x128xf32> to vector<8x128xf32>
    %122 = arith.addf %120, %121 : vector<8x128xf32>
    %123 = arith.truncf %122 : vector<8x128xf32> to vector<8x128xbf16>
    %c0_53 = arith.constant 0 : index
    %c0_54 = arith.constant 0 : index
    %124 = vector.load %arg15[%c0_53, %c0_54] : memref<128x256xbf16, #tpu.memory_space<vmem>>, vector<128x256xbf16>
    %cst_55 = arith.constant dense<0.000000e+00> : vector<8x256xf32>
    %125 = tpu.matmul %123, %124, %cst_55 {dimension_numbers = #tpu.dot_dimension_numbers<[1], [0], [0], [1], [0, 0, 1, 1], [], []>} : vector<8x128xbf16>, vector<128x256xbf16>, vector<8x256xf32> -> vector<8x256xf32>
    %c0_56 = arith.constant 0 : index
    %c0_57 = arith.constant 0 : index
    %126 = vector.load %arg16[%c0_56, %c0_57] : memref<1x256xf32, #tpu.memory_space<vmem>>, vector<1x256xf32>
    %127 = vector.broadcast %126 : vector<1x256xf32> to vector<8x256xf32>
    %128 = arith.addf %125, %127 : vector<8x256xf32>
    %129 = vector.extract_strided_slice %128 {offsets = [0, 0], sizes = [8, 128], strides = [1, 1]} : vector<8x256xf32> to vector<8x128xf32>
    %130 = vector.extract_strided_slice %128 {offsets = [0, 128], sizes = [8, 128], strides = [1, 1]} : vector<8x256xf32> to vector<8x128xf32>
    %131 = arith.negf %130 : vector<8x128xf32>
    %132 = math.exp %131 : vector<8x128xf32>
    %cst_58 = arith.constant 1.000000e+00 : f32
    %133 = vector.broadcast %cst_58 : f32 to vector<8x128xf32>
    %134 = arith.addf %133, %132 : vector<8x128xf32>
    %135 = arith.divf %133, %134 : vector<8x128xf32>
    %136 = arith.mulf %129, %135 : vector<8x128xf32>
    %137 = arith.truncf %136 : vector<8x128xf32> to vector<8x128xbf16>
    %c0_59 = arith.constant 0 : index
    %c0_60 = arith.constant 0 : index
    %138 = vector.load %arg17[%c0_59, %c0_60] : memref<128x128xbf16, #tpu.memory_space<vmem>>, vector<128x128xbf16>
    %cst_61 = arith.constant dense<0.000000e+00> : vector<8x128xf32>
    %139 = tpu.matmul %137, %138, %cst_61 {dimension_numbers = #tpu.dot_dimension_numbers<[1], [0], [0], [1], [0, 0, 1, 1], [], []>} : vector<8x128xbf16>, vector<128x128xbf16>, vector<8x128xf32> -> vector<8x128xf32>
    %c0_62 = arith.constant 0 : index
    %c0_63 = arith.constant 0 : index
    %140 = vector.load %arg18[%c0_62, %c0_63] : memref<1x128xf32, #tpu.memory_space<vmem>>, vector<1x128xf32>
    %141 = vector.broadcast %140 : vector<1x128xf32> to vector<8x128xf32>
    %142 = arith.addf %139, %141 : vector<8x128xf32>
    %143 = arith.addf %122, %142 : vector<8x128xf32>
    %144 = vector.shape_cast %143 : vector<8x128xf32> to vector<1x8x128xf32>
    %c0_64 = arith.constant 0 : index
    %c0_65 = arith.constant 0 : index
    %c0_66 = arith.constant 0 : index
    %145 = vector.load %arg19[%c0_64, %c0_65, %c0_66] : memref<1x8x128xf32, #tpu.memory_space<vmem>>, vector<1x8x128xf32>
    tpu.vector_store %arg19[%c0_64, %c0_65, %c0_66], %144 {strides = array<i32>} : memref<1x8x128xf32, #tpu.memory_space<vmem>>, vector<1x8x128xf32>,
    return
  }
  func.func @transform_0(%arg0: i32) -> (i32, i32, i32) {
    %c0_i32 = arith.constant 0 : i32
    %c0_i32_0 = arith.constant 0 : i32
    %c0_i32_1 = arith.constant 0 : i32
    return %arg0, %c0_i32, %c0_i32_0 : i32, i32, i32
  }
  func.func @transform_1(%arg0: i32) -> (i32, i32, i32) {
    %c0_i32 = arith.constant 0 : i32
    %c0_i32_0 = arith.constant 0 : i32
    %c0_i32_1 = arith.constant 0 : i32
    return %arg0, %c0_i32, %c0_i32_0 : i32, i32, i32
  }
  func.func @transform_2(%arg0: i32) -> (i32, i32) {
    %c0_i32 = arith.constant 0 : i32
    %c0_i32_0 = arith.constant 0 : i32
    %c0_i32_1 = arith.constant 0 : i32
    return %c0_i32, %c0_i32_0 : i32, i32
  }
  func.func @transform_3(%arg0: i32) -> (i32, i32) {
    %c0_i32 = arith.constant 0 : i32
    %c0_i32_0 = arith.constant 0 : i32
    %c0_i32_1 = arith.constant 0 : i32
    return %c0_i32, %c0_i32_0 : i32, i32
  }
  func.func @transform_4(%arg0: i32) -> (i32, i32) {
    %c0_i32 = arith.constant 0 : i32
    %c0_i32_0 = arith.constant 0 : i32
    %c0_i32_1 = arith.constant 0 : i32
    return %c0_i32, %c0_i32_0 : i32, i32
  }
  func.func @transform_5(%arg0: i32) -> (i32, i32) {
    %c0_i32 = arith.constant 0 : i32
    %c0_i32_0 = arith.constant 0 : i32
    %c0_i32_1 = arith.constant 0 : i32
    return %c0_i32, %c0_i32_0 : i32, i32
  }
  func.func @transform_6(%arg0: i32) -> (i32, i32) {
    %c0_i32 = arith.constant 0 : i32
    %c0_i32_0 = arith.constant 0 : i32
    %c0_i32_1 = arith.constant 0 : i32
    return %c0_i32, %c0_i32_0 : i32, i32
  }
  func.func @transform_7(%arg0: i32) -> (i32, i32) {
    %c0_i32 = arith.constant 0 : i32
    %c0_i32_0 = arith.constant 0 : i32
    %c0_i32_1 = arith.constant 0 : i32
    return %c0_i32, %c0_i32_0 : i32, i32
  }
  func.func @transform_8(%arg0: i32) -> (i32, i32) {
    %c0_i32 = arith.constant 0 : i32
    %c0_i32_0 = arith.constant 0 : i32
    %c0_i32_1 = arith.constant 0 : i32
    return %c0_i32, %c0_i32_0 : i32, i32
  }
  func.func @transform_9(%arg0: i32) -> (i32, i32) {
    %c0_i32 = arith.constant 0 : i32
    %c0_i32_0 = arith.constant 0 : i32
    %c0_i32_1 = arith.constant 0 : i32
    return %c0_i32, %c0_i32_0 : i32, i32
  }
  func.func @transform_10(%arg0: i32) -> (i32, i32) {
    %c0_i32 = arith.constant 0 : i32
    %c0_i32_0 = arith.constant 0 : i32
    %c0_i32_1 = arith.constant 0 : i32
    return %c0_i32, %c0_i32_0 : i32, i32
  }
  func.func @transform_11(%arg0: i32) -> (i32, i32) {
    %c0_i32 = arith.constant 0 : i32
    %c0_i32_0 = arith.constant 0 : i32
    %c0_i32_1 = arith.constant 0 : i32
    return %c0_i32, %c0_i32_0 : i32, i32
  }
  func.func @transform_12(%arg0: i32) -> (i32, i32) {
    %c0_i32 = arith.constant 0 : i32
    %c0_i32_0 = arith.constant 0 : i32
    %c0_i32_1 = arith.constant 0 : i32
    return %c0_i32, %c0_i32_0 : i32, i32
  }
  func.func @transform_13(%arg0: i32) -> (i32, i32) {
    %c0_i32 = arith.constant 0 : i32
    %c0_i32_0 = arith.constant 0 : i32
    %c0_i32_1 = arith.constant 0 : i32
    return %c0_i32, %c0_i32_0 : i32, i32
  }
  func.func @transform_14(%arg0: i32) -> (i32, i32) {
    %c0_i32 = arith.constant 0 : i32
    %c0_i32_0 = arith.constant 0 : i32
    %c0_i32_1 = arith.constant 0 : i32
    return %c0_i32, %c0_i32_0 : i32, i32
  }
  func.func @transform_15(%arg0: i32) -> (i32, i32) {
    %c0_i32 = arith.constant 0 : i32
    %c0_i32_0 = arith.constant 0 : i32
    %c0_i32_1 = arith.constant 0 : i32
    return %c0_i32, %c0_i32_0 : i32, i32
  }
  func.func @transform_16(%arg0: i32) -> (i32, i32) {
    %c0_i32 = arith.constant 0 : i32
    %c0_i32_0 = arith.constant 0 : i32
    %c0_i32_1 = arith.constant 0 : i32
    return %c0_i32, %c0_i32_0 : i32, i32
  }
  func.func @transform_17(%arg0: i32) -> (i32, i32) {
    %c0_i32 = arith.constant 0 : i32
    %c0_i32_0 = arith.constant 0 : i32
    %c0_i32_1 = arith.constant 0 : i32
    return %c0_i32, %c0_i32_0 : i32, i32
  }
  func.func @transform_18(%arg0: i32) -> (i32, i32, i32) {
    %c0_i32 = arith.constant 0 : i32
    %c0_i32_0 = arith.constant 0 : i32
    %c0_i32_1 = arith.constant 0 : i32
    return %arg0, %c0_i32, %c0_i32_0 : i32, i32, i32
  }
}

module attributes {stable_mosaic.version = 11 : i64} {
  func.func @kernel(%arg0: i32, %arg1: memref<1x8x128xf32, #tpu.memory_space<vmem>>, %arg2: memref<1x16x128xf32, #tpu.memory_space<vmem>>, %arg3: memref<1x128xf32, #tpu.memory_space<vmem>>, %arg4: memref<1x128xf32, #tpu.memory_space<vmem>>, %arg5: memref<128x128xbf16, #tpu.memory_space<vmem>>, %arg6: memref<1x128xf32, #tpu.memory_space<vmem>>, %arg7: memref<128x128xbf16, #tpu.memory_space<vmem>>, %arg8: memref<1x128xf32, #tpu.memory_space<vmem>>, %arg9: memref<128x128xbf16, #tpu.memory_space<vmem>>, %arg10: memref<1x128xf32, #tpu.memory_space<vmem>>, %arg11: memref<128x128xbf16, #tpu.memory_space<vmem>>, %arg12: memref<1x128xf32, #tpu.memory_space<vmem>>, %arg13: memref<1x128xf32, #tpu.memory_space<vmem>>, %arg14: memref<1x128xf32, #tpu.memory_space<vmem>>, %arg15: memref<128x256xbf16, #tpu.memory_space<vmem>>, %arg16: memref<1x256xf32, #tpu.memory_space<vmem>>, %arg17: memref<128x128xbf16, #tpu.memory_space<vmem>>, %arg18: memref<1x128xf32, #tpu.memory_space<vmem>>, %arg19: memref<1x8x128xf32, #tpu.memory_space<vmem>>, %arg20: memref<8x128xf32, #tpu.memory_space<vmem>>) attributes {dimension_semantics = [#tpu.dimension_semantics<parallel>], iteration_bounds = array<i64: 2>, scalar_prefetch = 0 : i64, scratch_operands = 1 : i64, tpu.core_type = #tpu.core_type<tc>, window_params = [{transform_indices = @transform_0, window_bounds = array<i64: 1, 8, 128>}, {transform_indices = @transform_1, window_bounds = array<i64: 1, 16, 128>}, {pipeline_mode = #tpu.pipeline_mode<synchronous>, transform_indices = @transform_2, window_bounds = array<i64: 1, 128>}, {pipeline_mode = #tpu.pipeline_mode<synchronous>, transform_indices = @transform_3, window_bounds = array<i64: 1, 128>}, {pipeline_mode = #tpu.pipeline_mode<synchronous>, transform_indices = @transform_4, window_bounds = array<i64: 128, 128>}, {pipeline_mode = #tpu.pipeline_mode<synchronous>, transform_indices = @transform_5, window_bounds = array<i64: 1, 128>}, {pipeline_mode = #tpu.pipeline_mode<synchronous>, transform_indices = @transform_6, window_bounds = array<i64: 128, 128>}, {pipeline_mode = #tpu.pipeline_mode<synchronous>, transform_indices = @transform_7, window_bounds = array<i64: 1, 128>}, {pipeline_mode = #tpu.pipeline_mode<synchronous>, transform_indices = @transform_8, window_bounds = array<i64: 128, 128>}, {pipeline_mode = #tpu.pipeline_mode<synchronous>, transform_indices = @transform_9, window_bounds = array<i64: 1, 128>}, {pipeline_mode = #tpu.pipeline_mode<synchronous>, transform_indices = @transform_10, window_bounds = array<i64: 128, 128>}, {pipeline_mode = #tpu.pipeline_mode<synchronous>, transform_indices = @transform_11, window_bounds = array<i64: 1, 128>}, {pipeline_mode = #tpu.pipeline_mode<synchronous>, transform_indices = @transform_12, window_bounds = array<i64: 1, 128>}, {pipeline_mode = #tpu.pipeline_mode<synchronous>, transform_indices = @transform_13, window_bounds = array<i64: 1, 128>}, {pipeline_mode = #tpu.pipeline_mode<synchronous>, transform_indices = @transform_14, window_bounds = array<i64: 128, 256>}, {pipeline_mode = #tpu.pipeline_mode<synchronous>, transform_indices = @transform_15, window_bounds = array<i64: 1, 256>}, {pipeline_mode = #tpu.pipeline_mode<synchronous>, transform_indices = @transform_16, window_bounds = array<i64: 128, 128>}, {pipeline_mode = #tpu.pipeline_mode<synchronous>, transform_indices = @transform_17, window_bounds = array<i64: 1, 128>}, {transform_indices = @transform_18, window_bounds = array<i64: 1, 8, 128>}]} {
    %c0 = arith.constant 0 : index
    %c0_0 = arith.constant 0 : index
    %c0_1 = arith.constant 0 : index
    %0 = vector.load %arg1[%c0, %c0_0, %c0_1] : memref<1x8x128xf32, #tpu.memory_space<vmem>>, vector<1x8x128xf32>
    %1 = vector.shape_cast %0 : vector<1x8x128xf32> to vector<8x128xf32>
    %c0_2 = arith.constant 0 : index
    %c0_3 = arith.constant 0 : index
    %c0_4 = arith.constant 0 : index
    %2 = vector.load %arg2[%c0_2, %c0_3, %c0_4] : memref<1x16x128xf32, #tpu.memory_space<vmem>>, vector<1x16x128xf32>
    %3 = vector.shape_cast %2 : vector<1x16x128xf32> to vector<16x128xf32>
    %c0_5 = arith.constant 0 : index
    %c0_6 = arith.constant 0 : index
    %4 = vector.load %arg3[%c0_5, %c0_6] : memref<1x128xf32, #tpu.memory_space<vmem>>, vector<1x128xf32>
    %c0_7 = arith.constant 0 : index
    %c0_8 = arith.constant 0 : index
    %5 = vector.load %arg4[%c0_7, %c0_8] : memref<1x128xf32, #tpu.memory_space<vmem>>, vector<1x128xf32>
    %cst = arith.constant dense<0.000000e+00> : vector<8xf32>
    %6 = vector.multi_reduction <add>, %1, %cst [1] : vector<8x128xf32> to vector<8xf32>
    %7 = vector.shape_cast %6 : vector<8xf32> to vector<8x1xf32>
    %cst_9 = arith.constant 1.280000e+02 : f32
    %8 = vector.broadcast %cst_9 : f32 to vector<8x1xf32>
    %9 = arith.divf %7, %8 : vector<8x1xf32>
    %10 = vector.broadcast %9 : vector<8x1xf32> to vector<8x128xf32>
    %11 = arith.subf %1, %10 : vector<8x128xf32>
    %12 = arith.mulf %11, %11 : vector<8x128xf32>
    %cst_10 = arith.constant dense<0.000000e+00> : vector<8xf32>
    %13 = vector.multi_reduction <add>, %12, %cst_10 [1] : vector<8x128xf32> to vector<8xf32>
    %14 = vector.shape_cast %13 : vector<8xf32> to vector<8x1xf32>
    %cst_11 = arith.constant 1.280000e+02 : f32
    %15 = vector.broadcast %cst_11 : f32 to vector<8x1xf32>
    %16 = arith.divf %14, %15 : vector<8x1xf32>
    %17 = vector.broadcast %9 : vector<8x1xf32> to vector<8x128xf32>
    %18 = arith.subf %1, %17 : vector<8x128xf32>
    %cst_12 = arith.constant 9.99999974E-6 : f32
    %19 = vector.broadcast %cst_12 : f32 to vector<8x1xf32>
    %20 = arith.addf %16, %19 : vector<8x1xf32>
    %21 = math.rsqrt %20 : vector<8x1xf32>
    %22 = vector.broadcast %21 : vector<8x1xf32> to vector<8x128xf32>
    %23 = arith.mulf %18, %22 : vector<8x128xf32>
    %24 = vector.broadcast %4 : vector<1x128xf32> to vector<8x128xf32>
    %25 = arith.mulf %23, %24 : vector<8x128xf32>
    %26 = vector.broadcast %5 : vector<1x128xf32> to vector<8x128xf32>
    %27 = arith.addf %25, %26 : vector<8x128xf32>
    %28 = arith.truncf %27 : vector<8x128xf32> to vector<8x128xbf16>
    %29 = arith.truncf %3 : vector<16x128xf32> to vector<16x128xbf16>
    %c0_13 = arith.constant 0 : index
    %c0_14 = arith.constant 0 : index
    %30 = vector.load %arg5[%c0_13, %c0_14] : memref<128x128xbf16, #tpu.memory_space<vmem>>, vector<128x128xbf16>
    %cst_15 = arith.constant dense<0.000000e+00> : vector<8x128xf32>
    %31 = tpu.matmul %28, %30, %cst_15 {dimension_numbers = #tpu.dot_dimension_numbers<[1], [0], [0], [1], [0, 0, 1, 1], [], []>} : vector<8x128xbf16>, vector<128x128xbf16>, vector<8x128xf32> -> vector<8x128xf32>
    %c0_16 = arith.constant 0 : index
    %c0_17 = arith.constant 0 : index
    %32 = vector.load %arg6[%c0_16, %c0_17] : memref<1x128xf32, #tpu.memory_space<vmem>>, vector<1x128xf32>
    %33 = vector.broadcast %32 : vector<1x128xf32> to vector<8x128xf32>
    %34 = arith.addf %31, %33 : vector<8x128xf32>
    %c0_18 = arith.constant 0 : index
    %c0_19 = arith.constant 0 : index
    %35 = vector.load %arg7[%c0_18, %c0_19] : memref<128x128xbf16, #tpu.memory_space<vmem>>, vector<128x128xbf16>
    %cst_20 = arith.constant dense<0.000000e+00> : vector<16x128xf32>
    %36 = tpu.matmul %29, %35, %cst_20 {dimension_numbers = #tpu.dot_dimension_numbers<[1], [0], [0], [1], [0, 0, 1, 1], [], []>} : vector<16x128xbf16>, vector<128x128xbf16>, vector<16x128xf32> -> vector<16x128xf32>
    %c0_21 = arith.constant 0 : index
    %c0_22 = arith.constant 0 : index
    %37 = vector.load %arg8[%c0_21, %c0_22] : memref<1x128xf32, #tpu.memory_space<vmem>>, vector<1x128xf32>
    %38 = vector.broadcast %37 : vector<1x128xf32> to vector<16x128xf32>
    %39 = arith.addf %36, %38 : vector<16x128xf32>
    %c0_23 = arith.constant 0 : index
    %c0_24 = arith.constant 0 : index
    %40 = vector.load %arg9[%c0_23, %c0_24] : memref<128x128xbf16, #tpu.memory_space<vmem>>, vector<128x128xbf16>
    %cst_25 = arith.constant dense<0.000000e+00> : vector<16x128xf32>
    %41 = tpu.matmul %29, %40, %cst_25 {dimension_numbers = #tpu.dot_dimension_numbers<[1], [0], [0], [1], [0, 0, 1, 1], [], []>} : vector<16x128xbf16>, vector<128x128xbf16>, vector<16x128xf32> -> vector<16x128xf32>
    %c0_26 = arith.constant 0 : index
    %c0_27 = arith.constant 0 : index
    %42 = vector.load %arg10[%c0_26, %c0_27] : memref<1x128xf32, #tpu.memory_space<vmem>>, vector<1x128xf32>
    %43 = vector.broadcast %42 : vector<1x128xf32> to vector<16x128xf32>
    %44 = arith.addf %41, %43 : vector<16x128xf32>
    %45 = vector.shape_cast %34 : vector<8x128xf32> to vector<1x8x128xf32>
    %46 = vector.extract_strided_slice %45 {offsets = [0, 0, 0], sizes = [1, 8, 32], strides = [1, 1, 1]} : vector<1x8x128xf32> to vector<1x8x32xf32>
    %47 = vector.extract_strided_slice %45 {offsets = [0, 0, 32], sizes = [1, 8, 32], strides = [1, 1, 1]} : vector<1x8x128xf32> to vector<1x8x32xf32>
    %48 = vector.extract_strided_slice %45 {offsets = [0, 0, 64], sizes = [1, 8, 32], strides = [1, 1, 1]} : vector<1x8x128xf32> to vector<1x8x32xf32>
    %49 = vector.extract_strided_slice %45 {offsets = [0, 0, 96], sizes = [1, 8, 32], strides = [1, 1, 1]} : vector<1x8x128xf32> to vector<1x8x32xf32>
    %50 = tpu.concatenate %46, %47, %48, %49 in 0 : vector<1x8x32xf32>, vector<1x8x32xf32>, vector<1x8x32xf32>, vector<1x8x32xf32> -> vector<4x8x32xf32>
    %51 = arith.truncf %50 : vector<4x8x32xf32> to vector<4x8x32xbf16>
    %52 = vector.shape_cast %39 : vector<16x128xf32> to vector<1x16x128xf32>
    %53 = vector.extract_strided_slice %52 {offsets = [0, 0, 0], sizes = [1, 16, 32], strides = [1, 1, 1]} : vector<1x16x128xf32> to vector<1x16x32xf32>
    %54 = vector.extract_strided_slice %52 {offsets = [0, 0, 32], sizes = [1, 16, 32], strides = [1, 1, 1]} : vector<1x16x128xf32> to vector<1x16x32xf32>
    %55 = vector.extract_strided_slice %52 {offsets = [0, 0, 64], sizes = [1, 16, 32], strides = [1, 1, 1]} : vector<1x16x128xf32> to vector<1x16x32xf32>
    %56 = vector.extract_strided_slice %52 {offsets = [0, 0, 96], sizes = [1, 16, 32], strides = [1, 1, 1]} : vector<1x16x128xf32> to vector<1x16x32xf32>
    %57 = tpu.concatenate %53, %54, %55, %56 in 0 : vector<1x16x32xf32>, vector<1x16x32xf32>, vector<1x16x32xf32>, vector<1x16x32xf32> -> vector<4x16x32xf32>
    %58 = arith.truncf %57 : vector<4x16x32xf32> to vector<4x16x32xbf16>
    %59 = vector.shape_cast %44 : vector<16x128xf32> to vector<1x16x128xf32>
    %60 = vector.extract_strided_slice %59 {offsets = [0, 0, 0], sizes = [1, 16, 32], strides = [1, 1, 1]} : vector<1x16x128xf32> to vector<1x16x32xf32>
    %61 = vector.extract_strided_slice %59 {offsets = [0, 0, 32], sizes = [1, 16, 32], strides = [1, 1, 1]} : vector<1x16x128xf32> to vector<1x16x32xf32>
    %62 = vector.extract_strided_slice %59 {offsets = [0, 0, 64], sizes = [1, 16, 32], strides = [1, 1, 1]} : vector<1x16x128xf32> to vector<1x16x32xf32>
    %63 = vector.extract_strided_slice %59 {offsets = [0, 0, 96], sizes = [1, 16, 32], strides = [1, 1, 1]} : vector<1x16x128xf32> to vector<1x16x32xf32>
    %64 = tpu.concatenate %60, %61, %62, %63 in 0 : vector<1x16x32xf32>, vector<1x16x32xf32>, vector<1x16x32xf32>, vector<1x16x32xf32> -> vector<4x16x32xf32>
    %65 = arith.truncf %64 : vector<4x16x32xf32> to vector<4x16x32xbf16>
    "tpu.trace_start"() <{level = 10 : i32, message = "bqd,bkd->bqk"}> : () -> ()
    %cst_28 = arith.constant dense<0.000000e+00> : vector<4x8x16xf32>
    %66 = tpu.matmul %51, %58, %cst_28 {dimension_numbers = #tpu.dot_dimension_numbers<[2], [2], [1], [1], [0, 0, 0, 1, 1, 1], [0], [0]>} : vector<4x8x32xbf16>, vector<4x16x32xbf16>, vector<4x8x16xf32> -> vector<4x8x16xf32>
    "tpu.trace_stop"() : () -> ()
    %cst_29 = arith.constant dense<0xFF800000> : vector<4x8xf32>
    %67 = vector.multi_reduction <maximumf>, %66, %cst_29 [2] : vector<4x8x16xf32> to vector<4x8xf32>
    %68 = vector.shape_cast %67 : vector<4x8xf32> to vector<4x8x1xf32>
    %69 = vector.broadcast %68 : vector<4x8x1xf32> to vector<4x8x16xf32>
    %70 = arith.subf %66, %69 : vector<4x8x16xf32>
    %71 = math.exp %70 : vector<4x8x16xf32>
    %cst_30 = arith.constant dense<0.000000e+00> : vector<4x8xf32>
    %72 = vector.multi_reduction <add>, %71, %cst_30 [2] : vector<4x8x16xf32> to vector<4x8xf32>
    %73 = vector.shape_cast %72 : vector<4x8xf32> to vector<4x8x1xf32>
    %74 = tpu.reciprocal %73 {approx = true} : vector<4x8x1xf32> -> vector<4x8x1xf32>
    %75 = vector.broadcast %74 : vector<4x8x1xf32> to vector<4x8x16xf32>
    %76 = arith.mulf %71, %75 : vector<4x8x16xf32>
    %77 = arith.truncf %76 : vector<4x8x16xf32> to vector<4x8x16xbf16>
    "tpu.trace_start"() <{level = 10 : i32, message = "bqk,bkd->bqd"}> : () -> ()
    %cst_31 = arith.constant dense<0.000000e+00> : vector<4x8x32xf32>
    %78 = tpu.matmul %77, %65, %cst_31 {dimension_numbers = #tpu.dot_dimension_numbers<[2], [1], [1], [2], [0, 0, 0, 1, 1, 2], [0], [0]>} : vector<4x8x16xbf16>, vector<4x16x32xbf16>, vector<4x8x32xf32> -> vector<4x8x32xf32>
    "tpu.trace_stop"() : () -> ()
    %79 = vector.extract_strided_slice %78 {offsets = [0, 0, 0], sizes = [1, 8, 32], strides = [1, 1, 1]} : vector<4x8x32xf32> to vector<1x8x32xf32>
    %80 = vector.shape_cast %79 : vector<1x8x32xf32> to vector<8x32xf32>
    %c0_32 = arith.constant 0 : index
    %c0_33 = arith.constant 0 : index
    %81 = vector.load %arg20[%c0_32, %c0_33] : memref<8x128xf32, #tpu.memory_space<vmem>>, vector<8x32xf32>
    tpu.vector_store %arg20[%c0_32, %c0_33], %80 {strides = array<i32>} : memref<8x128xf32, #tpu.memory_space<vmem>>, vector<8x32xf32>,
    %82 = vector.extract_strided_slice %78 {offsets = [1, 0, 0], sizes = [1, 8, 32], strides = [1, 1, 1]} : vector<4x8x32xf32> to vector<1x8x32xf32>
    %83 = vector.shape_cast %82 : vector<1x8x32xf32> to vector<8x32xf32>
    %c0_34 = arith.constant 0 : index
    %c32 = arith.constant 32 : index
    %84 = vector.load %arg20[%c0_34, %c32] : memref<8x128xf32, #tpu.memory_space<vmem>>, vector<8x32xf32>
    tpu.vector_store %arg20[%c0_34, %c32], %83 {strides = array<i32>} : memref<8x128xf32, #tpu.memory_space<vmem>>, vector<8x32xf32>,
    %85 = vector.extract_strided_slice %78 {offsets = [2, 0, 0], sizes = [1, 8, 32], strides = [1, 1, 1]} : vector<4x8x32xf32> to vector<1x8x32xf32>
    %86 = vector.shape_cast %85 : vector<1x8x32xf32> to vector<8x32xf32>
    %c0_35 = arith.constant 0 : index
    %c64 = arith.constant 64 : index
    %87 = vector.load %arg20[%c0_35, %c64] : memref<8x128xf32, #tpu.memory_space<vmem>>, vector<8x32xf32>
    tpu.vector_store %arg20[%c0_35, %c64], %86 {strides = array<i32>} : memref<8x128xf32, #tpu.memory_space<vmem>>, vector<8x32xf32>,
    %88 = vector.extract_strided_slice %78 {offsets = [3, 0, 0], sizes = [1, 8, 32], strides = [1, 1, 1]} : vector<4x8x32xf32> to vector<1x8x32xf32>
    %89 = vector.shape_cast %88 : vector<1x8x32xf32> to vector<8x32xf32>
    %c0_36 = arith.constant 0 : index
    %c96 = arith.constant 96 : index
    %90 = vector.load %arg20[%c0_36, %c96] : memref<8x128xf32, #tpu.memory_space<vmem>>, vector<8x32xf32>
    tpu.vector_store %arg20[%c0_36, %c96], %89 {strides = array<i32>} : memref<8x128xf32, #tpu.memory_space<vmem>>, vector<8x32xf32>,
    %c0_37 = arith.constant 0 : index
    %c0_38 = arith.constant 0 : index
    %91 = vector.load %arg20[%c0_37, %c0_38] : memref<8x128xf32, #tpu.memory_space<vmem>>, vector<8x128xf32>
    %92 = arith.truncf %91 : vector<8x128xf32> to vector<8x128xbf16>
    %c0_39 = arith.constant 0 : index
    %c0_40 = arith.constant 0 : index
    %93 = vector.load %arg11[%c0_39, %c0_40] : memref<128x128xbf16, #tpu.memory_space<vmem>>, vector<128x128xbf16>
    %cst_41 = arith.constant dense<0.000000e+00> : vector<8x128xf32>
    %94 = tpu.matmul %92, %93, %cst_41 {dimension_numbers = #tpu.dot_dimension_numbers<[1], [0], [0], [1], [0, 0, 1, 1], [], []>} : vector<8x128xbf16>, vector<128x128xbf16>, vector<8x128xf32> -> vector<8x128xf32>
    %c0_42 = arith.constant 0 : index
    %c0_43 = arith.constant 0 : index
    %95 = vector.load %arg12[%c0_42, %c0_43] : memref<1x128xf32, #tpu.memory_space<vmem>>, vector<1x128xf32>
    %96 = vector.broadcast %95 : vector<1x128xf32> to vector<8x128xf32>
    %97 = arith.addf %94, %96 : vector<8x128xf32>
    %98 = arith.addf %27, %97 : vector<8x128xf32>
    %c0_44 = arith.constant 0 : index
    %c0_45 = arith.constant 0 : index
    %99 = vector.load %arg13[%c0_44, %c0_45] : memref<1x128xf32, #tpu.memory_space<vmem>>, vector<1x128xf32>
    %c0_46 = arith.constant 0 : index
    %c0_47 = arith.constant 0 : index
    %100 = vector.load %arg14[%c0_46, %c0_47] : memref<1x128xf32, #tpu.memory_space<vmem>>, vector<1x128xf32>
    %cst_48 = arith.constant dense<0.000000e+00> : vector<8xf32>
    %101 = vector.multi_reduction <add>, %98, %cst_48 [1] : vector<8x128xf32> to vector<8xf32>
    %102 = vector.shape_cast %101 : vector<8xf32> to vector<8x1xf32>
    %cst_49 = arith.constant 1.280000e+02 : f32
    %103 = vector.broadcast %cst_49 : f32 to vector<8x1xf32>
    %104 = arith.divf %102, %103 : vector<8x1xf32>
    %105 = vector.broadcast %104 : vector<8x1xf32> to vector<8x128xf32>
    %106 = arith.subf %98, %105 : vector<8x128xf32>
    %107 = arith.mulf %106, %106 : vector<8x128xf32>
    %cst_50 = arith.constant dense<0.000000e+00> : vector<8xf32>
    %108 = vector.multi_reduction <add>, %107, %cst_50 [1] : vector<8x128xf32> to vector<8xf32>
    %109 = vector.shape_cast %108 : vector<8xf32> to vector<8x1xf32>
    %cst_51 = arith.constant 1.280000e+02 : f32
    %110 = vector.broadcast %cst_51 : f32 to vector<8x1xf32>
    %111 = arith.divf %109, %110 : vector<8x1xf32>
    %112 = vector.broadcast %104 : vector<8x1xf32> to vector<8x128xf32>
    %113 = arith.subf %98, %112 : vector<8x128xf32>
    %cst_52 = arith.constant 9.99999974E-6 : f32
    %114 = vector.broadcast %cst_52 : f32 to vector<8x1xf32>
    %115 = arith.addf %111, %114 : vector<8x1xf32>
    %116 = math.rsqrt %115 : vector<8x1xf32>
    %117 = vector.broadcast %116 : vector<8x1xf32> to vector<8x128xf32>
    %118 = arith.mulf %113, %117 : vector<8x128xf32>
    %119 = vector.broadcast %99 : vector<1x128xf32> to vector<8x128xf32>
    %120 = arith.mulf %118, %119 : vector<8x128xf32>
    %121 = vector.broadcast %100 : vector<1x128xf32> to vector<8x128xf32>
    %122 = arith.addf %120, %121 : vector<8x128xf32>
    %123 = arith.truncf %122 : vector<8x128xf32> to vector<8x128xbf16>
    %c0_53 = arith.constant 0 : index
    %c0_54 = arith.constant 0 : index
    %124 = vector.load %arg15[%c0_53, %c0_54] : memref<128x256xbf16, #tpu.memory_space<vmem>>, vector<128x256xbf16>
    %cst_55 = arith.constant dense<0.000000e+00> : vector<8x256xf32>
    %125 = tpu.matmul %123, %124, %cst_55 {dimension_numbers = #tpu.dot_dimension_numbers<[1], [0], [0], [1], [0, 0, 1, 1], [], []>} : vector<8x128xbf16>, vector<128x256xbf16>, vector<8x256xf32> -> vector<8x256xf32>
    %c0_56 = arith.constant 0 : index
    %c0_57 = arith.constant 0 : index
    %126 = vector.load %arg16[%c0_56, %c0_57] : memref<1x256xf32, #tpu.memory_space<vmem>>, vector<1x256xf32>
    %127 = vector.broadcast %126 : vector<1x256xf32> to vector<8x256xf32>
    %128 = arith.addf %125, %127 : vector<8x256xf32>
    %129 = vector.extract_strided_slice %128 {offsets = [0, 0], sizes = [8, 128], strides = [1, 1]} : vector<8x256xf32> to vector<8x128xf32>
    %130 = vector.extract_strided_slice %128 {offsets = [0, 128], sizes = [8, 128], strides = [1, 1]} : vector<8x256xf32> to vector<8x128xf32>
    %131 = arith.negf %130 : vector<8x128xf32>
    %132 = math.exp %131 : vector<8x128xf32>
    %cst_58 = arith.constant 1.000000e+00 : f32
    %133 = vector.broadcast %cst_58 : f32 to vector<8x128xf32>
    %134 = arith.addf %133, %132 : vector<8x128xf32>
    %135 = arith.divf %133, %134 : vector<8x128xf32>
    %136 = arith.mulf %129, %135 : vector<8x128xf32>
    %137 = arith.truncf %136 : vector<8x128xf32> to vector<8x128xbf16>
    %c0_59 = arith.constant 0 : index
    %c0_60 = arith.constant 0 : index
    %138 = vector.load %arg17[%c0_59, %c0_60] : memref<128x128xbf16, #tpu.memory_space<vmem>>, vector<128x128xbf16>
    %cst_61 = arith.constant dense<0.000000e+00> : vector<8x128xf32>
    %139 = tpu.matmul %137, %138, %cst_61 {dimension_numbers = #tpu.dot_dimension_numbers<[1], [0], [0], [1], [0, 0, 1, 1], [], []>} : vector<8x128xbf16>, vector<128x128xbf16>, vector<8x128xf32> -> vector<8x128xf32>
    %c0_62 = arith.constant 0 : index
    %c0_63 = arith.constant 0 : index
    %140 = vector.load %arg18[%c0_62, %c0_63] : memref<1x128xf32, #tpu.memory_space<vmem>>, vector<1x128xf32>
    %141 = vector.broadcast %140 : vector<1x128xf32> to vector<8x128xf32>
    %142 = arith.addf %139, %141 : vector<8x128xf32>
    %143 = arith.addf %122, %142 : vector<8x128xf32>
    %144 = vector.shape_cast %143 : vector<8x128xf32> to vector<1x8x128xf32>
    %c0_64 = arith.constant 0 : index
    %c0_65 = arith.constant 0 : index
    %c0_66 = arith.constant 0 : index
    %145 = vector.load %arg19[%c0_64, %c0_65, %c0_66] : memref<1x8x128xf32, #tpu.memory_space<vmem>>, vector<1x8x128xf32>
    tpu.vector_store %arg19[%c0_64, %c0_65, %c0_66], %144 {strides = array<i32>} : memref<1x8x128xf32, #tpu.memory_space<vmem>>, vector<1x8x128xf32>,
    return
  }
  func.func @transform_0(%arg0: i32) -> (i32, i32, i32) {
    %c0_i32 = arith.constant 0 : i32
    %c0_i32_0 = arith.constant 0 : i32
    %c0_i32_1 = arith.constant 0 : i32
    return %arg0, %c0_i32, %c0_i32_0 : i32, i32, i32
  }
  func.func @transform_1(%arg0: i32) -> (i32, i32, i32) {
    %c0_i32 = arith.constant 0 : i32
    %c0_i32_0 = arith.constant 0 : i32
    %c0_i32_1 = arith.constant 0 : i32
    return %arg0, %c0_i32, %c0_i32_0 : i32, i32, i32
  }
  func.func @transform_2(%arg0: i32) -> (i32, i32) {
    %c0_i32 = arith.constant 0 : i32
    %c0_i32_0 = arith.constant 0 : i32
    %c0_i32_1 = arith.constant 0 : i32
    return %c0_i32, %c0_i32_0 : i32, i32
  }
  func.func @transform_3(%arg0: i32) -> (i32, i32) {
    %c0_i32 = arith.constant 0 : i32
    %c0_i32_0 = arith.constant 0 : i32
    %c0_i32_1 = arith.constant 0 : i32
    return %c0_i32, %c0_i32_0 : i32, i32
  }
  func.func @transform_4(%arg0: i32) -> (i32, i32) {
    %c0_i32 = arith.constant 0 : i32
    %c0_i32_0 = arith.constant 0 : i32
    %c0_i32_1 = arith.constant 0 : i32
    return %c0_i32, %c0_i32_0 : i32, i32
  }
  func.func @transform_5(%arg0: i32) -> (i32, i32) {
    %c0_i32 = arith.constant 0 : i32
    %c0_i32_0 = arith.constant 0 : i32
    %c0_i32_1 = arith.constant 0 : i32
    return %c0_i32, %c0_i32_0 : i32, i32
  }
  func.func @transform_6(%arg0: i32) -> (i32, i32) {
    %c0_i32 = arith.constant 0 : i32
    %c0_i32_0 = arith.constant 0 : i32
    %c0_i32_1 = arith.constant 0 : i32
    return %c0_i32, %c0_i32_0 : i32, i32
  }
  func.func @transform_7(%arg0: i32) -> (i32, i32) {
    %c0_i32 = arith.constant 0 : i32
    %c0_i32_0 = arith.constant 0 : i32
    %c0_i32_1 = arith.constant 0 : i32
    return %c0_i32, %c0_i32_0 : i32, i32
  }
  func.func @transform_8(%arg0: i32) -> (i32, i32) {
    %c0_i32 = arith.constant 0 : i32
    %c0_i32_0 = arith.constant 0 : i32
    %c0_i32_1 = arith.constant 0 : i32
    return %c0_i32, %c0_i32_0 : i32, i32
  }
  func.func @transform_9(%arg0: i32) -> (i32, i32) {
    %c0_i32 = arith.constant 0 : i32
    %c0_i32_0 = arith.constant 0 : i32
    %c0_i32_1 = arith.constant 0 : i32
    return %c0_i32, %c0_i32_0 : i32, i32
  }
  func.func @transform_10(%arg0: i32) -> (i32, i32) {
    %c0_i32 = arith.constant 0 : i32
    %c0_i32_0 = arith.constant 0 : i32
    %c0_i32_1 = arith.constant 0 : i32
    return %c0_i32, %c0_i32_0 : i32, i32
  }
  func.func @transform_11(%arg0: i32) -> (i32, i32) {
    %c0_i32 = arith.constant 0 : i32
    %c0_i32_0 = arith.constant 0 : i32
    %c0_i32_1 = arith.constant 0 : i32
    return %c0_i32, %c0_i32_0 : i32, i32
  }
  func.func @transform_12(%arg0: i32) -> (i32, i32) {
    %c0_i32 = arith.constant 0 : i32
    %c0_i32_0 = arith.constant 0 : i32
    %c0_i32_1 = arith.constant 0 : i32
    return %c0_i32, %c0_i32_0 : i32, i32
  }
  func.func @transform_13(%arg0: i32) -> (i32, i32) {
    %c0_i32 = arith.constant 0 : i32
    %c0_i32_0 = arith.constant 0 : i32
    %c0_i32_1 = arith.constant 0 : i32
    return %c0_i32, %c0_i32_0 : i32, i32
  }
  func.func @transform_14(%arg0: i32) -> (i32, i32) {
    %c0_i32 = arith.constant 0 : i32
    %c0_i32_0 = arith.constant 0 : i32
    %c0_i32_1 = arith.constant 0 : i32
    return %c0_i32, %c0_i32_0 : i32, i32
  }
  func.func @transform_15(%arg0: i32) -> (i32, i32) {
    %c0_i32 = arith.constant 0 : i32
    %c0_i32_0 = arith.constant 0 : i32
    %c0_i32_1 = arith.constant 0 : i32
    return %c0_i32, %c0_i32_0 : i32, i32
  }
  func.func @transform_16(%arg0: i32) -> (i32, i32) {
    %c0_i32 = arith.constant 0 : i32
    %c0_i32_0 = arith.constant 0 : i32
    %c0_i32_1 = arith.constant 0 : i32
    return %c0_i32, %c0_i32_0 : i32, i32
  }
  func.func @transform_17(%arg0: i32) -> (i32, i32) {
    %c0_i32 = arith.constant 0 : i32
    %c0_i32_0 = arith.constant 0 : i32
    %c0_i32_1 = arith.constant 0 : i32
    return %c0_i32, %c0_i32_0 : i32, i32
  }
  func.func @transform_18(%arg0: i32) -> (i32, i32, i32) {
    %c0_i32 = arith.constant 0 : i32
    %c0_i32_0 = arith.constant 0 : i32
    %c0_i32_1 = arith.constant 0 : i32
    return %arg0, %c0_i32, %c0_i32_0 : i32, i32, i32
  }
}

</mosaic_0001>

<llo_original>
// kernel: tpu_custom_call.1
$region0: #{tpu_custom_call.1}
  #allocation0 [shape = 'u32[]', space=smem, size = 0x4, offset = 0x4, fixed_abs, tag = 'smem constant byte address 0x4 - core index']
  #allocation1 [shape = 'u32[144,128]{1,0:T(1,128)}', space=vmem, size = 0x12000, scoped, tag = 'internal scratch']
  #allocation2 [shape = 'f32[8,128]{1,0:T(8,128)}', space=vmem, size = 0x1000, scoped, tag = 'scratch operand']
  %s0 = inlined_call_operand.hbm [shape: f32[2,8,128], index: 0, kind: input, shape index: {}]
  %s1 = inlined_call_operand.hbm [shape: f32[2,16,128], index: 1, kind: input, shape index: {}]
  %s2 = inlined_call_operand.vmem [shape: f32[1,128], index: 2, kind: input, shape index: {}]
  %s3 = inlined_call_operand.vmem [shape: f32[1,128], index: 3, kind: input, shape index: {}]
  %s4 = inlined_call_operand.hbm [shape: bf16[128,128], index: 4, kind: input, shape index: {}]
  %s5 = inlined_call_operand.vmem [shape: f32[1,128], index: 5, kind: input, shape index: {}]
  %s6 = inlined_call_operand.hbm [shape: bf16[128,128], index: 6, kind: input, shape index: {}]
  %s7 = inlined_call_operand.vmem [shape: f32[1,128], index: 7, kind: input, shape index: {}]
  %s8 = inlined_call_operand.hbm [shape: bf16[128,128], index: 8, kind: input, shape index: {}]
  %s9 = inlined_call_operand.vmem [shape: f32[1,128], index: 9, kind: input, shape index: {}]
  %s10 = inlined_call_operand.hbm [shape: bf16[128,128], index: 10, kind: input, shape index: {}]
  %s11 = inlined_call_operand.vmem [shape: f32[1,128], index: 11, kind: input, shape index: {}]
  %s12 = inlined_call_operand.vmem [shape: f32[1,128], index: 12, kind: input, shape index: {}]
  %s13 = inlined_call_operand.vmem [shape: f32[1,128], index: 13, kind: input, shape index: {}]
  %s14 = inlined_call_operand.hbm [shape: bf16[128,256], index: 14, kind: input, shape index: {}]
  %s15 = inlined_call_operand.vmem [shape: f32[1,256], index: 15, kind: input, shape index: {}]
  %s16 = inlined_call_operand.hbm [shape: bf16[128,128], index: 16, kind: input, shape index: {}]
  %s17 = inlined_call_operand.vmem [shape: f32[1,128], index: 17, kind: input, shape index: {}]
  %s18 = inlined_call_operand.hbm [shape: f32[2,8,128], index: 18, kind: output, shape index: {}]
  %s19 = sld [smem:[#allocation0]]
  $region137: #{tpu_custom_call.1} parent=0
    _
  %s21 = ssub.s32 1, %s19
  %s22 = scalar_select 0, %s21, %s19
  $region1: #{tpu_custom_call.1} parent=0
    #allocation3 [shape = 'u8[8192]{0}', space=vmem, size = 0x2000, scoped, tag = 'input window, operand 0']
    #allocation4 [shape = 's32[2]{0}', space=sflag, size = 0x8, scoped, tag = 'scoped memory for tpu_custom_call.1']
    #allocation5 [shape = 's32[2]{0}', space=sflag, size = 0x8, scoped, tag = 'scoped memory for tpu_custom_call.1']
    #allocation6 [shape = 'u8[16384]{0}', space=vmem, size = 0x4000, scoped, tag = 'input window, operand 1']
    #allocation7 [shape = 's32[2]{0}', space=sflag, size = 0x8, scoped, tag = 'scoped memory for tpu_custom_call.1']
    #allocation8 [shape = 'u8[32768]{0}', space=vmem, size = 0x8000, scoped, tag = 'input window, operand 4, single buffered']
    #allocation9 [shape = 'u8[32768]{0}', space=vmem, size = 0x8000, scoped, tag = 'input window, operand 6, single buffered']
    #allocation10 [shape = 's32[1]{0}', space=sflag, size = 0x4, scoped, tag = 'scoped memory for tpu_custom_call.1']
    #allocation11 [shape = 'u8[32768]{0}', space=vmem, size = 0x8000, scoped, tag = 'input window, operand 8, single buffered']
    #allocation12 [shape = 'u8[32768]{0}', space=vmem, size = 0x8000, scoped, tag = 'input window, operand 10, single buffered']
    #allocation13 [shape = 's32[1]{0}', space=sflag, size = 0x4, scoped, tag = 'scoped memory for tpu_custom_call.1']
    #allocation14 [shape = 'u8[65536]{0}', space=vmem, size = 0x10000, scoped, tag = 'input window, operand 14, single buffered']
    #allocation15 [shape = 'u8[32768]{0}', space=vmem, size = 0x8000, scoped, tag = 'input window, operand 16, single buffered']
    #allocation16 [shape = 's32[1]{0}', space=sflag, size = 0x4, scoped, tag = 'scoped memory for tpu_custom_call.1']
    #allocation17 [shape = 'u8[8192]{0}', space=vmem, size = 0x2000, scoped, tag = 'output window, operand 0']
    %23 = vsyncpa [#allocation4], 0
    %s24 = scalar_lea.sflag [#allocation4], 1
    %25 = vsyncpa %s24, 0
    %26 = vsyncpa [#allocation7], 0
    %s27 = scalar_lea.sflag [#allocation7], 1
    %28 = vsyncpa %s27, 0
    %29 = vsyncpa [#allocation10], 0
    %30 = vsyncpa [#allocation13], 0
    %31 = vsyncpa [#allocation16], 0
    %32 = vsyncpa [#allocation5], 0
    %s33 = scalar_lea.sflag [#allocation5], 1
    %34 = vsyncpa %s33, 0
    loop: start=0, step=1, limit=4
    $region2: #{tpu_custom_call.1} parent=1 // loop_pre_header
      _
    $region3: #{tpu_custom_call.1} parent=1 // loop_header
      %s36 = sphi 0, %s40
      %p37 = scmp.ge.s32.totalorder %s36, 4
      %s46 = sphi 0, %s48
      %s49 = sphi 0, %s46
      %s50 = sphi 0, %s49
      %s66 = sphi 0, %s50
      %s72 = sphi 0, %s74
      %s75 = sphi 0, %s72
      %s76 = sphi 0, %s75
      %s92 = sphi 0, %s76
      %s96 = sphi 0, %s96
      %s98 = sphi 0, %s96
      %s99 = sphi 0, %s98
      %s113 = sphi 0, %s99
      %s117 = sphi 0, %s117
      %s119 = sphi 0, %s117
      %s120 = sphi 0, %s119
      %s134 = sphi 0, %s120
      %s138 = sphi 0, %s138
      %s140 = sphi 0, %s138
      %s141 = sphi 0, %s140
      %s155 = sphi 0, %s141
      %s159 = sphi 0, %s159
      %s161 = sphi 0, %s159
      %s162 = sphi 0, %s161
      %s176 = sphi 0, %s162
      %s180 = sphi 0, %s180
      %s182 = sphi 0, %s180
      %s183 = sphi 0, %s182
      %s197 = sphi 0, %s183
      %s201 = sphi 0, %s201
      %s203 = sphi 0, %s201
      %s204 = sphi 0, %s203
      %s218 = sphi 0, %s204
      %s222 = sphi 0, %s222
      %s224 = sphi 0, %s222
      %s225 = sphi 0, %s224
      %s239 = sphi 0, %s225
      %s243 = sphi 0, %s243
      %s245 = sphi 0, %s243
      %s246 = sphi 0, %s245
      %s260 = sphi 0, %s246
      %s264 = sphi 0, %s264
      %s266 = sphi 0, %s264
      %s267 = sphi 0, %s266
      %s281 = sphi 0, %s267
      %s285 = sphi 0, %s285
      %s287 = sphi 0, %s285
      %s288 = sphi 0, %s287
      %s302 = sphi 0, %s288
      %s306 = sphi 0, %s306
      %s308 = sphi 0, %s306
      %s309 = sphi 0, %s308
      %s323 = sphi 0, %s309
      %s327 = sphi 0, %s327
      %s329 = sphi 0, %s327
      %s330 = sphi 0, %s329
      %s344 = sphi 0, %s330
      %s348 = sphi 0, %s348
      %s350 = sphi 0, %s348
      %s351 = sphi 0, %s350
      %s365 = sphi 0, %s351
      %s369 = sphi 0, %s369
      %s371 = sphi 0, %s369
      %s372 = sphi 0, %s371
      %s386 = sphi 0, %s372
      %s390 = sphi 0, %s390
      %s392 = sphi 0, %s390
      %s393 = sphi 0, %s392
      %s407 = sphi 0, %s393
      %s411 = sphi 0, %s411
      %s413 = sphi 0, %s411
      %s414 = sphi 0, %s413
      %s428 = sphi 0, %s414
      %s434 = sphi 0, %s436
      %s437 = sphi 0, %s434
      %s438 = sphi 0, %s437
      %s454 = sphi 0, %s438
    $region4: #{tpu_custom_call.1} parent=1 // loop_header_branch
      %39 = sbr.rel (%p37) target = $region8
    $region5: #{tpu_custom_call.1} parent=1 // loop_body
      %s41 = ssub.s32 %s36, 1
      %s42 = ssub.s32 %s36, 2
      %s43 = sadd.s32 %s36, 1
      %s44 = ssub.s32 %s36, %s43
      %p45 = scmp.eq.s32.totalorder %s44, 0
      %s47 = sadd.s32 %s46, 1
      %s48 = scalar_select %p45, %s46, %s47
      %p51 = pneg %p45
      %p52 = scmp.eq.s32.totalorder %s36, 1
      %p53 = por %p51, %p52
      %p54 = scmp.ne.s32.totalorder %s46, %s49
      %p55 = scmp.eq.s32.totalorder %s36, 0
      %p56 = por %p54, %p55
      %p57 = scmp.ne.s32.totalorder %s46, %s49
      %p58 = scmp.eq.s32.totalorder %s41, 1
      %p59 = por %p57, %p58
      %p60 = scmp.ne.s32.totalorder %s49, %s50
      %p61 = scmp.eq.s32.totalorder %s41, 0
      %p62 = por %p60, %p61
      %p63 = scmp.ne.s32.totalorder %s49, %s50
      %p64 = scmp.eq.s32.totalorder %s42, 1
      %p65 = por %p63, %p64
      %p67 = scmp.ne.s32.totalorder %s50, %s66
      %p68 = scmp.eq.s32.totalorder %s42, 0
      %p69 = por %p67, %p68
      %s70 = ssub.s32 %s36, %s43
      %p71 = scmp.eq.s32.totalorder %s70, 0
      %s73 = sadd.s32 %s72, 1
      %s74 = scalar_select %p71, %s72, %s73
      %p77 = pneg %p71
      %p78 = scmp.eq.s32.totalorder %s36, 1
      %p79 = por %p77, %p78
      %p80 = scmp.ne.s32.totalorder %s72, %s75
      %p81 = scmp.eq.s32.totalorder %s36, 0
      %p82 = por %p80, %p81
      %p83 = scmp.ne.s32.totalorder %s72, %s75
      %p84 = scmp.eq.s32.totalorder %s41, 1
      %p85 = por %p83, %p84
      %p86 = scmp.ne.s32.totalorder %s75, %s76
      %p87 = scmp.eq.s32.totalorder %s41, 0
      %p88 = por %p86, %p87
      %p89 = scmp.ne.s32.totalorder %s75, %s76
      %p90 = scmp.eq.s32.totalorder %s42, 1
      %p91 = por %p89, %p90
      %p93 = scmp.ne.s32.totalorder %s76, %s92
      %p94 = scmp.eq.s32.totalorder %s42, 0
      %p95 = por %p93, %p94
      %s97 = sadd.s32 %s96, 1
      %p100 = scmp.eq.s32.totalorder %s36, 1
      %p101 = scmp.ne.s32.totalorder %s96, %s98
      %p102 = scmp.eq.s32.totalorder %s36, 0
      %p103 = por %p101, %p102
      %p104 = scmp.ne.s32.totalorder %s96, %s98
      %p105 = scmp.eq.s32.totalorder %s41, 1
      %p106 = por %p104, %p105
      %p107 = scmp.ne.s32.totalorder %s98, %s99
      %p108 = scmp.eq.s32.totalorder %s41, 0
      %p109 = por %p107, %p108
      %p110 = scmp.ne.s32.totalorder %s98, %s99
      %p111 = scmp.eq.s32.totalorder %s42, 1
      %p112 = por %p110, %p111
      %p114 = scmp.ne.s32.totalorder %s99, %s113
      %p115 = scmp.eq.s32.totalorder %s42, 0
      %p116 = por %p114, %p115
      %s118 = sadd.s32 %s117, 1
      %p121 = scmp.eq.s32.totalorder %s36, 1
      %p122 = scmp.ne.s32.totalorder %s117, %s119
      %p123 = scmp.eq.s32.totalorder %s36, 0
      %p124 = por %p122, %p123
      %p125 = scmp.ne.s32.totalorder %s117, %s119
      %p126 = scmp.eq.s32.totalorder %s41, 1
      %p127 = por %p125, %p126
      %p128 = scmp.ne.s32.totalorder %s119, %s120
      %p129 = scmp.eq.s32.totalorder %s41, 0
      %p130 = por %p128, %p129
      %p131 = scmp.ne.s32.totalorder %s119, %s120
      %p132 = scmp.eq.s32.totalorder %s42, 1
      %p133 = por %p131, %p132
      %p135 = scmp.ne.s32.totalorder %s120, %s134
      %p136 = scmp.eq.s32.totalorder %s42, 0
      %p137 = por %p135, %p136
      %s139 = sadd.s32 %s138, 1
      %p142 = scmp.eq.s32.totalorder %s36, 1
      %p143 = scmp.ne.s32.totalorder %s138, %s140
      %p144 = scmp.eq.s32.totalorder %s36, 0
      %p145 = por %p143, %p144
      %p146 = scmp.ne.s32.totalorder %s138, %s140
      %p147 = scmp.eq.s32.totalorder %s41, 1
      %p148 = por %p146, %p147
      %p149 = scmp.ne.s32.totalorder %s140, %s141
      %p150 = scmp.eq.s32.totalorder %s41, 0
      %p151 = por %p149, %p150
      %p152 = scmp.ne.s32.totalorder %s140, %s141
      %p153 = scmp.eq.s32.totalorder %s42, 1
      %p154 = por %p152, %p153
      %p156 = scmp.ne.s32.totalorder %s141, %s155
      %p157 = scmp.eq.s32.totalorder %s42, 0
      %p158 = por %p156, %p157
      %s160 = sadd.s32 %s159, 1
      %p163 = scmp.eq.s32.totalorder %s36, 1
      %p164 = scmp.ne.s32.totalorder %s159, %s161
      %p165 = scmp.eq.s32.totalorder %s36, 0
      %p166 = por %p164, %p165
      %p167 = scmp.ne.s32.totalorder %s159, %s161
      %p168 = scmp.eq.s32.totalorder %s41, 1
      %p169 = por %p167, %p168
      %p170 = scmp.ne.s32.totalorder %s161, %s162
      %p171 = scmp.eq.s32.totalorder %s41, 0
      %p172 = por %p170, %p171
      %p173 = scmp.ne.s32.totalorder %s161, %s162
      %p174 = scmp.eq.s32.totalorder %s42, 1
      %p175 = por %p173, %p174
      %p177 = scmp.ne.s32.totalorder %s162, %s176
      %p178 = scmp.eq.s32.totalorder %s42, 0
      %p179 = por %p177, %p178
      %s181 = sadd.s32 %s180, 1
      %p184 = scmp.eq.s32.totalorder %s36, 1
      %p185 = scmp.ne.s32.totalorder %s180, %s182
      %p186 = scmp.eq.s32.totalorder %s36, 0
      %p187 = por %p185, %p186
      %p188 = scmp.ne.s32.totalorder %s180, %s182
      %p189 = scmp.eq.s32.totalorder %s41, 1
      %p190 = por %p188, %p189
      %p191 = scmp.ne.s32.totalorder %s182, %s183
      %p192 = scmp.eq.s32.totalorder %s41, 0
      %p193 = por %p191, %p192
      %p194 = scmp.ne.s32.totalorder %s182, %s183
      %p195 = scmp.eq.s32.totalorder %s42, 1
      %p196 = por %p194, %p195
      %p198 = scmp.ne.s32.totalorder %s183, %s197
      %p199 = scmp.eq.s32.totalorder %s42, 0
      %p200 = por %p198, %p199
      %s202 = sadd.s32 %s201, 1
      %p205 = scmp.eq.s32.totalorder %s36, 1
      %p206 = scmp.ne.s32.totalorder %s201, %s203
      %p207 = scmp.eq.s32.totalorder %s36, 0
      %p208 = por %p206, %p207
      %p209 = scmp.ne.s32.totalorder %s201, %s203
      %p210 = scmp.eq.s32.totalorder %s41, 1
      %p211 = por %p209, %p210
      %p212 = scmp.ne.s32.totalorder %s203, %s204
      %p213 = scmp.eq.s32.totalorder %s41, 0
      %p214 = por %p212, %p213
      %p215 = scmp.ne.s32.totalorder %s203, %s204
      %p216 = scmp.eq.s32.totalorder %s42, 1
      %p217 = por %p215, %p216
      %p219 = scmp.ne.s32.totalorder %s204, %s218
      %p220 = scmp.eq.s32.totalorder %s42, 0
      %p221 = por %p219, %p220
      %s223 = sadd.s32 %s222, 1
      %p226 = scmp.eq.s32.totalorder %s36, 1
      %p227 = scmp.ne.s32.totalorder %s222, %s224
      %p228 = scmp.eq.s32.totalorder %s36, 0
      %p229 = por %p227, %p228
      %p230 = scmp.ne.s32.totalorder %s222, %s224
      %p231 = scmp.eq.s32.totalorder %s41, 1
      %p232 = por %p230, %p231
      %p233 = scmp.ne.s32.totalorder %s224, %s225
      %p234 = scmp.eq.s32.totalorder %s41, 0
      %p235 = por %p233, %p234
      %p236 = scmp.ne.s32.totalorder %s224, %s225
      %p237 = scmp.eq.s32.totalorder %s42, 1
      %p238 = por %p236, %p237
      %p240 = scmp.ne.s32.totalorder %s225, %s239
      %p241 = scmp.eq.s32.totalorder %s42, 0
      %p242 = por %p240, %p241
      %s244 = sadd.s32 %s243, 1
      %p247 = scmp.eq.s32.totalorder %s36, 1
      %p248 = scmp.ne.s32.totalorder %s243, %s245
      %p249 = scmp.eq.s32.totalorder %s36, 0
      %p250 = por %p248, %p249
      %p251 = scmp.ne.s32.totalorder %s243, %s245
      %p252 = scmp.eq.s32.totalorder %s41, 1
      %p253 = por %p251, %p252
      %p254 = scmp.ne.s32.totalorder %s245, %s246
      %p255 = scmp.eq.s32.totalorder %s41, 0
      %p256 = por %p254, %p255
      %p257 = scmp.ne.s32.totalorder %s245, %s246
      %p258 = scmp.eq.s32.totalorder %s42, 1
      %p259 = por %p257, %p258
      %p261 = scmp.ne.s32.totalorder %s246, %s260
      %p262 = scmp.eq.s32.totalorder %s42, 0
      %p263 = por %p261, %p262
      %s265 = sadd.s32 %s264, 1
      %p268 = scmp.eq.s32.totalorder %s36, 1
      %p269 = scmp.ne.s32.totalorder %s264, %s266
      %p270 = scmp.eq.s32.totalorder %s36, 0
      %p271 = por %p269, %p270
      %p272 = scmp.ne.s32.totalorder %s264, %s266
      %p273 = scmp.eq.s32.totalorder %s41, 1
      %p274 = por %p272, %p273
      %p275 = scmp.ne.s32.totalorder %s266, %s267
      %p276 = scmp.eq.s32.totalorder %s41, 0
      %p277 = por %p275, %p276
      %p278 = scmp.ne.s32.totalorder %s266, %s267
      %p279 = scmp.eq.s32.totalorder %s42, 1
      %p280 = por %p278, %p279
      %p282 = scmp.ne.s32.totalorder %s267, %s281
      %p283 = scmp.eq.s32.totalorder %s42, 0
      %p284 = por %p282, %p283
      %s286 = sadd.s32 %s285, 1
      %p289 = scmp.eq.s32.totalorder %s36, 1
      %p290 = scmp.ne.s32.totalorder %s285, %s287
      %p291 = scmp.eq.s32.totalorder %s36, 0
      %p292 = por %p290, %p291
      %p293 = scmp.ne.s32.totalorder %s285, %s287
      %p294 = scmp.eq.s32.totalorder %s41, 1
      %p295 = por %p293, %p294
      %p296 = scmp.ne.s32.totalorder %s287, %s288
      %p297 = scmp.eq.s32.totalorder %s41, 0
      %p298 = por %p296, %p297
      %p299 = scmp.ne.s32.totalorder %s287, %s288
      %p300 = scmp.eq.s32.totalorder %s42, 1
      %p301 = por %p299, %p300
      %p303 = scmp.ne.s32.totalorder %s288, %s302
      %p304 = scmp.eq.s32.totalorder %s42, 0
      %p305 = por %p303, %p304
      %s307 = sadd.s32 %s306, 1
      %p310 = scmp.eq.s32.totalorder %s36, 1
      %p311 = scmp.ne.s32.totalorder %s306, %s308
      %p312 = scmp.eq.s32.totalorder %s36, 0
      %p313 = por %p311, %p312
      %p314 = scmp.ne.s32.totalorder %s306, %s308
      %p315 = scmp.eq.s32.totalorder %s41, 1
      %p316 = por %p314, %p315
      %p317 = scmp.ne.s32.totalorder %s308, %s309
      %p318 = scmp.eq.s32.totalorder %s41, 0
      %p319 = por %p317, %p318
      %p320 = scmp.ne.s32.totalorder %s308, %s309
      %p321 = scmp.eq.s32.totalorder %s42, 1
      %p322 = por %p320, %p321
      %p324 = scmp.ne.s32.totalorder %s309, %s323
      %p325 = scmp.eq.s32.totalorder %s42, 0
      %p326 = por %p324, %p325
      %s328 = sadd.s32 %s327, 1
      %p331 = scmp.eq.s32.totalorder %s36, 1
      %p332 = scmp.ne.s32.totalorder %s327, %s329
      %p333 = scmp.eq.s32.totalorder %s36, 0
      %p334 = por %p332, %p333
      %p335 = scmp.ne.s32.totalorder %s327, %s329
      %p336 = scmp.eq.s32.totalorder %s41, 1
      %p337 = por %p335, %p336
      %p338 = scmp.ne.s32.totalorder %s329, %s330
      %p339 = scmp.eq.s32.totalorder %s41, 0
      %p340 = por %p338, %p339
      %p341 = scmp.ne.s32.totalorder %s329, %s330
      %p342 = scmp.eq.s32.totalorder %s42, 1
      %p343 = por %p341, %p342
      %p345 = scmp.ne.s32.totalorder %s330, %s344
      %p346 = scmp.eq.s32.totalorder %s42, 0
      %p347 = por %p345, %p346
      %s349 = sadd.s32 %s348, 1
      %p352 = scmp.eq.s32.totalorder %s36, 1
      %p353 = scmp.ne.s32.totalorder %s348, %s350
      %p354 = scmp.eq.s32.totalorder %s36, 0
      %p355 = por %p353, %p354
      %p356 = scmp.ne.s32.totalorder %s348, %s350
      %p357 = scmp.eq.s32.totalorder %s41, 1
      %p358 = por %p356, %p357
      %p359 = scmp.ne.s32.totalorder %s350, %s351
      %p360 = scmp.eq.s32.totalorder %s41, 0
      %p361 = por %p359, %p360
      %p362 = scmp.ne.s32.totalorder %s350, %s351
      %p363 = scmp.eq.s32.totalorder %s42, 1
      %p364 = por %p362, %p363
      %p366 = scmp.ne.s32.totalorder %s351, %s365
      %p367 = scmp.eq.s32.totalorder %s42, 0
      %p368 = por %p366, %p367
      %s370 = sadd.s32 %s369, 1
      %p373 = scmp.eq.s32.totalorder %s36, 1
      %p374 = scmp.ne.s32.totalorder %s369, %s371
      %p375 = scmp.eq.s32.totalorder %s36, 0
      %p376 = por %p374, %p375
      %p377 = scmp.ne.s32.totalorder %s369, %s371
      %p378 = scmp.eq.s32.totalorder %s41, 1
      %p379 = por %p377, %p378
      %p380 = scmp.ne.s32.totalorder %s371, %s372
      %p381 = scmp.eq.s32.totalorder %s41, 0
      %p382 = por %p380, %p381
      %p383 = scmp.ne.s32.totalorder %s371, %s372
      %p384 = scmp.eq.s32.totalorder %s42, 1
      %p385 = por %p383, %p384
      %p387 = scmp.ne.s32.totalorder %s372, %s386
      %p388 = scmp.eq.s32.totalorder %s42, 0
      %p389 = por %p387, %p388
      %s391 = sadd.s32 %s390, 1
      %p394 = scmp.eq.s32.totalorder %s36, 1
      %p395 = scmp.ne.s32.totalorder %s390, %s392
      %p396 = scmp.eq.s32.totalorder %s36, 0
      %p397 = por %p395, %p396
      %p398 = scmp.ne.s32.totalorder %s390, %s392
      %p399 = scmp.eq.s32.totalorder %s41, 1
      %p400 = por %p398, %p399
      %p401 = scmp.ne.s32.totalorder %s392, %s393
      %p402 = scmp.eq.s32.totalorder %s41, 0
      %p403 = por %p401, %p402
      %p404 = scmp.ne.s32.totalorder %s392, %s393
      %p405 = scmp.eq.s32.totalorder %s42, 1
      %p406 = por %p404, %p405
      %p408 = scmp.ne.s32.totalorder %s393, %s407
      %p409 = scmp.eq.s32.totalorder %s42, 0
      %p410 = por %p408, %p409
      %s412 = sadd.s32 %s411, 1
      %p415 = scmp.eq.s32.totalorder %s36, 1
      %p416 = scmp.ne.s32.totalorder %s411, %s413
      %p417 = scmp.eq.s32.totalorder %s36, 0
      %p418 = por %p416, %p417
      %p419 = scmp.ne.s32.totalorder %s411, %s413
      %p420 = scmp.eq.s32.totalorder %s41, 1
      %p421 = por %p419, %p420
      %p422 = scmp.ne.s32.totalorder %s413, %s414
      %p423 = scmp.eq.s32.totalorder %s41, 0
      %p424 = por %p422, %p423
      %p425 = scmp.ne.s32.totalorder %s413, %s414
      %p426 = scmp.eq.s32.totalorder %s42, 1
      %p427 = por %p425, %p426
      %p429 = scmp.ne.s32.totalorder %s414, %s428
      %p430 = scmp.eq.s32.totalorder %s42, 0
      %p431 = por %p429, %p430
      %s432 = ssub.s32 %s36, %s43
      %p433 = scmp.eq.s32.totalorder %s432, 0
      %s435 = sadd.s32 %s434, 1
      %s436 = scalar_select %p433, %s434, %s435
      %p439 = pneg %p433
      %p440 = scmp.eq.s32.totalorder %s36, 1
      %p441 = por %p439, %p440
      %p442 = scmp.ne.s32.totalorder %s434, %s437
      %p443 = scmp.eq.s32.totalorder %s36, 0
      %p444 = por %p442, %p443
      %p445 = scmp.ne.s32.totalorder %s434, %s437
      %p446 = scmp.eq.s32.totalorder %s41, 1
      %p447 = por %p445, %p446
      %p448 = scmp.ne.s32.totalorder %s437, %s438
      %p449 = scmp.eq.s32.totalorder %s41, 0
      %p450 = por %p448, %p449
      %p451 = scmp.ne.s32.totalorder %s437, %s438
      %p452 = scmp.eq.s32.totalorder %s42, 1
      %p453 = por %p451, %p452
      %p455 = scmp.ne.s32.totalorder %s438, %s454
      %p456 = scmp.eq.s32.totalorder %s42, 0
      %p457 = por %p455, %p456
      %p458 = scmp.le.s32.totalorder 1, %s36
      %p459 = scmp.lt.s32.totalorder %s36, 3
      %p460 = pnand %p458, %p459
      %p461 = pneg %p460
      // Predicated region
      $region9: #{tpu_custom_call.1} parent=5 // pred_check
        _
      $region10: #{tpu_custom_call.1} parent=5 // pred_check_branch
        %463 = sbr.rel (%p460) target = $region12
      $region11: #{tpu_custom_call.1} parent=5 // pred_region
        %s464 = ssub.s32 %s36, 1
        // Predicated region
        $region13: #{tpu_custom_call.1} parent=11 // pred_check
          %p465 = pneg %p109
        $region14: #{tpu_custom_call.1} parent=11 // pred_check_branch
          %467 = sbr.rel (%p465) target = $region16
        $region15: #{tpu_custom_call.1} parent=11 // pred_region
          _
        $region16: #{tpu_custom_call.1} parent=11 // pred_fallthru
          _
        // Predicated region
        $region17: #{tpu_custom_call.1} parent=11 // pred_check
          %p468 = pneg %p130
        $region18: #{tpu_custom_call.1} parent=11 // pred_check_branch
          %470 = sbr.rel (%p468) target = $region20
        $region19: #{tpu_custom_call.1} parent=11 // pred_region
          _
        $region20: #{tpu_custom_call.1} parent=11 // pred_fallthru
          _
        // Predicated region
        $region21: #{tpu_custom_call.1} parent=11 // pred_check
          %p471 = pneg %p151
        $region22: #{tpu_custom_call.1} parent=11 // pred_check_branch
          %473 = sbr.rel (%p471) target = $region24
        $region23: #{tpu_custom_call.1} parent=11 // pred_region
          %s475 = ssub.s32 1024, 1024
          %476 = vsyncadd [#allocation7], %s475
          %s477 = sshll.u32 [#allocation8], 4
          %s478 = int_to_ptr.vmem [resolvable:$true] %s477
          %483 = dma.hbm_to_vmem [thread:$0]  %s4, 1024, %s478, [#allocation7], 64, 64, 4
        $region24: #{tpu_custom_call.1} parent=11 // pred_fallthru
          _
        // Predicated region
        $region25: #{tpu_custom_call.1} parent=11 // pred_check
          %p484 = pneg %p172
        $region26: #{tpu_custom_call.1} parent=11 // pred_check_branch
          %486 = sbr.rel (%p484) target = $region28
        $region27: #{tpu_custom_call.1} parent=11 // pred_region
          _
        $region28: #{tpu_custom_call.1} parent=11 // pred_fallthru
          _
        // Predicated region
        $region29: #{tpu_custom_call.1} parent=11 // pred_check
          %p487 = pneg %p193
        $region30: #{tpu_custom_call.1} parent=11 // pred_check_branch
          %489 = sbr.rel (%p487) target = $region32
        $region31: #{tpu_custom_call.1} parent=11 // pred_region
          %s491 = ssub.s32 1024, 1024
          %492 = vsyncadd [#allocation10], %s491
          %s493 = sshll.u32 [#allocation9], 4
          %s494 = int_to_ptr.vmem [resolvable:$true] %s493
          %499 = dma.hbm_to_vmem [thread:$0]  %s6, 1024, %s494, [#allocation10], 64, 64, 4
        $region32: #{tpu_custom_call.1} parent=11 // pred_fallthru
          _
        // Predicated region
        $region33: #{tpu_custom_call.1} parent=11 // pred_check
          %p500 = pneg %p214
        $region34: #{tpu_custom_call.1} parent=11 // pred_check_branch
          %502 = sbr.rel (%p500) target = $region36
        $region35: #{tpu_custom_call.1} parent=11 // pred_region
          _
        $region36: #{tpu_custom_call.1} parent=11 // pred_fallthru
          _
        // Predicated region
        $region37: #{tpu_custom_call.1} parent=11 // pred_check
          %p503 = pneg %p235
        $region38: #{tpu_custom_call.1} parent=11 // pred_check_branch
          %505 = sbr.rel (%p503) target = $region40
        $region39: #{tpu_custom_call.1} parent=11 // pred_region
          %s507 = ssub.s32 1024, 1024
          %508 = vsyncadd [#allocation10], %s507
          %s509 = sshll.u32 [#allocation11], 4
          %s510 = int_to_ptr.vmem [resolvable:$true] %s509
          %515 = dma.hbm_to_vmem [thread:$0]  %s8, 1024, %s510, [#allocation10], 64, 64, 4
        $region40: #{tpu_custom_call.1} parent=11 // pred_fallthru
          _
        // Predicated region
        $region41: #{tpu_custom_call.1} parent=11 // pred_check
          %p516 = pneg %p256
        $region42: #{tpu_custom_call.1} parent=11 // pred_check_branch
          %518 = sbr.rel (%p516) target = $region44
        $region43: #{tpu_custom_call.1} parent=11 // pred_region
          _
        $region44: #{tpu_custom_call.1} parent=11 // pred_fallthru
          _
        // Predicated region
        $region45: #{tpu_custom_call.1} parent=11 // pred_check
          %p519 = pneg %p277
        $region46: #{tpu_custom_call.1} parent=11 // pred_check_branch
          %521 = sbr.rel (%p519) target = $region48
        $region47: #{tpu_custom_call.1} parent=11 // pred_region
          %s523 = ssub.s32 1024, 1024
          %524 = vsyncadd [#allocation13], %s523
          %s525 = sshll.u32 [#allocation12], 4
          %s526 = int_to_ptr.vmem [resolvable:$true] %s525
          %531 = dma.hbm_to_vmem [thread:$0]  %s10, 1024, %s526, [#allocation13], 64, 64, 4
        $region48: #{tpu_custom_call.1} parent=11 // pred_fallthru
          _
        // Predicated region
        $region49: #{tpu_custom_call.1} parent=11 // pred_check
          %p532 = pneg %p298
        $region50: #{tpu_custom_call.1} parent=11 // pred_check_branch
          %534 = sbr.rel (%p532) target = $region52
        $region51: #{tpu_custom_call.1} parent=11 // pred_region
          _
        $region52: #{tpu_custom_call.1} parent=11 // pred_fallthru
          _
        // Predicated region
        $region53: #{tpu_custom_call.1} parent=11 // pred_check
          %p535 = pneg %p319
        $region54: #{tpu_custom_call.1} parent=11 // pred_check_branch
          %537 = sbr.rel (%p535) target = $region56
        $region55: #{tpu_custom_call.1} parent=11 // pred_region
          _
        $region56: #{tpu_custom_call.1} parent=11 // pred_fallthru
          _
        // Predicated region
        $region57: #{tpu_custom_call.1} parent=11 // pred_check
          %p538 = pneg %p340
        $region58: #{tpu_custom_call.1} parent=11 // pred_check_branch
          %540 = sbr.rel (%p538) target = $region60
        $region59: #{tpu_custom_call.1} parent=11 // pred_region
          _
        $region60: #{tpu_custom_call.1} parent=11 // pred_fallthru
          _
        // Predicated region
        $region61: #{tpu_custom_call.1} parent=11 // pred_check
          %p541 = pneg %p361
        $region62: #{tpu_custom_call.1} parent=11 // pred_check_branch
          %543 = sbr.rel (%p541) target = $region64
        $region63: #{tpu_custom_call.1} parent=11 // pred_region
          %s545 = ssub.s32 2048, 2048
          %546 = vsyncadd [#allocation13], %s545
          %s547 = sshll.u32 [#allocation14], 4
          %s548 = int_to_ptr.vmem [resolvable:$true] %s547
          %553 = dma.hbm_to_vmem [thread:$0]  %s14, 2048, %s548, [#allocation13], 128, 128, 8
        $region64: #{tpu_custom_call.1} parent=11 // pred_fallthru
          _
        // Predicated region
        $region65: #{tpu_custom_call.1} parent=11 // pred_check
          %p554 = pneg %p382
        $region66: #{tpu_custom_call.1} parent=11 // pred_check_branch
          %556 = sbr.rel (%p554) target = $region68
        $region67: #{tpu_custom_call.1} parent=11 // pred_region
          _
        $region68: #{tpu_custom_call.1} parent=11 // pred_fallthru
          _
        // Predicated region
        $region69: #{tpu_custom_call.1} parent=11 // pred_check
          %p557 = pneg %p403
        $region70: #{tpu_custom_call.1} parent=11 // pred_check_branch
          %559 = sbr.rel (%p557) target = $region72
        $region71: #{tpu_custom_call.1} parent=11 // pred_region
          %s561 = ssub.s32 1024, 1024
          %562 = vsyncadd [#allocation16], %s561
          %s563 = sshll.u32 [#allocation15], 4
          %s564 = int_to_ptr.vmem [resolvable:$true] %s563
          %569 = dma.hbm_to_vmem [thread:$0]  %s16, 1024, %s564, [#allocation16], 64, 64, 4
        $region72: #{tpu_custom_call.1} parent=11 // pred_fallthru
          _
        // Predicated region
        $region73: #{tpu_custom_call.1} parent=11 // pred_check
          %p570 = pneg %p424
        $region74: #{tpu_custom_call.1} parent=11 // pred_check_branch
          %572 = sbr.rel (%p570) target = $region76
        $region75: #{tpu_custom_call.1} parent=11 // pred_region
          _
        $region76: #{tpu_custom_call.1} parent=11 // pred_fallthru
          _
      $region12: #{tpu_custom_call.1} parent=5 // pred_fallthru
        _
      %p573 = scmp.lt.s32.totalorder %s36, 2
      // Predicated region
      $region77: #{tpu_custom_call.1} parent=5 // pred_check
        %p574 = pneg %p573
      $region78: #{tpu_custom_call.1} parent=5 // pred_check_branch
        %576 = sbr.rel (%p574) target = $region80
      $region79: #{tpu_custom_call.1} parent=5 // pred_region
        // Predicated region
        $region81: #{tpu_custom_call.1} parent=79 // pred_check
          %p577 = pneg %p56
        $region82: #{tpu_custom_call.1} parent=79 // pred_check_branch
          %579 = sbr.rel (%p577) target = $region84
        $region83: #{tpu_custom_call.1} parent=79 // pred_region
          %s580 = sand.u32 %s46, 1
          %s581 = scalar_lea.sflag [#allocation4], %s580
          %s582 = sand.u32 %s46, 1
          %s583 = smul.addr %s582, 8
          %s584 = scalar_lea.vmem [#allocation3], %s583
          %s586 = ssub.s32 128, 128
          %587 = vsyncadd %s581, %s586
          %s588 = smul.addr %s36, 128
          %s589 = scalar_lea.hbm %s0, %s588
          %s591 = sshll.u32 %s584, 4
          %s592 = int_to_ptr.vmem [resolvable:$true] %s591
          %594 = dma.hbm_to_vmem [thread:$0]  %s589, 128, %s592, %s581
        $region84: #{tpu_custom_call.1} parent=79 // pred_fallthru
          _
        // Predicated region
        $region85: #{tpu_custom_call.1} parent=79 // pred_check
          %p595 = pneg %p82
        $region86: #{tpu_custom_call.1} parent=79 // pred_check_branch
          %597 = sbr.rel (%p595) target = $region88
        $region87: #{tpu_custom_call.1} parent=79 // pred_region
          %s598 = sand.u32 %s36, 1
          %s599 = scalar_lea.sflag [#allocation7], %s598
          %s600 = sand.u32 %s72, 1
          %s601 = smul.addr %s600, 16
          %s602 = scalar_lea.vmem [#allocation6], %s601
          %s604 = ssub.s32 256, 256
          %605 = vsyncadd %s599, %s604
          %s606 = smul.addr %s36, 2
          %s607 = smul.addr %s606, 128
          %s608 = scalar_lea.hbm %s1, %s607
          %s609 = sshll.u32 %s602, 4
          %s610 = int_to_ptr.vmem [resolvable:$true] %s609
          %615 = dma.hbm_to_vmem [thread:$0]  %s608, 256, %s610, %s599, 128, 128, 8
        $region88: #{tpu_custom_call.1} parent=79 // pred_fallthru
          _
      $region80: #{tpu_custom_call.1} parent=5 // pred_fallthru
        _
      %p616 = scmp.le.s32.totalorder 1, %s36
      %p617 = scmp.lt.s32.totalorder %s36, 3
      %p618 = pnand %p616, %p617
      %p619 = pneg %p618
      // Predicated region
      $region89: #{tpu_custom_call.1} parent=5 // pred_check
        _
      $region90: #{tpu_custom_call.1} parent=5 // pred_check_branch
        %621 = sbr.rel (%p618) target = $region92
      $region91: #{tpu_custom_call.1} parent=5 // pred_region
        %s622 = ssub.s32 %s36, 1
        %s623 = sand.u32 %s49, 1
        %s624 = scalar_lea.sflag [#allocation4], %s623
        %s625 = sand.u32 %s49, 1
        %s626 = smul.addr %s625, 8
        %s627 = scalar_lea.vmem [#allocation3], %s626
        // Predicated region
        $region93: #{tpu_custom_call.1} parent=91 // pred_check
          %p628 = pneg %p62
        $region94: #{tpu_custom_call.1} parent=91 // pred_check_branch
          %630 = sbr.rel (%p628) target = $region96
        $region95: #{tpu_custom_call.1} parent=91 // pred_region
          %631 = dma.done %s624, 128
        $region96: #{tpu_custom_call.1} parent=91 // pred_fallthru
          _
        %s632 = sand.u32 %s41, 1
        %s633 = scalar_lea.sflag [#allocation7], %s632
        %s634 = sand.u32 %s75, 1
        %s635 = smul.addr %s634, 16
        %s636 = scalar_lea.vmem [#allocation6], %s635
        // Predicated region
        $region97: #{tpu_custom_call.1} parent=91 // pred_check
          %p637 = pneg %p88
        $region98: #{tpu_custom_call.1} parent=91 // pred_check_branch
          %639 = sbr.rel (%p637) target = $region100
        $region99: #{tpu_custom_call.1} parent=91 // pred_region
          %640 = dma.done %s633, 256
        $region100: #{tpu_custom_call.1} parent=91 // pred_fallthru
          _
        // Predicated region
        $region101: #{tpu_custom_call.1} parent=91 // pred_check
          %p641 = pneg %p151
        $region102: #{tpu_custom_call.1} parent=91 // pred_check_branch
          %643 = sbr.rel (%p641) target = $region104
        $region103: #{tpu_custom_call.1} parent=91 // pred_region
          %644 = dma.done [#allocation7], 1024
        $region104: #{tpu_custom_call.1} parent=91 // pred_fallthru
          _
        // Predicated region
        $region105: #{tpu_custom_call.1} parent=91 // pred_check
          %p645 = pneg %p193
        $region106: #{tpu_custom_call.1} parent=91 // pred_check_branch
          %647 = sbr.rel (%p645) target = $region108
        $region107: #{tpu_custom_call.1} parent=91 // pred_region
          %648 = dma.done [#allocation10], 1024
        $region108: #{tpu_custom_call.1} parent=91 // pred_fallthru
          _
        // Predicated region
        $region109: #{tpu_custom_call.1} parent=91 // pred_check
          %p649 = pneg %p235
        $region110: #{tpu_custom_call.1} parent=91 // pred_check_branch
          %651 = sbr.rel (%p649) target = $region112
        $region111: #{tpu_custom_call.1} parent=91 // pred_region
          %652 = dma.done [#allocation10], 1024
        $region112: #{tpu_custom_call.1} parent=91 // pred_fallthru
          _
        // Predicated region
        $region113: #{tpu_custom_call.1} parent=91 // pred_check
          %p653 = pneg %p277
        $region114: #{tpu_custom_call.1} parent=91 // pred_check_branch
          %655 = sbr.rel (%p653) target = $region116
        $region115: #{tpu_custom_call.1} parent=91 // pred_region
          %656 = dma.done [#allocation13], 1024
        $region116: #{tpu_custom_call.1} parent=91 // pred_fallthru
          _
        // Predicated region
        $region117: #{tpu_custom_call.1} parent=91 // pred_check
          %p657 = pneg %p361
        $region118: #{tpu_custom_call.1} parent=91 // pred_check_branch
          %659 = sbr.rel (%p657) target = $region120
        $region119: #{tpu_custom_call.1} parent=91 // pred_region
          %660 = dma.done [#allocation13], 2048
        $region120: #{tpu_custom_call.1} parent=91 // pred_fallthru
          _
        // Predicated region
        $region121: #{tpu_custom_call.1} parent=91 // pred_check
          %p661 = pneg %p403
        $region122: #{tpu_custom_call.1} parent=91 // pred_check_branch
          %663 = sbr.rel (%p661) target = $region124
        $region123: #{tpu_custom_call.1} parent=91 // pred_region
          %664 = dma.done [#allocation16], 1024
        $region124: #{tpu_custom_call.1} parent=91 // pred_fallthru
          _
        %s665 = sand.u32 %s49, 1
        %s666 = scalar_lea.sflag [#allocation4], %s665
        %s667 = sand.u32 %s49, 1
        %s668 = smul.addr %s667, 8
        %s669 = scalar_lea.vmem [#allocation3], %s668
        %p670 = pneg %p62
        %p671 = pneg %p59
        %s672 = sand.u32 %s41, 1
        %s673 = scalar_lea.sflag [#allocation7], %s672
        %s674 = sand.u32 %s75, 1
        %s675 = smul.addr %s674, 16
        %s676 = scalar_lea.vmem [#allocation6], %s675
        %p677 = pneg %p88
        %p678 = pneg %p85
        %p679 = pneg %p109
        %p680 = pneg %p106
        %p681 = pneg %p130
        %p682 = pneg %p127
        %p683 = pneg %p151
        %p684 = pneg %p148
        %p685 = pneg %p172
        %p686 = pneg %p169
        %p687 = pneg %p193
        %p688 = pneg %p190
        %p689 = pneg %p214
        %p690 = pneg %p211
        %p691 = pneg %p235
        %p692 = pneg %p232
        %p693 = pneg %p256
        %p694 = pneg %p253
        %p695 = pneg %p277
        %p696 = pneg %p274
        %p697 = pneg %p298
        %p698 = pneg %p295
        %p699 = pneg %p319
        %p700 = pneg %p316
        %p701 = pneg %p340
        %p702 = pneg %p337
        %p703 = pneg %p361
        %p704 = pneg %p358
        %p705 = pneg %p382
        %p706 = pneg %p379
        %p707 = pneg %p403
        %p708 = pneg %p400
        %p709 = pneg %p424
        %p710 = pneg %p421
        %p711 = pneg %p450
        %p712 = pneg %p447
        %s713 = sand.u32 %s437, 1
        %s714 = scalar_lea.sflag [#allocation5], %s713
        %s715 = sand.u32 %s437, 1
        %s716 = smul.addr %s715, 8
        %s717 = scalar_lea.vmem [#allocation17], %s716
        %v719 = vld [vmem:[%s627] sm:$0xff]
        %v720 = vld [vmem:[%s636] sm:$0xff]
        %v721 = vld [vmem:[%s636 + $0x8] sm:$0xff]
        %v722 = vld [vmem:[%s2] sm:$0x1]
        %v723 = vld [vmem:[%s3] sm:$0x1]
        %724 = vadd.xlane.f32.xlu0 %v719
        %v725 = vpop.xlane.xlu0 %724
        %v726 = vrcp.pop 128.0
        %v727 = vmul.f32 %v725, %v726
        %v728 = vsub.f32 %v719, %v727
        %v729 = vmul.f32 %v728, %v728
        %730 = vadd.xlane.f32.xlu0 %v729
        %v731 = vpop.xlane.xlu0 %730
        %v732 = vmul.f32 %v731, %v726
        %v733 = vadd.f32 %v732, 1e-05
        %v734 = vrsqrt.pop %v733
        %v735 = vmul.f32 %v728, %v734
        %v737 = vlaneseq
        %v738 = vshrl.u32 %v737, 7
        %v739 = vsub.s32 0, %v738
        %v740 = vrot.slane %v722, %v739
        %v742 = vmul.f32 %v735, %v740
        %v744 = vlaneseq
        %v745 = vshrl.u32 %v744, 7
        %v746 = vsub.s32 0, %v745
        %v747 = vrot.slane %v723, %v746
        %v749 = vadd.f32 %v742, %v747
        %v750 = vpack.c.bf16 %v749, %v749
        %v751 = vpack.c.bf16 %v721, %v720
        %v752 = vld [vmem:[#allocation8] sm:$0xf]
        %v753 = vld [vmem:[#allocation8 + $0x4] sm:$0xf]
        %v754 = vld [vmem:[#allocation8 + $0x8] sm:$0xf]
        %v755 = vld [vmem:[#allocation8 + $0xc] sm:$0xf]
        %v756 = vld [vmem:[#allocation8 + $0x10] sm:$0xf]
        %v757 = vld [vmem:[#allocation8 + $0x14] sm:$0xf]
        %v758 = vld [vmem:[#allocation8 + $0x18] sm:$0xf]
        %v759 = vld [vmem:[#allocation8 + $0x1c] sm:$0xf]
        %v760 = vld [vmem:[#allocation8 + $0x20] sm:$0xf]
        %v761 = vld [vmem:[#allocation8 + $0x24] sm:$0xf]
        %v762 = vld [vmem:[#allocation8 + $0x28] sm:$0xf]
        %v763 = vld [vmem:[#allocation8 + $0x2c] sm:$0xf]
        %v764 = vld [vmem:[#allocation8 + $0x30] sm:$0xf]
        %v765 = vld [vmem:[#allocation8 + $0x34] sm:$0xf]
        %v766 = vld [vmem:[#allocation8 + $0x38] sm:$0xf]
        %v767 = vld [vmem:[#allocation8 + $0x3c] sm:$0xf]
        %v768 = vld [vmem:[%s5] sm:$0x1]
        %v770 = vlaneseq
        %v771 = vshrl.u32 %v770, 7
        %v772 = vsub.s32 0, %v771
        %v773 = vrot.slane %v768, %v772
        %v791 = vunpack.c.l.b16 %v752
        %v792 = vunpack.c.l.b16 %v753
        %v793 = vunpack.c.l.b16 %v754
        %v794 = vunpack.c.l.b16 %v755
        %v795 = vunpack.c.l.b16 %v756
        %v796 = vunpack.c.l.b16 %v757
        %v797 = vunpack.c.l.b16 %v758
        %v798 = vunpack.c.l.b16 %v759
        %v799 = vunpack.c.l.b16 %v760
        %v800 = vunpack.c.l.b16 %v761
        %v801 = vunpack.c.l.b16 %v762
        %v802 = vunpack.c.l.b16 %v763
        %v803 = vunpack.c.l.b16 %v764
        %v804 = vunpack.c.l.b16 %v765
        %v805 = vunpack.c.l.b16 %v766
        %v806 = vunpack.c.l.b16 %v767
        %v807 = vpack.c.b16 %v792, %v791
        %v808 = vpack.c.b16 %v794, %v793
        %v809 = vpack.c.b16 %v796, %v795
        %v810 = vpack.c.b16 %v798, %v797
        %v811 = vpack.c.b16 %v800, %v799
        %v812 = vpack.c.b16 %v802, %v801
        %v813 = vpack.c.b16 %v804, %v803
        %v814 = vpack.c.b16 %v806, %v805
        %823 = vmatprep.subr.bf16.mxu0 0
        %824 = vmatpush1.bf16.msra.mxu0 %v814
        %825 = vmatprep.subr.bf16.mxu0 0
        %826 = vmatpush1.bf16.msra.mxu0 %v813
        %827 = vmatprep.subr.bf16.mxu0 0
        %828 = vmatpush1.bf16.msra.mxu0 %v812
        %829 = vmatprep.subr.bf16.mxu0 0
        %830 = vmatpush1.bf16.msra.mxu0 %v811
        %831 = vmatprep.subr.bf16.mxu0 0
        %832 = vmatpush1.bf16.msra.mxu0 %v810
        %833 = vmatprep.subr.bf16.mxu0 0
        %834 = vmatpush1.bf16.msra.mxu0 %v809
        %835 = vmatprep.subr.bf16.mxu0 0
        %836 = vmatpush1.bf16.msra.mxu0 %v808
        %837 = vmatprep.subr.bf16.mxu0 0
        %838 = vmatpush1.bf16.msra.mxu0 %v807
        %839 = vmatprep.subr.bf16.mxu0 0
        %840 = vmatpush2.bf16.msra.mxu0 0
        %841 = vmatprep.subr.bf16.mxu0 0
        %842 = vmatpush2.bf16.msra.mxu0 0
        %843 = vmatprep.subr.bf16.mxu0 0
        %844 = vmatpush2.bf16.msra.mxu0 0
        %845 = vmatprep.subr.bf16.mxu0 0
        %846 = vmatpush2.bf16.msra.mxu0 0
        %847 = vmatprep.subr.bf16.mxu0 0
        %848 = vmatpush2.bf16.msra.mxu0 0
        %849 = vmatprep.subr.bf16.mxu0 0
        %850 = vmatpush2.bf16.msra.mxu0 0
        %851 = vmatprep.subr.bf16.mxu0 0
        %852 = vmatpush2.bf16.msra.mxu0 0
        %853 = vmatprep.subr.bf16.mxu0 0
        %854 = vmatpush2.bf16.msra.mxu0 0
        %855 = vmatprep.mubr.bf16.mxu0 0
        %856 = vmatmul.mubr.bf16.gmra.mxu0 %v750
        %v857 = vpop.f32.mrf.mxu0
        %v858 = vadd.f32 %v773, %v857
        %v859 = vpop.f32.mrf.mxu0
        %v860 = vpop.f32.mrf.mxu0
        %v861 = vpop.f32.mrf.mxu0
        %862 = vdwg.mxu0
        %v863 = vld [vmem:[#allocation9] sm:$0xf]
        %v864 = vld [vmem:[#allocation9 + $0x4] sm:$0xf]
        %v865 = vld [vmem:[#allocation9 + $0x8] sm:$0xf]
        %v866 = vld [vmem:[#allocation9 + $0xc] sm:$0xf]
        %v867 = vld [vmem:[#allocation9 + $0x10] sm:$0xf]
        %v868 = vld [vmem:[#allocation9 + $0x14] sm:$0xf]
        %v869 = vld [vmem:[#allocation9 + $0x18] sm:$0xf]
        %v870 = vld [vmem:[#allocation9 + $0x1c] sm:$0xf]
        %v871 = vld [vmem:[#allocation9 + $0x20] sm:$0xf]
        %v872 = vld [vmem:[#allocation9 + $0x24] sm:$0xf]
        %v873 = vld [vmem:[#allocation9 + $0x28] sm:$0xf]
        %v874 = vld [vmem:[#allocation9 + $0x2c] sm:$0xf]
        %v875 = vld [vmem:[#allocation9 + $0x30] sm:$0xf]
        %v876 = vld [vmem:[#allocation9 + $0x34] sm:$0xf]
        %v877 = vld [vmem:[#allocation9 + $0x38] sm:$0xf]
        %v878 = vld [vmem:[#allocation9 + $0x3c] sm:$0xf]
        %v879 = vld [vmem:[%s7] sm:$0x1]
        %v881 = vlaneseq
        %v882 = vshrl.u32 %v881, 7
        %v883 = vsub.s32 0, %v882
        %v884 = vrot.slane %v879, %v883
        %v902 = vunpack.c.l.b16 %v863
        %v903 = vunpack.c.l.b16 %v864
        %v904 = vunpack.c.l.b16 %v865
        %v905 = vunpack.c.l.b16 %v866
        %v906 = vunpack.c.l.b16 %v867
        %v907 = vunpack.c.l.b16 %v868
        %v908 = vunpack.c.l.b16 %v869
        %v909 = vunpack.c.l.b16 %v870
        %v910 = vunpack.c.l.b16 %v871
        %v911 = vunpack.c.l.b16 %v872
        %v912 = vunpack.c.l.b16 %v873
        %v913 = vunpack.c.l.b16 %v874
        %v914 = vunpack.c.l.b16 %v875
        %v915 = vunpack.c.l.b16 %v876
        %v916 = vunpack.c.l.b16 %v877
        %v917 = vunpack.c.l.b16 %v878
        %v918 = vpack.c.b16 %v903, %v902
        %v919 = vpack.c.b16 %v905, %v904
        %v920 = vpack.c.b16 %v907, %v906
        %v921 = vpack.c.b16 %v909, %v908
        %v922 = vpack.c.b16 %v911, %v910
        %v923 = vpack.c.b16 %v913, %v912
        %v924 = vpack.c.b16 %v915, %v914
        %v925 = vpack.c.b16 %v917, %v916
        %934 = vmatprep.subr.bf16.mxu0 0
        %935 = vmatpush1.bf16.msra.mxu0 %v925
        %936 = vmatprep.subr.bf16.mxu0 0
        %937 = vmatpush1.bf16.msra.mxu0 %v924
        %938 = vmatprep.subr.bf16.mxu0 0
        %939 = vmatpush1.bf16.msra.mxu0 %v923
        %940 = vmatprep.subr.bf16.mxu0 0
        %941 = vmatpush1.bf16.msra.mxu0 %v922
        %942 = vmatprep.subr.bf16.mxu0 0
        %943 = vmatpush1.bf16.msra.mxu0 %v921
        %944 = vmatprep.subr.bf16.mxu0 0
        %945 = vmatpush1.bf16.msra.mxu0 %v920
        %946 = vmatprep.subr.bf16.mxu0 0
        %947 = vmatpush1.bf16.msra.mxu0 %v919
        %948 = vmatprep.subr.bf16.mxu0 0
        %949 = vmatpush1.bf16.msra.mxu0 %v918
        %950 = vmatprep.subr.bf16.mxu0 0
        %951 = vmatpush2.bf16.msra.mxu0 0
        %952 = vmatprep.subr.bf16.mxu0 0
        %953 = vmatpush2.bf16.msra.mxu0 0
        %954 = vmatprep.subr.bf16.mxu0 0
        %955 = vmatpush2.bf16.msra.mxu0 0
        %956 = vmatprep.subr.bf16.mxu0 0
        %957 = vmatpush2.bf16.msra.mxu0 0
        %958 = vmatprep.subr.bf16.mxu0 0
        %959 = vmatpush2.bf16.msra.mxu0 0
        %960 = vmatprep.subr.bf16.mxu0 0
        %961 = vmatpush2.bf16.msra.mxu0 0
        %962 = vmatprep.subr.bf16.mxu0 0
        %963 = vmatpush2.bf16.msra.mxu0 0
        %964 = vmatprep.subr.bf16.mxu0 0
        %965 = vmatpush2.bf16.msra.mxu0 0
        %966 = vmatprep.mubr.bf16.mxu0 0
        %967 = vmatmul.mubr.bf16.gmra.mxu0 %v751
        %v968 = vpop.f32.mrf.mxu0
        %v969 = vadd.f32 %v884, %v968
        %v970 = vpop.f32.mrf.mxu0
        %v971 = vpop.f32.mrf.mxu0
        %v972 = vadd.f32 %v884, %v971
        %v973 = vpop.f32.mrf.mxu0
        %974 = vdwg.mxu0
        %v975 = vld [vmem:[#allocation11] sm:$0xf]
        %v976 = vld [vmem:[#allocation11 + $0x4] sm:$0xf]
        %v977 = vld [vmem:[#allocation11 + $0x8] sm:$0xf]
        %v978 = vld [vmem:[#allocation11 + $0xc] sm:$0xf]
        %v979 = vld [vmem:[#allocation11 + $0x10] sm:$0xf]
        %v980 = vld [vmem:[#allocation11 + $0x14] sm:$0xf]
        %v981 = vld [vmem:[#allocation11 + $0x18] sm:$0xf]
        %v982 = vld [vmem:[#allocation11 + $0x1c] sm:$0xf]
        %v983 = vld [vmem:[#allocation11 + $0x20] sm:$0xf]
        %v984 = vld [vmem:[#allocation11 + $0x24] sm:$0xf]
        %v985 = vld [vmem:[#allocation11 + $0x28] sm:$0xf]
        %v986 = vld [vmem:[#allocation11 + $0x2c] sm:$0xf]
        %v987 = vld [vmem:[#allocation11 + $0x30] sm:$0xf]
        %v988 = vld [vmem:[#allocation11 + $0x34] sm:$0xf]
        %v989 = vld [vmem:[#allocation11 + $0x38] sm:$0xf]
        %v990 = vld [vmem:[#allocation11 + $0x3c] sm:$0xf]
        %v991 = vld [vmem:[%s9] sm:$0x1]
        %v993 = vlaneseq
        %v994 = vshrl.u32 %v993, 7
        %v995 = vsub.s32 0, %v994
        %v996 = vrot.slane %v991, %v995
        %v1014 = vunpack.c.l.b16 %v975
        %v1015 = vunpack.c.l.b16 %v976
        %v1016 = vunpack.c.l.b16 %v977
        %v1017 = vunpack.c.l.b16 %v978
        %v1018 = vunpack.c.l.b16 %v979
        %v1019 = vunpack.c.l.b16 %v980
        %v1020 = vunpack.c.l.b16 %v981
        %v1021 = vunpack.c.l.b16 %v982
        %v1022 = vunpack.c.l.b16 %v983
        %v1023 = vunpack.c.l.b16 %v984
        %v1024 = vunpack.c.l.b16 %v985
        %v1025 = vunpack.c.l.b16 %v986
        %v1026 = vunpack.c.l.b16 %v987
        %v1027 = vunpack.c.l.b16 %v988
        %v1028 = vunpack.c.l.b16 %v989
        %v1029 = vunpack.c.l.b16 %v990
        %v1030 = vpack.c.b16 %v1015, %v1014
        %v1031 = vpack.c.b16 %v1017, %v1016
        %v1032 = vpack.c.b16 %v1019, %v1018
        %v1033 = vpack.c.b16 %v1021, %v1020
        %v1034 = vpack.c.b16 %v1023, %v1022
        %v1035 = vpack.c.b16 %v1025, %v1024
        %v1036 = vpack.c.b16 %v1027, %v1026
        %v1037 = vpack.c.b16 %v1029, %v1028
        %1046 = vmatprep.subr.bf16.mxu0 0
        %1047 = vmatpush1.bf16.msra.mxu0 %v1037
        %1048 = vmatprep.subr.bf16.mxu0 0
        %1049 = vmatpush1.bf16.msra.mxu0 %v1036
        %1050 = vmatprep.subr.bf16.mxu0 0
        %1051 = vmatpush1.bf16.msra.mxu0 %v1035
        %1052 = vmatprep.subr.bf16.mxu0 0
        %1053 = vmatpush1.bf16.msra.mxu0 %v1034
        %1054 = vmatprep.subr.bf16.mxu0 0
        %1055 = vmatpush1.bf16.msra.mxu0 %v1033
        %1056 = vmatprep.subr.bf16.mxu0 0
        %1057 = vmatpush1.bf16.msra.mxu0 %v1032
        %1058 = vmatprep.subr.bf16.mxu0 0
        %1059 = vmatpush1.bf16.msra.mxu0 %v1031
        %1060 = vmatprep.subr.bf16.mxu0 0
        %1061 = vmatpush1.bf16.msra.mxu0 %v1030
        %1062 = vmatprep.subr.bf16.mxu0 0
        %1063 = vmatpush2.bf16.msra.mxu0 0
        %1064 = vmatprep.subr.bf16.mxu0 0
        %1065 = vmatpush2.bf16.msra.mxu0 0
        %1066 = vmatprep.subr.bf16.mxu0 0
        %1067 = vmatpush2.bf16.msra.mxu0 0
        %1068 = vmatprep.subr.bf16.mxu0 0
        %1069 = vmatpush2.bf16.msra.mxu0 0
        %1070 = vmatprep.subr.bf16.mxu0 0
        %1071 = vmatpush2.bf16.msra.mxu0 0
        %1072 = vmatprep.subr.bf16.mxu0 0
        %1073 = vmatpush2.bf16.msra.mxu0 0
        %1074 = vmatprep.subr.bf16.mxu0 0
        %1075 = vmatpush2.bf16.msra.mxu0 0
        %1076 = vmatprep.subr.bf16.mxu0 0
        %1077 = vmatpush2.bf16.msra.mxu0 0
        %1078 = vmatprep.mubr.bf16.mxu0 0
        %1079 = vmatmul.mubr.bf16.gmra.mxu0 %v751
        %v1080 = vpop.f32.mrf.mxu0
        %v1081 = vadd.f32 %v996, %v1080
        %v1082 = vpop.f32.mrf.mxu0
        %v1083 = vpop.f32.mrf.mxu0
        %v1084 = vadd.f32 %v996, %v1083
        %v1085 = vpop.f32.mrf.mxu0
        %1086 = vdwg.mxu0
        %1088 = vrot.lane.b32.xlu0 %v858, 96
        %v1089 = vpop.permute.xlu0 %1088
        %1091 = vrot.lane.b32.xlu0 %v858, 64
        %v1092 = vpop.permute.xlu0 %1091
        %1094 = vrot.lane.b32.xlu0 %v858, 32
        %v1095 = vpop.permute.xlu0 %1094
        %v1097 = vpack.c.bf16 %v858, %v858
        %v1098 = vpack.c.bf16 %v1089, %v1089
        %v1099 = vpack.c.bf16 %v1092, %v1092
        %v1100 = vpack.c.bf16 %v1095, %v1095
        %1103 = vrot.lane.b32.xlu0 %v969, 96
        %v1104 = vpop.permute.xlu0 %1103
        %1105 = vrot.lane.b32.xlu0 %v972, 96
        %v1106 = vpop.permute.xlu0 %1105
        %1109 = vrot.lane.b32.xlu0 %v969, 64
        %v1110 = vpop.permute.xlu0 %1109
        %1111 = vrot.lane.b32.xlu0 %v972, 64
        %v1112 = vpop.permute.xlu0 %1111
        %1115 = vrot.lane.b32.xlu0 %v969, 32
        %v1116 = vpop.permute.xlu0 %1115
        %1117 = vrot.lane.b32.xlu0 %v972, 32
        %v1118 = vpop.permute.xlu0 %1117
        %v1121 = vpack.c.bf16 %v972, %v969
        %v1122 = vpack.c.bf16 %v1106, %v1104
        %v1123 = vpack.c.bf16 %v1112, %v1110
        %v1124 = vpack.c.bf16 %v1118, %v1116
        %1127 = vrot.lane.b32.xlu0 %v1081, 96
        %v1128 = vpop.permute.xlu0 %1127
        %1129 = vrot.lane.b32.xlu0 %v1084, 96
        %v1130 = vpop.permute.xlu0 %1129
        %1133 = vrot.lane.b32.xlu0 %v1081, 64
        %v1134 = vpop.permute.xlu0 %1133
        %1135 = vrot.lane.b32.xlu0 %v1084, 64
        %v1136 = vpop.permute.xlu0 %1135
        %1139 = vrot.lane.b32.xlu0 %v1081, 32
        %v1140 = vpop.permute.xlu0 %1139
        %1141 = vrot.lane.b32.xlu0 %v1084, 32
        %v1142 = vpop.permute.xlu0 %1141
        %v1145 = vpack.c.bf16 %v1084, %v1081
        %v1146 = vpack.c.bf16 %v1130, %v1128
        %v1147 = vpack.c.bf16 %v1136, %v1134
        %v1148 = vpack.c.bf16 %v1142, %v1140
        %vm1149 = vcmask 261120
        %v1151 = vsel %vm1149, %v1097, 0
        %v1154 = vsel %vm1149, %v1121, 0
        %1156 = vmatprep.subr.bf16.mxu0 0
        %1157 = vmatpush1.bf16.xpose.msra.mxu0 0
        %1158 = vmatprep.subr.bf16.mxu0 0
        %1159 = vmatpush1.bf16.xpose.msra.mxu0 0
        %1160 = vmatprep.subr.bf16.mxu0 0
        %1161 = vmatpush1.bf16.xpose.msra.mxu0 0
        %1162 = vmatprep.subr.bf16.mxu0 0
        %1163 = vmatpush1.bf16.xpose.msra.mxu0 0
        %1164 = vmatprep.subr.bf16.mxu0 0
        %1165 = vmatpush1.bf16.xpose.msra.mxu0 0
        %1166 = vmatprep.subr.bf16.mxu0 0
        %1167 = vmatpush1.bf16.xpose.msra.mxu0 0
        %1168 = vmatprep.subr.bf16.mxu0 0
        %1169 = vmatpush1.bf16.xpose.msra.mxu0 0
        %1170 = vmatprep.subr.bf16.mxu0 0
        %1171 = vmatpush1.bf16.xpose.msra.mxu0 %v1154
        %1172 = vmatprep.subr.bf16.mxu0 0
        %1173 = vmatpush2.bf16.xpose.msra.mxu0 0
        %1174 = vmatprep.subr.bf16.mxu0 0
        %1175 = vmatpush2.bf16.xpose.msra.mxu0 0
        %1176 = vmatprep.subr.bf16.mxu0 0
        %1177 = vmatpush2.bf16.xpose.msra.mxu0 0
        %1178 = vmatprep.subr.bf16.mxu0 0
        %1179 = vmatpush2.bf16.xpose.msra.mxu0 0
        %1180 = vmatprep.subr.bf16.mxu0 0
        %1181 = vmatpush2.bf16.xpose.msra.mxu0 0
        %1182 = vmatprep.subr.bf16.mxu0 0
        %1183 = vmatpush2.bf16.xpose.msra.mxu0 0
        %1184 = vmatprep.subr.bf16.mxu0 0
        %1185 = vmatpush2.bf16.xpose.msra.mxu0 0
        %1186 = vmatprep.subr.bf16.mxu0 0
        %1187 = vmatpush2.bf16.xpose.msra.mxu0 0
        %1188 = vmatprep.mubr.bf16.mxu0 0
        %1189 = vmatmul.mubr.bf16.gmra.mxu0 %v1151
        %v1190 = vpop.f32.mrf.mxu0
        %v1191 = vadd.f32 0.0, %v1190
        %v1192 = vpop.f32.mrf.mxu0
        %v1193 = vpop.f32.mrf.mxu0
        %v1194 = vpop.f32.mrf.mxu0
        %1195 = vdwg.mxu0
        %v1197 = vsel %vm1149, %v1098, 0
        %v1200 = vsel %vm1149, %v1122, 0
        %1202 = vmatprep.subr.bf16.mxu0 0
        %1203 = vmatpush1.bf16.xpose.msra.mxu0 0
        %1204 = vmatprep.subr.bf16.mxu0 0
        %1205 = vmatpush1.bf16.xpose.msra.mxu0 0
        %1206 = vmatprep.subr.bf16.mxu0 0
        %1207 = vmatpush1.bf16.xpose.msra.mxu0 0
        %1208 = vmatprep.subr.bf16.mxu0 0
        %1209 = vmatpush1.bf16.xpose.msra.mxu0 0
        %1210 = vmatprep.subr.bf16.mxu0 0
        %1211 = vmatpush1.bf16.xpose.msra.mxu0 0
        %1212 = vmatprep.subr.bf16.mxu0 0
        %1213 = vmatpush1.bf16.xpose.msra.mxu0 0
        %1214 = vmatprep.subr.bf16.mxu0 0
        %1215 = vmatpush1.bf16.xpose.msra.mxu0 0
        %1216 = vmatprep.subr.bf16.mxu0 0
        %1217 = vmatpush1.bf16.xpose.msra.mxu0 %v1200
        %1218 = vmatprep.subr.bf16.mxu0 0
        %1219 = vmatpush2.bf16.xpose.msra.mxu0 0
        %1220 = vmatprep.subr.bf16.mxu0 0
        %1221 = vmatpush2.bf16.xpose.msra.mxu0 0
        %1222 = vmatprep.subr.bf16.mxu0 0
        %1223 = vmatpush2.bf16.xpose.msra.mxu0 0
        %1224 = vmatprep.subr.bf16.mxu0 0
        %1225 = vmatpush2.bf16.xpose.msra.mxu0 0
        %1226 = vmatprep.subr.bf16.mxu0 0
        %1227 = vmatpush2.bf16.xpose.msra.mxu0 0
        %1228 = vmatprep.subr.bf16.mxu0 0
        %1229 = vmatpush2.bf16.xpose.msra.mxu0 0
        %1230 = vmatprep.subr.bf16.mxu0 0
        %1231 = vmatpush2.bf16.xpose.msra.mxu0 0
        %1232 = vmatprep.subr.bf16.mxu0 0
        %1233 = vmatpush2.bf16.xpose.msra.mxu0 0
        %1234 = vmatprep.mubr.bf16.mxu0 0
        %1235 = vmatmul.mubr.bf16.gmra.mxu0 %v1197
        %v1236 = vpop.f32.mrf.mxu0
        %v1237 = vadd.f32 0.0, %v1236
        %v1238 = vpop.f32.mrf.mxu0
        %v1239 = vpop.f32.mrf.mxu0
        %v1240 = vpop.f32.mrf.mxu0
        %1241 = vdwg.mxu0
        %v1243 = vsel %vm1149, %v1099, 0
        %v1246 = vsel %vm1149, %v1123, 0
        %1248 = vmatprep.subr.bf16.mxu0 0
        %1249 = vmatpush1.bf16.xpose.msra.mxu0 0
        %1250 = vmatprep.subr.bf16.mxu0 0
        %1251 = vmatpush1.bf16.xpose.msra.mxu0 0
        %1252 = vmatprep.subr.bf16.mxu0 0
        %1253 = vmatpush1.bf16.xpose.msra.mxu0 0
        %1254 = vmatprep.subr.bf16.mxu0 0
        %1255 = vmatpush1.bf16.xpose.msra.mxu0 0
        %1256 = vmatprep.subr.bf16.mxu0 0
        %1257 = vmatpush1.bf16.xpose.msra.mxu0 0
        %1258 = vmatprep.subr.bf16.mxu0 0
        %1259 = vmatpush1.bf16.xpose.msra.mxu0 0
        %1260 = vmatprep.subr.bf16.mxu0 0
        %1261 = vmatpush1.bf16.xpose.msra.mxu0 0
        %1262 = vmatprep.subr.bf16.mxu0 0
        %1263 = vmatpush1.bf16.xpose.msra.mxu0 %v1246
        %1264 = vmatprep.subr.bf16.mxu0 0
        %1265 = vmatpush2.bf16.xpose.msra.mxu0 0
        %1266 = vmatprep.subr.bf16.mxu0 0
        %1267 = vmatpush2.bf16.xpose.msra.mxu0 0
        %1268 = vmatprep.subr.bf16.mxu0 0
        %1269 = vmatpush2.bf16.xpose.msra.mxu0 0
        %1270 = vmatprep.subr.bf16.mxu0 0
        %1271 = vmatpush2.bf16.xpose.msra.mxu0 0
        %1272 = vmatprep.subr.bf16.mxu0 0
        %1273 = vmatpush2.bf16.xpose.msra.mxu0 0
        %1274 = vmatprep.subr.bf16.mxu0 0
        %1275 = vmatpush2.bf16.xpose.msra.mxu0 0
        %1276 = vmatprep.subr.bf16.mxu0 0
        %1277 = vmatpush2.bf16.xpose.msra.mxu0 0
        %1278 = vmatprep.subr.bf16.mxu0 0
        %1279 = vmatpush2.bf16.xpose.msra.mxu0 0
        %1280 = vmatprep.mubr.bf16.mxu0 0
        %1281 = vmatmul.mubr.bf16.gmra.mxu0 %v1243
        %v1282 = vpop.f32.mrf.mxu0
        %v1283 = vadd.f32 0.0, %v1282
        %v1284 = vpop.f32.mrf.mxu0
        %v1285 = vpop.f32.mrf.mxu0
        %v1286 = vpop.f32.mrf.mxu0
        %1287 = vdwg.mxu0
        %v1289 = vsel %vm1149, %v1100, 0
        %v1292 = vsel %vm1149, %v1124, 0
        %1294 = vmatprep.subr.bf16.mxu0 0
        %1295 = vmatpush1.bf16.xpose.msra.mxu0 0
        %1296 = vmatprep.subr.bf16.mxu0 0
        %1297 = vmatpush1.bf16.xpose.msra.mxu0 0
        %1298 = vmatprep.subr.bf16.mxu0 0
        %1299 = vmatpush1.bf16.xpose.msra.mxu0 0
        %1300 = vmatprep.subr.bf16.mxu0 0
        %1301 = vmatpush1.bf16.xpose.msra.mxu0 0
        %1302 = vmatprep.subr.bf16.mxu0 0
        %1303 = vmatpush1.bf16.xpose.msra.mxu0 0
        %1304 = vmatprep.subr.bf16.mxu0 0
        %1305 = vmatpush1.bf16.xpose.msra.mxu0 0
        %1306 = vmatprep.subr.bf16.mxu0 0
        %1307 = vmatpush1.bf16.xpose.msra.mxu0 0
        %1308 = vmatprep.subr.bf16.mxu0 0
        %1309 = vmatpush1.bf16.xpose.msra.mxu0 %v1292
        %1310 = vmatprep.subr.bf16.mxu0 0
        %1311 = vmatpush2.bf16.xpose.msra.mxu0 0
        %1312 = vmatprep.subr.bf16.mxu0 0
        %1313 = vmatpush2.bf16.xpose.msra.mxu0 0
        %1314 = vmatprep.subr.bf16.mxu0 0
        %1315 = vmatpush2.bf16.xpose.msra.mxu0 0
        %1316 = vmatprep.subr.bf16.mxu0 0
        %1317 = vmatpush2.bf16.xpose.msra.mxu0 0
        %1318 = vmatprep.subr.bf16.mxu0 0
        %1319 = vmatpush2.bf16.xpose.msra.mxu0 0
        %1320 = vmatprep.subr.bf16.mxu0 0
        %1321 = vmatpush2.bf16.xpose.msra.mxu0 0
        %1322 = vmatprep.subr.bf16.mxu0 0
        %1323 = vmatpush2.bf16.xpose.msra.mxu0 0
        %1324 = vmatprep.subr.bf16.mxu0 0
        %1325 = vmatpush2.bf16.xpose.msra.mxu0 0
        %1326 = vmatprep.mubr.bf16.mxu0 0
        %1327 = vmatmul.mubr.bf16.gmra.mxu0 %v1289
        %v1328 = vpop.f32.mrf.mxu0
        %v1329 = vadd.f32 0.0, %v1328
        %v1330 = vpop.f32.mrf.mxu0
        %v1331 = vpop.f32.mrf.mxu0
        %v1332 = vpop.f32.mrf.mxu0
        %1333 = vdwg.mxu0
        %vm1334 = vcmask 130048
        %v1335 = vsel %vm1334, %v1191, -inf
        %1336 = vmax.xlane.f32.xlu0 %v1335
        %v1337 = vpop.xlane.xlu0 %1336
        %v1338 = vsel %vm1334, %v1237, -inf
        %1339 = vmax.xlane.f32.xlu0 %v1338
        %v1340 = vpop.xlane.xlu0 %1339
        %v1341 = vsel %vm1334, %v1283, -inf
        %1342 = vmax.xlane.f32.xlu0 %v1341
        %v1343 = vpop.xlane.xlu0 %1342
        %v1344 = vsel %vm1334, %v1329, -inf
        %1345 = vmax.xlane.f32.xlu0 %v1344
        %v1346 = vpop.xlane.xlu0 %1345
        %v1347 = vsub.f32 %v1191, %v1337
        %v1348 = vsub.f32 %v1237, %v1340
        %v1349 = vsub.f32 %v1283, %v1343
        %v1350 = vsub.f32 %v1329, %v1346
        %v1351 = vmul.f32 %v1347, 1.442695
        %v1352 = vpow.pop %v1351
        %v1353 = vmul.f32 %v1348, 1.442695
        %v1354 = vpow.pop %v1353
        %v1355 = vmul.f32 %v1349, 1.442695
        %v1356 = vpow.pop %v1355
        %v1357 = vmul.f32 %v1350, 1.442695
        %v1358 = vpow.pop %v1357
        %v1359 = vsel %vm1334, %v1352, 0.0
        %1360 = vadd.xlane.f32.xlu0 %v1359
        %v1361 = vpop.xlane.xlu0 %1360
        %v1362 = vsel %vm1334, %v1354, 0.0
        %1363 = vadd.xlane.f32.xlu0 %v1362
        %v1364 = vpop.xlane.xlu0 %1363
        %v1365 = vsel %vm1334, %v1356, 0.0
        %1366 = vadd.xlane.f32.xlu0 %v1365
        %v1367 = vpop.xlane.xlu0 %1366
        %v1368 = vsel %vm1334, %v1358, 0.0
        %1369 = vadd.xlane.f32.xlu0 %v1368
        %v1370 = vpop.xlane.xlu0 %1369
        %v1371 = vrcp.pop %v1361
        %v1372 = vrcp.pop %v1364
        %v1373 = vrcp.pop %v1367
        %v1374 = vrcp.pop %v1370
        %v1375 = vmul.f32 %v1352, %v1371
        %v1376 = vmul.f32 %v1354, %v1372
        %v1377 = vmul.f32 %v1356, %v1373
        %v1378 = vmul.f32 %v1358, %v1374
        %v1379 = vpack.c.bf16 %v1375, %v1375
        %v1380 = vpack.c.bf16 %v1376, %v1376
        %v1381 = vpack.c.bf16 %v1377, %v1377
        %v1382 = vpack.c.bf16 %v1378, %v1378
        %v1384 = vsel %vm1334, %v1379, 0
        %1386 = vmatprep.subr.bf16.mxu0 0
        %1387 = vmatpush1.bf16.msra.mxu0 0
        %1388 = vmatprep.subr.bf16.mxu0 0
        %1389 = vmatpush1.bf16.msra.mxu0 0
        %1390 = vmatprep.subr.bf16.mxu0 0
        %1391 = vmatpush1.bf16.msra.mxu0 0
        %1392 = vmatprep.subr.bf16.mxu0 0
        %1393 = vmatpush1.bf16.msra.mxu0 0
        %1394 = vmatprep.subr.bf16.mxu0 0
        %1395 = vmatpush1.bf16.msra.mxu0 0
        %1396 = vmatprep.subr.bf16.mxu0 0
        %1397 = vmatpush1.bf16.msra.mxu0 0
        %1398 = vmatprep.subr.bf16.mxu0 0
        %1399 = vmatpush1.bf16.msra.mxu0 0
        %1400 = vmatprep.subr.bf16.mxu0 0
        %1401 = vmatpush1.bf16.msra.mxu0 %v1145
        %1402 = vmatprep.subr.bf16.mxu0 0
        %1403 = vmatpush2.bf16.msra.mxu0 0
        %1404 = vmatprep.subr.bf16.mxu0 0
        %1405 = vmatpush2.bf16.msra.mxu0 0
        %1406 = vmatprep.subr.bf16.mxu0 0
        %1407 = vmatpush2.bf16.msra.mxu0 0
        %1408 = vmatprep.subr.bf16.mxu0 0
        %1409 = vmatpush2.bf16.msra.mxu0 0
        %1410 = vmatprep.subr.bf16.mxu0 0
        %1411 = vmatpush2.bf16.msra.mxu0 0
        %1412 = vmatprep.subr.bf16.mxu0 0
        %1413 = vmatpush2.bf16.msra.mxu0 0
        %1414 = vmatprep.subr.bf16.mxu0 0
        %1415 = vmatpush2.bf16.msra.mxu0 0
        %1416 = vmatprep.subr.bf16.mxu0 0
        %1417 = vmatpush2.bf16.msra.mxu0 0
        %1418 = vmatprep.mubr.bf16.mxu0 0
        %1419 = vmatmul.mubr.bf16.gmra.mxu0 %v1384
        %v1420 = vpop.f32.mrf.mxu0
        %v1421 = vadd.f32 0.0, %v1420
        %v1422 = vpop.f32.mrf.mxu0
        %v1423 = vpop.f32.mrf.mxu0
        %v1424 = vpop.f32.mrf.mxu0
        %1425 = vdwg.mxu0
        %v1427 = vsel %vm1334, %v1380, 0
        %1429 = vmatprep.subr.bf16.mxu0 0
        %1430 = vmatpush1.bf16.msra.mxu0 0
        %1431 = vmatprep.subr.bf16.mxu0 0
        %1432 = vmatpush1.bf16.msra.mxu0 0
        %1433 = vmatprep.subr.bf16.mxu0 0
        %1434 = vmatpush1.bf16.msra.mxu0 0
        %1435 = vmatprep.subr.bf16.mxu0 0
        %1436 = vmatpush1.bf16.msra.mxu0 0
        %1437 = vmatprep.subr.bf16.mxu0 0
        %1438 = vmatpush1.bf16.msra.mxu0 0
        %1439 = vmatprep.subr.bf16.mxu0 0
        %1440 = vmatpush1.bf16.msra.mxu0 0
        %1441 = vmatprep.subr.bf16.mxu0 0
        %1442 = vmatpush1.bf16.msra.mxu0 0
        %1443 = vmatprep.subr.bf16.mxu0 0
        %1444 = vmatpush1.bf16.msra.mxu0 %v1146
        %1445 = vmatprep.subr.bf16.mxu0 0
        %1446 = vmatpush2.bf16.msra.mxu0 0
        %1447 = vmatprep.subr.bf16.mxu0 0
        %1448 = vmatpush2.bf16.msra.mxu0 0
        %1449 = vmatprep.subr.bf16.mxu0 0
        %1450 = vmatpush2.bf16.msra.mxu0 0
        %1451 = vmatprep.subr.bf16.mxu0 0
        %1452 = vmatpush2.bf16.msra.mxu0 0
        %1453 = vmatprep.subr.bf16.mxu0 0
        %1454 = vmatpush2.bf16.msra.mxu0 0
        %1455 = vmatprep.subr.bf16.mxu0 0
        %1456 = vmatpush2.bf16.msra.mxu0 0
        %1457 = vmatprep.subr.bf16.mxu0 0
        %1458 = vmatpush2.bf16.msra.mxu0 0
        %1459 = vmatprep.subr.bf16.mxu0 0
        %1460 = vmatpush2.bf16.msra.mxu0 0
        %1461 = vmatprep.mubr.bf16.mxu0 0
        %1462 = vmatmul.mubr.bf16.gmra.mxu0 %v1427
        %v1463 = vpop.f32.mrf.mxu0
        %v1464 = vadd.f32 0.0, %v1463
        %v1465 = vpop.f32.mrf.mxu0
        %v1466 = vpop.f32.mrf.mxu0
        %v1467 = vpop.f32.mrf.mxu0
        %1468 = vdwg.mxu0
        %v1470 = vsel %vm1334, %v1381, 0
        %1472 = vmatprep.subr.bf16.mxu0 0
        %1473 = vmatpush1.bf16.msra.mxu0 0
        %1474 = vmatprep.subr.bf16.mxu0 0
        %1475 = vmatpush1.bf16.msra.mxu0 0
        %1476 = vmatprep.subr.bf16.mxu0 0
        %1477 = vmatpush1.bf16.msra.mxu0 0
        %1478 = vmatprep.subr.bf16.mxu0 0
        %1479 = vmatpush1.bf16.msra.mxu0 0
        %1480 = vmatprep.subr.bf16.mxu0 0
        %1481 = vmatpush1.bf16.msra.mxu0 0
        %1482 = vmatprep.subr.bf16.mxu0 0
        %1483 = vmatpush1.bf16.msra.mxu0 0
        %1484 = vmatprep.subr.bf16.mxu0 0
        %1485 = vmatpush1.bf16.msra.mxu0 0
        %1486 = vmatprep.subr.bf16.mxu0 0
        %1487 = vmatpush1.bf16.msra.mxu0 %v1147
        %1488 = vmatprep.subr.bf16.mxu0 0
        %1489 = vmatpush2.bf16.msra.mxu0 0
        %1490 = vmatprep.subr.bf16.mxu0 0
        %1491 = vmatpush2.bf16.msra.mxu0 0
        %1492 = vmatprep.subr.bf16.mxu0 0
        %1493 = vmatpush2.bf16.msra.mxu0 0
        %1494 = vmatprep.subr.bf16.mxu0 0
        %1495 = vmatpush2.bf16.msra.mxu0 0
        %1496 = vmatprep.subr.bf16.mxu0 0
        %1497 = vmatpush2.bf16.msra.mxu0 0
        %1498 = vmatprep.subr.bf16.mxu0 0
        %1499 = vmatpush2.bf16.msra.mxu0 0
        %1500 = vmatprep.subr.bf16.mxu0 0
        %1501 = vmatpush2.bf16.msra.mxu0 0
        %1502 = vmatprep.subr.bf16.mxu0 0
        %1503 = vmatpush2.bf16.msra.mxu0 0
        %1504 = vmatprep.mubr.bf16.mxu0 0
        %1505 = vmatmul.mubr.bf16.gmra.mxu0 %v1470
        %v1506 = vpop.f32.mrf.mxu0
        %v1507 = vadd.f32 0.0, %v1506
        %v1508 = vpop.f32.mrf.mxu0
        %v1509 = vpop.f32.mrf.mxu0
        %v1510 = vpop.f32.mrf.mxu0
        %1511 = vdwg.mxu0
        %v1513 = vsel %vm1334, %v1382, 0
        %1515 = vmatprep.subr.bf16.mxu0 0
        %1516 = vmatpush1.bf16.msra.mxu0 0
        %1517 = vmatprep.subr.bf16.mxu0 0
        %1518 = vmatpush1.bf16.msra.mxu0 0
        %1519 = vmatprep.subr.bf16.mxu0 0
        %1520 = vmatpush1.bf16.msra.mxu0 0
        %1521 = vmatprep.subr.bf16.mxu0 0
        %1522 = vmatpush1.bf16.msra.mxu0 0
        %1523 = vmatprep.subr.bf16.mxu0 0
        %1524 = vmatpush1.bf16.msra.mxu0 0
        %1525 = vmatprep.subr.bf16.mxu0 0
        %1526 = vmatpush1.bf16.msra.mxu0 0
        %1527 = vmatprep.subr.bf16.mxu0 0
        %1528 = vmatpush1.bf16.msra.mxu0 0
        %1529 = vmatprep.subr.bf16.mxu0 0
        %1530 = vmatpush1.bf16.msra.mxu0 %v1148
        %1531 = vmatprep.subr.bf16.mxu0 0
        %1532 = vmatpush2.bf16.msra.mxu0 0
        %1533 = vmatprep.subr.bf16.mxu0 0
        %1534 = vmatpush2.bf16.msra.mxu0 0
        %1535 = vmatprep.subr.bf16.mxu0 0
        %1536 = vmatpush2.bf16.msra.mxu0 0
        %1537 = vmatprep.subr.bf16.mxu0 0
        %1538 = vmatpush2.bf16.msra.mxu0 0
        %1539 = vmatprep.subr.bf16.mxu0 0
        %1540 = vmatpush2.bf16.msra.mxu0 0
        %1541 = vmatprep.subr.bf16.mxu0 0
        %1542 = vmatpush2.bf16.msra.mxu0 0
        %1543 = vmatprep.subr.bf16.mxu0 0
        %1544 = vmatpush2.bf16.msra.mxu0 0
        %1545 = vmatprep.subr.bf16.mxu0 0
        %1546 = vmatpush2.bf16.msra.mxu0 0
        %1547 = vmatprep.mubr.bf16.mxu0 0
        %1548 = vmatmul.mubr.bf16.gmra.mxu0 %v1513
        %v1549 = vpop.f32.mrf.mxu0
        %v1550 = vadd.f32 0.0, %v1549
        %v1551 = vpop.f32.mrf.mxu0
        %v1552 = vpop.f32.mrf.mxu0
        %v1553 = vpop.f32.mrf.mxu0
        %1554 = vdwg.mxu0
        %1555 = vst.msk [vmem:[#allocation2] sm:$0xff] %vm1149, %v1421
        %1557 = vrot.lane.b32.xlu0 %v1464, 32
        %v1558 = vpop.permute.xlu0 %1557
        %vm1560 = vcmask 523520
        %1561 = vst.msk [vmem:[#allocation2] sm:$0xff] %vm1560, %v1558
        %1563 = vrot.lane.b32.xlu0 %v1507, 64
        %v1564 = vpop.permute.xlu0 %1563
        %vm1566 = vcmask 785920
        %1567 = vst.msk [vmem:[#allocation2] sm:$0xff] %vm1566, %v1564
        %1569 = vrot.lane.b32.xlu0 %v1550, 96
        %v1570 = vpop.permute.xlu0 %1569
        %vm1572 = vcmask 1048320
        %1573 = vst.msk [vmem:[#allocation2] sm:$0xff] %vm1572, %v1570
        %v1574 = vld [vmem:[#allocation2] sm:$0xff]
        %v1575 = vpack.c.bf16 %v1574, %v1574
        %v1576 = vld [vmem:[#allocation12] sm:$0xf]
        %v1577 = vld [vmem:[#allocation12 + $0x4] sm:$0xf]
        %v1578 = vld [vmem:[#allocation12 + $0x8] sm:$0xf]
        %v1579 = vld [vmem:[#allocation12 + $0xc] sm:$0xf]
        %v1580 = vld [vmem:[#allocation12 + $0x10] sm:$0xf]
        %v1581 = vld [vmem:[#allocation12 + $0x14] sm:$0xf]
        %v1582 = vld [vmem:[#allocation12 + $0x18] sm:$0xf]
        %v1583 = vld [vmem:[#allocation12 + $0x1c] sm:$0xf]
        %v1584 = vld [vmem:[#allocation12 + $0x20] sm:$0xf]
        %v1585 = vld [vmem:[#allocation12 + $0x24] sm:$0xf]
        %v1586 = vld [vmem:[#allocation12 + $0x28] sm:$0xf]
        %v1587 = vld [vmem:[#allocation12 + $0x2c] sm:$0xf]
        %v1588 = vld [vmem:[#allocation12 + $0x30] sm:$0xf]
        %v1589 = vld [vmem:[#allocation12 + $0x34] sm:$0xf]
        %v1590 = vld [vmem:[#allocation12 + $0x38] sm:$0xf]
        %v1591 = vld [vmem:[#allocation12 + $0x3c] sm:$0xf]
        %v1592 = vld [vmem:[%s11] sm:$0x1]
        %v1594 = vlaneseq
        %v1595 = vshrl.u32 %v1594, 7
        %v1596 = vsub.s32 0, %v1595
        %v1597 = vrot.slane %v1592, %v1596
        %v1615 = vunpack.c.l.b16 %v1576
        %v1616 = vunpack.c.l.b16 %v1577
        %v1617 = vunpack.c.l.b16 %v1578
        %v1618 = vunpack.c.l.b16 %v1579
        %v1619 = vunpack.c.l.b16 %v1580
        %v1620 = vunpack.c.l.b16 %v1581
        %v1621 = vunpack.c.l.b16 %v1582
        %v1622 = vunpack.c.l.b16 %v1583
        %v1623 = vunpack.c.l.b16 %v1584
        %v1624 = vunpack.c.l.b16 %v1585
        %v1625 = vunpack.c.l.b16 %v1586
        %v1626 = vunpack.c.l.b16 %v1587
        %v1627 = vunpack.c.l.b16 %v1588
        %v1628 = vunpack.c.l.b16 %v1589
        %v1629 = vunpack.c.l.b16 %v1590
        %v1630 = vunpack.c.l.b16 %v1591
        %v1631 = vpack.c.b16 %v1616, %v1615
        %v1632 = vpack.c.b16 %v1618, %v1617
        %v1633 = vpack.c.b16 %v1620, %v1619
        %v1634 = vpack.c.b16 %v1622, %v1621
        %v1635 = vpack.c.b16 %v1624, %v1623
        %v1636 = vpack.c.b16 %v1626, %v1625
        %v1637 = vpack.c.b16 %v1628, %v1627
        %v1638 = vpack.c.b16 %v1630, %v1629
        %1647 = vmatprep.subr.bf16.mxu0 0
        %1648 = vmatpush1.bf16.msra.mxu0 %v1638
        %1649 = vmatprep.subr.bf16.mxu0 0
        %1650 = vmatpush1.bf16.msra.mxu0 %v1637
        %1651 = vmatprep.subr.bf16.mxu0 0
        %1652 = vmatpush1.bf16.msra.mxu0 %v1636
        %1653 = vmatprep.subr.bf16.mxu0 0
        %1654 = vmatpush1.bf16.msra.mxu0 %v1635
        %1655 = vmatprep.subr.bf16.mxu0 0
        %1656 = vmatpush1.bf16.msra.mxu0 %v1634
        %1657 = vmatprep.subr.bf16.mxu0 0
        %1658 = vmatpush1.bf16.msra.mxu0 %v1633
        %1659 = vmatprep.subr.bf16.mxu0 0
        %1660 = vmatpush1.bf16.msra.mxu0 %v1632
        %1661 = vmatprep.subr.bf16.mxu0 0
        %1662 = vmatpush1.bf16.msra.mxu0 %v1631
        %1663 = vmatprep.subr.bf16.mxu0 0
        %1664 = vmatpush2.bf16.msra.mxu0 0
        %1665 = vmatprep.subr.bf16.mxu0 0
        %1666 = vmatpush2.bf16.msra.mxu0 0
        %1667 = vmatprep.subr.bf16.mxu0 0
        %1668 = vmatpush2.bf16.msra.mxu0 0
        %1669 = vmatprep.subr.bf16.mxu0 0
        %1670 = vmatpush2.bf16.msra.mxu0 0
        %1671 = vmatprep.subr.bf16.mxu0 0
        %1672 = vmatpush2.bf16.msra.mxu0 0
        %1673 = vmatprep.subr.bf16.mxu0 0
        %1674 = vmatpush2.bf16.msra.mxu0 0
        %1675 = vmatprep.subr.bf16.mxu0 0
        %1676 = vmatpush2.bf16.msra.mxu0 0
        %1677 = vmatprep.subr.bf16.mxu0 0
        %1678 = vmatpush2.bf16.msra.mxu0 0
        %1679 = vmatprep.mubr.bf16.mxu0 0
        %1680 = vmatmul.mubr.bf16.gmra.mxu0 %v1575
        %v1681 = vpop.f32.mrf.mxu0
        %v1682 = vadd.f32 %v1597, %v1681
        %v1683 = vpop.f32.mrf.mxu0
        %v1684 = vpop.f32.mrf.mxu0
        %v1685 = vpop.f32.mrf.mxu0
        %1686 = vdwg.mxu0
        %v1687 = vadd.f32 %v749, %v1682
        %v1688 = vld [vmem:[%s12] sm:$0x1]
        %v1689 = vld [vmem:[%s13] sm:$0x1]
        %1690 = vadd.xlane.f32.xlu0 %v1687
        %v1691 = vpop.xlane.xlu0 %1690
        %v1692 = vmul.f32 %v1691, %v726
        %v1693 = vsub.f32 %v1687, %v1692
        %v1694 = vmul.f32 %v1693, %v1693
        %1695 = vadd.xlane.f32.xlu0 %v1694
        %v1696 = vpop.xlane.xlu0 %1695
        %v1697 = vmul.f32 %v1696, %v726
        %v1698 = vadd.f32 %v1697, 1e-05
        %v1699 = vrsqrt.pop %v1698
        %v1700 = vmul.f32 %v1693, %v1699
        %v1702 = vlaneseq
        %v1703 = vshrl.u32 %v1702, 7
        %v1704 = vsub.s32 0, %v1703
        %v1705 = vrot.slane %v1688, %v1704
        %v1707 = vmul.f32 %v1700, %v1705
        %v1709 = vlaneseq
        %v1710 = vshrl.u32 %v1709, 7
        %v1711 = vsub.s32 0, %v1710
        %v1712 = vrot.slane %v1689, %v1711
        %v1714 = vadd.f32 %v1707, %v1712
        %v1715 = vpack.c.bf16 %v1714, %v1714
        %v1716 = vld [vmem:[#allocation14] sm:$0xff]
        %v1717 = vld [vmem:[#allocation14 + $0x8] sm:$0xff]
        %v1718 = vld [vmem:[#allocation14 + $0x10] sm:$0xff]
        %v1719 = vld [vmem:[#allocation14 + $0x18] sm:$0xff]
        %v1720 = vld [vmem:[#allocation14 + $0x20] sm:$0xff]
        %v1721 = vld [vmem:[#allocation14 + $0x28] sm:$0xff]
        %v1722 = vld [vmem:[#allocation14 + $0x30] sm:$0xff]
        %v1723 = vld [vmem:[#allocation14 + $0x38] sm:$0xff]
        %v1724 = vld [vmem:[#allocation14 + $0x40] sm:$0xff]
        %v1725 = vld [vmem:[#allocation14 + $0x48] sm:$0xff]
        %v1726 = vld [vmem:[#allocation14 + $0x50] sm:$0xff]
        %v1727 = vld [vmem:[#allocation14 + $0x58] sm:$0xff]
        %v1728 = vld [vmem:[#allocation14 + $0x60] sm:$0xff]
        %v1729 = vld [vmem:[#allocation14 + $0x68] sm:$0xff]
        %v1730 = vld [vmem:[#allocation14 + $0x70] sm:$0xff]
        %v1731 = vld [vmem:[#allocation14 + $0x78] sm:$0xff]
        %v1732 = vld [vmem:[%s15] sm:$0x3]
        %v1734 = vlaneseq
        %v1735 = vshrl.u32 %v1734, 7
        %v1736 = vsub.s32 0, %v1735
        %v1737 = vrot.slane %v1732, %v1736
        %v1738 = vlaneseq
        %v1739 = vshrl.u32 %v1738, 7
        %v1740 = vsub.s32 1, %v1739
        %v1741 = vrot.slane %v1732, %v1740
        %v1760 = vunpack.c.l.b16 %v1716
        %v1761 = vunpack.c.h.b16 %v1716
        %v1762 = vunpack.c.l.b16 %v1717
        %v1763 = vunpack.c.h.b16 %v1717
        %v1764 = vunpack.c.l.b16 %v1718
        %v1765 = vunpack.c.h.b16 %v1718
        %v1766 = vunpack.c.l.b16 %v1719
        %v1767 = vunpack.c.h.b16 %v1719
        %v1768 = vunpack.c.l.b16 %v1720
        %v1769 = vunpack.c.h.b16 %v1720
        %v1770 = vunpack.c.l.b16 %v1721
        %v1771 = vunpack.c.h.b16 %v1721
        %v1772 = vunpack.c.l.b16 %v1722
        %v1773 = vunpack.c.h.b16 %v1722
        %v1774 = vunpack.c.l.b16 %v1723
        %v1775 = vunpack.c.h.b16 %v1723
        %v1776 = vunpack.c.l.b16 %v1724
        %v1777 = vunpack.c.h.b16 %v1724
        %v1778 = vunpack.c.l.b16 %v1725
        %v1779 = vunpack.c.h.b16 %v1725
        %v1780 = vunpack.c.l.b16 %v1726
        %v1781 = vunpack.c.h.b16 %v1726
        %v1782 = vunpack.c.l.b16 %v1727
        %v1783 = vunpack.c.h.b16 %v1727
        %v1784 = vunpack.c.l.b16 %v1728
        %v1785 = vunpack.c.h.b16 %v1728
        %v1786 = vunpack.c.l.b16 %v1729
        %v1787 = vunpack.c.h.b16 %v1729
        %v1788 = vunpack.c.l.b16 %v1730
        %v1789 = vunpack.c.h.b16 %v1730
        %v1790 = vunpack.c.l.b16 %v1731
        %v1791 = vunpack.c.h.b16 %v1731
        %v1792 = vpack.c.b16 %v1762, %v1760
        %v1793 = vpack.c.b16 %v1763, %v1761
        %v1794 = vpack.c.b16 %v1766, %v1764
        %v1795 = vpack.c.b16 %v1767, %v1765
        %v1796 = vpack.c.b16 %v1770, %v1768
        %v1797 = vpack.c.b16 %v1771, %v1769
        %v1798 = vpack.c.b16 %v1774, %v1772
        %v1799 = vpack.c.b16 %v1775, %v1773
        %v1800 = vpack.c.b16 %v1778, %v1776
        %v1801 = vpack.c.b16 %v1779, %v1777
        %v1802 = vpack.c.b16 %v1782, %v1780
        %v1803 = vpack.c.b16 %v1783, %v1781
        %v1804 = vpack.c.b16 %v1786, %v1784
        %v1805 = vpack.c.b16 %v1787, %v1785
        %v1806 = vpack.c.b16 %v1790, %v1788
        %v1807 = vpack.c.b16 %v1791, %v1789
        %1824 = vmatprep.subr.bf16.mxu0 %v1807
        %1825 = vmatpush1.bf16.msra.mxu0 %v1806
        %1826 = vmatprep.subr.bf16.mxu0 %v1805
        %1827 = vmatpush1.bf16.msra.mxu0 %v1804
        %1828 = vmatprep.subr.bf16.mxu0 %v1803
        %1829 = vmatpush1.bf16.msra.mxu0 %v1802
        %1830 = vmatprep.subr.bf16.mxu0 %v1801
        %1831 = vmatpush1.bf16.msra.mxu0 %v1800
        %1832 = vmatprep.subr.bf16.mxu0 %v1799
        %1833 = vmatpush1.bf16.msra.mxu0 %v1798
        %1834 = vmatprep.subr.bf16.mxu0 %v1797
        %1835 = vmatpush1.bf16.msra.mxu0 %v1796
        %1836 = vmatprep.subr.bf16.mxu0 %v1795
        %1837 = vmatpush1.bf16.msra.mxu0 %v1794
        %1838 = vmatprep.subr.bf16.mxu0 %v1793
        %1839 = vmatpush1.bf16.msra.mxu0 %v1792
        %1840 = vmatprep.subr.bf16.mxu0 0
        %1841 = vmatpush2.bf16.msra.mxu0 0
        %1842 = vmatprep.subr.bf16.mxu0 0
        %1843 = vmatpush2.bf16.msra.mxu0 0
        %1844 = vmatprep.subr.bf16.mxu0 0
        %1845 = vmatpush2.bf16.msra.mxu0 0
        %1846 = vmatprep.subr.bf16.mxu0 0
        %1847 = vmatpush2.bf16.msra.mxu0 0
        %1848 = vmatprep.subr.bf16.mxu0 0
        %1849 = vmatpush2.bf16.msra.mxu0 0
        %1850 = vmatprep.subr.bf16.mxu0 0
        %1851 = vmatpush2.bf16.msra.mxu0 0
        %1852 = vmatprep.subr.bf16.mxu0 0
        %1853 = vmatpush2.bf16.msra.mxu0 0
        %1854 = vmatprep.subr.bf16.mxu0 0
        %1855 = vmatpush2.bf16.msra.mxu0 0
        %1856 = vmatprep.mubr.bf16.mxu0 0
        %1857 = vmatmul.mubr.bf16.gmra.mxu0 %v1715
        %v1858 = vpop.f32.mrf.mxu0
        %v1859 = vadd.f32 %v1737, %v1858
        %v1860 = vpop.f32.mrf.mxu0
        %v1861 = vadd.f32 %v1741, %v1860
        %v1862 = vpop.f32.mrf.mxu0
        %v1863 = vpop.f32.mrf.mxu0
        %1864 = vdwg.mxu0
        %v1865 = vxor.u32 %v1861, 2147483648
        %v1866 = vmul.f32 %v1865, 1.442695
        %v1867 = vpow.pop %v1866
        %v1868 = vadd.f32 %v1867, 1.0
        %v1869 = vrcp.pop %v1868
        %v1870 = vmul.f32 1.0, %v1869
        %v1871 = vmul.f32 %v1859, %v1870
        %v1872 = vpack.c.bf16 %v1871, %v1871
        %v1873 = vld [vmem:[#allocation15] sm:$0xf]
        %v1874 = vld [vmem:[#allocation15 + $0x4] sm:$0xf]
        %v1875 = vld [vmem:[#allocation15 + $0x8] sm:$0xf]
        %v1876 = vld [vmem:[#allocation15 + $0xc] sm:$0xf]
        %v1877 = vld [vmem:[#allocation15 + $0x10] sm:$0xf]
        %v1878 = vld [vmem:[#allocation15 + $0x14] sm:$0xf]
        %v1879 = vld [vmem:[#allocation15 + $0x18] sm:$0xf]
        %v1880 = vld [vmem:[#allocation15 + $0x1c] sm:$0xf]
        %v1881 = vld [vmem:[#allocation15 + $0x20] sm:$0xf]
        %v1882 = vld [vmem:[#allocation15 + $0x24] sm:$0xf]
        %v1883 = vld [vmem:[#allocation15 + $0x28] sm:$0xf]
        %v1884 = vld [vmem:[#allocation15 + $0x2c] sm:$0xf]
        %v1885 = vld [vmem:[#allocation15 + $0x30] sm:$0xf]
        %v1886 = vld [vmem:[#allocation15 + $0x34] sm:$0xf]
        %v1887 = vld [vmem:[#allocation15 + $0x38] sm:$0xf]
        %v1888 = vld [vmem:[#allocation15 + $0x3c] sm:$0xf]
        %v1889 = vld [vmem:[%s17] sm:$0x1]
        %v1891 = vlaneseq
        %v1892 = vshrl.u32 %v1891, 7
        %v1893 = vsub.s32 0, %v1892
        %v1894 = vrot.slane %v1889, %v1893
        %v1912 = vunpack.c.l.b16 %v1873
        %v1913 = vunpack.c.l.b16 %v1874
        %v1914 = vunpack.c.l.b16 %v1875
        %v1915 = vunpack.c.l.b16 %v1876
        %v1916 = vunpack.c.l.b16 %v1877
        %v1917 = vunpack.c.l.b16 %v1878
        %v1918 = vunpack.c.l.b16 %v1879
        %v1919 = vunpack.c.l.b16 %v1880
        %v1920 = vunpack.c.l.b16 %v1881
        %v1921 = vunpack.c.l.b16 %v1882
        %v1922 = vunpack.c.l.b16 %v1883
        %v1923 = vunpack.c.l.b16 %v1884
        %v1924 = vunpack.c.l.b16 %v1885
        %v1925 = vunpack.c.l.b16 %v1886
        %v1926 = vunpack.c.l.b16 %v1887
        %v1927 = vunpack.c.l.b16 %v1888
        %v1928 = vpack.c.b16 %v1913, %v1912
        %v1929 = vpack.c.b16 %v1915, %v1914
        %v1930 = vpack.c.b16 %v1917, %v1916
        %v1931 = vpack.c.b16 %v1919, %v1918
        %v1932 = vpack.c.b16 %v1921, %v1920
        %v1933 = vpack.c.b16 %v1923, %v1922
        %v1934 = vpack.c.b16 %v1925, %v1924
        %v1935 = vpack.c.b16 %v1927, %v1926
        %1944 = vmatprep.subr.bf16.mxu0 0
        %1945 = vmatpush1.bf16.msra.mxu0 %v1935
        %1946 = vmatprep.subr.bf16.mxu0 0
        %1947 = vmatpush1.bf16.msra.mxu0 %v1934
        %1948 = vmatprep.subr.bf16.mxu0 0
        %1949 = vmatpush1.bf16.msra.mxu0 %v1933
        %1950 = vmatprep.subr.bf16.mxu0 0
        %1951 = vmatpush1.bf16.msra.mxu0 %v1932
        %1952 = vmatprep.subr.bf16.mxu0 0
        %1953 = vmatpush1.bf16.msra.mxu0 %v1931
        %1954 = vmatprep.subr.bf16.mxu0 0
        %1955 = vmatpush1.bf16.msra.mxu0 %v1930
        %1956 = vmatprep.subr.bf16.mxu0 0
        %1957 = vmatpush1.bf16.msra.mxu0 %v1929
        %1958 = vmatprep.subr.bf16.mxu0 0
        %1959 = vmatpush1.bf16.msra.mxu0 %v1928
        %1960 = vmatprep.subr.bf16.mxu0 0
        %1961 = vmatpush2.bf16.msra.mxu0 0
        %1962 = vmatprep.subr.bf16.mxu0 0
        %1963 = vmatpush2.bf16.msra.mxu0 0
        %1964 = vmatprep.subr.bf16.mxu0 0
        %1965 = vmatpush2.bf16.msra.mxu0 0
        %1966 = vmatprep.subr.bf16.mxu0 0
        %1967 = vmatpush2.bf16.msra.mxu0 0
        %1968 = vmatprep.subr.bf16.mxu0 0
        %1969 = vmatpush2.bf16.msra.mxu0 0
        %1970 = vmatprep.subr.bf16.mxu0 0
        %1971 = vmatpush2.bf16.msra.mxu0 0
        %1972 = vmatprep.subr.bf16.mxu0 0
        %1973 = vmatpush2.bf16.msra.mxu0 0
        %1974 = vmatprep.subr.bf16.mxu0 0
        %1975 = vmatpush2.bf16.msra.mxu0 0
        %1976 = vmatprep.mubr.bf16.mxu0 0
        %1977 = vmatmul.mubr.bf16.gmra.mxu0 %v1872
        %v1978 = vpop.f32.mrf.mxu0
        %v1979 = vadd.f32 %v1894, %v1978
        %v1980 = vpop.f32.mrf.mxu0
        %v1981 = vpop.f32.mrf.mxu0
        %v1982 = vpop.f32.mrf.mxu0
        %1983 = vdwg.mxu0
        %v1984 = vadd.f32 %v1714, %v1979
        %1985 = vst [vmem:[%s717] sm:$0xff] %v1984
        %s1986 = sand.u32 %s437, 1
        %s1987 = scalar_lea.sflag [#allocation5], %s1986
        %s1988 = sand.u32 %s437, 1
        %s1989 = smul.addr %s1988, 8
        %s1990 = scalar_lea.vmem [#allocation17], %s1989
        // Predicated region
        $region125: #{tpu_custom_call.1} parent=91 // pred_check
          %p1991 = pneg %p447
        $region126: #{tpu_custom_call.1} parent=91 // pred_check_branch
          %1993 = sbr.rel (%p1991) target = $region128
        $region127: #{tpu_custom_call.1} parent=91 // pred_region
          %s1995 = ssub.s32 128, 128
          %1996 = vsyncadd %s1987, %s1995
          %s1997 = smul.addr %s41, 128
          %s1998 = scalar_lea.hbm %s18, %s1997
          %s2000 = sshll.u32 %s1990, 4
          %s2001 = int_to_ptr.vmem [resolvable:$true] %s2000
          %2003 = dma.vmem_to_hbm [thread:$0]  %s2001, 128, %s1998, %s1987
        $region128: #{tpu_custom_call.1} parent=91 // pred_fallthru
          _
      $region92: #{tpu_custom_call.1} parent=5 // pred_fallthru
        _
      %p2004 = scmp.le.s32.totalorder 2, %s36
      // Predicated region
      $region129: #{tpu_custom_call.1} parent=5 // pred_check
        %p2005 = pneg %p2004
      $region130: #{tpu_custom_call.1} parent=5 // pred_check_branch
        %2007 = sbr.rel (%p2005) target = $region132
      $region131: #{tpu_custom_call.1} parent=5 // pred_region
        %s2008 = ssub.s32 %s36, 2
        // Predicated region
        $region133: #{tpu_custom_call.1} parent=131 // pred_check
          %p2009 = pneg %p453
        $region134: #{tpu_custom_call.1} parent=131 // pred_check_branch
          %2011 = sbr.rel (%p2009) target = $region136
        $region135: #{tpu_custom_call.1} parent=131 // pred_region
          %s2012 = sand.u32 %s438, 1
          %s2013 = scalar_lea.sflag [#allocation5], %s2012
          %s2014 = sand.u32 %s438, 1
          %s2015 = smul.addr %s2014, 8
          %s2016 = scalar_lea.vmem [#allocation17], %s2015
          %2017 = dma.done %s2013, 128
        $region136: #{tpu_custom_call.1} parent=131 // pred_fallthru
          _
      $region132: #{tpu_custom_call.1} parent=5 // pred_fallthru
        _
    $region6: #{tpu_custom_call.1} parent=1 // loop_footer
      %s40 = sadd.s32 1, %s36
    $region7: #{tpu_custom_call.1} parent=1 // loop_footer_branch
      %35 = sbr.rel target = $region3
    $region8: #{tpu_custom_call.1} parent=1 // loop_exit
      _
    %2018 = vsyncpa [#allocation4], 1
    %s2019 = scalar_lea.sflag [#allocation4], 1
    %2020 = vsyncpa %s2019, 1
    %2021 = vsyncpa [#allocation7], 1
    %s2022 = scalar_lea.sflag [#allocation7], 1
    %2023 = vsyncpa %s2022, 1
    %2024 = vsyncpa [#allocation10], 1
    %2025 = vsyncpa [#allocation13], 1
    %2026 = vsyncpa [#allocation16], 1
    %2027 = vsyncpa [#allocation5], 1
    %s2028 = scalar_lea.sflag [#allocation5], 1
    %2029 = vsyncpa %s2028, 1

// kernel: tpu_custom_call.1
$region0: #{tpu_custom_call.1}
  #allocation0 [shape = 'u32[]', space=smem, size = 0x4, offset = 0x4, fixed_abs, tag = 'smem constant byte address 0x4 - core index']
  #allocation1 [shape = 'u32[144,128]{1,0:T(1,128)}', space=vmem, size = 0x12000, scoped, tag = 'internal scratch']
  #allocation2 [shape = 'f32[8,128]{1,0:T(8,128)}', space=vmem, size = 0x1000, scoped, tag = 'scratch operand']
  %s0 = inlined_call_operand.hbm [shape: f32[2,8,128], index: 0, kind: input, shape index: {}]
  %s1 = inlined_call_operand.hbm [shape: f32[2,16,128], index: 1, kind: input, shape index: {}]
  %s2 = inlined_call_operand.vmem [shape: f32[1,128], index: 2, kind: input, shape index: {}]
  %s3 = inlined_call_operand.vmem [shape: f32[1,128], index: 3, kind: input, shape index: {}]
  %s4 = inlined_call_operand.hbm [shape: bf16[128,128], index: 4, kind: input, shape index: {}]
  %s5 = inlined_call_operand.vmem [shape: f32[1,128], index: 5, kind: input, shape index: {}]
  %s6 = inlined_call_operand.hbm [shape: bf16[128,128], index: 6, kind: input, shape index: {}]
  %s7 = inlined_call_operand.vmem [shape: f32[1,128], index: 7, kind: input, shape index: {}]
  %s8 = inlined_call_operand.hbm [shape: bf16[128,128], index: 8, kind: input, shape index: {}]
  %s9 = inlined_call_operand.vmem [shape: f32[1,128], index: 9, kind: input, shape index: {}]
  %s10 = inlined_call_operand.hbm [shape: bf16[128,128], index: 10, kind: input, shape index: {}]
  %s11 = inlined_call_operand.vmem [shape: f32[1,128], index: 11, kind: input, shape index: {}]
  %s12 = inlined_call_operand.vmem [shape: f32[1,128], index: 12, kind: input, shape index: {}]
  %s13 = inlined_call_operand.vmem [shape: f32[1,128], index: 13, kind: input, shape index: {}]
  %s14 = inlined_call_operand.hbm [shape: bf16[128,256], index: 14, kind: input, shape index: {}]
  %s15 = inlined_call_operand.vmem [shape: f32[1,256], index: 15, kind: input, shape index: {}]
  %s16 = inlined_call_operand.hbm [shape: bf16[128,128], index: 16, kind: input, shape index: {}]
  %s17 = inlined_call_operand.vmem [shape: f32[1,128], index: 17, kind: input, shape index: {}]
  %s18 = inlined_call_operand.hbm [shape: f32[2,8,128], index: 18, kind: output, shape index: {}]
  %s19 = sld [smem:[#allocation0]]
  $region137: #{tpu_custom_call.1} parent=0
    _
  %s21 = ssub.s32 1, %s19
  %s22 = scalar_select 0, %s21, %s19
  $region1: #{tpu_custom_call.1} parent=0
    #allocation3 [shape = 'u8[8192]{0}', space=vmem, size = 0x2000, scoped, tag = 'input window, operand 0']
    #allocation4 [shape = 's32[2]{0}', space=sflag, size = 0x8, scoped, tag = 'scoped memory for tpu_custom_call.1']
    #allocation5 [shape = 's32[2]{0}', space=sflag, size = 0x8, scoped, tag = 'scoped memory for tpu_custom_call.1']
    #allocation6 [shape = 'u8[16384]{0}', space=vmem, size = 0x4000, scoped, tag = 'input window, operand 1']
    #allocation7 [shape = 's32[2]{0}', space=sflag, size = 0x8, scoped, tag = 'scoped memory for tpu_custom_call.1']
    #allocation8 [shape = 'u8[32768]{0}', space=vmem, size = 0x8000, scoped, tag = 'input window, operand 4, single buffered']
    #allocation9 [shape = 'u8[32768]{0}', space=vmem, size = 0x8000, scoped, tag = 'input window, operand 6, single buffered']
    #allocation10 [shape = 's32[1]{0}', space=sflag, size = 0x4, scoped, tag = 'scoped memory for tpu_custom_call.1']
    #allocation11 [shape = 'u8[32768]{0}', space=vmem, size = 0x8000, scoped, tag = 'input window, operand 8, single buffered']
    #allocation12 [shape = 'u8[32768]{0}', space=vmem, size = 0x8000, scoped, tag = 'input window, operand 10, single buffered']
    #allocation13 [shape = 's32[1]{0}', space=sflag, size = 0x4, scoped, tag = 'scoped memory for tpu_custom_call.1']
    #allocation14 [shape = 'u8[65536]{0}', space=vmem, size = 0x10000, scoped, tag = 'input window, operand 14, single buffered']
    #allocation15 [shape = 'u8[32768]{0}', space=vmem, size = 0x8000, scoped, tag = 'input window, operand 16, single buffered']
    #allocation16 [shape = 's32[1]{0}', space=sflag, size = 0x4, scoped, tag = 'scoped memory for tpu_custom_call.1']
    #allocation17 [shape = 'u8[8192]{0}', space=vmem, size = 0x2000, scoped, tag = 'output window, operand 0']
    %23 = vsyncpa [#allocation4], 0
    %s24 = scalar_lea.sflag [#allocation4], 1
    %25 = vsyncpa %s24, 0
    %26 = vsyncpa [#allocation7], 0
    %s27 = scalar_lea.sflag [#allocation7], 1
    %28 = vsyncpa %s27, 0
    %29 = vsyncpa [#allocation10], 0
    %30 = vsyncpa [#allocation13], 0
    %31 = vsyncpa [#allocation16], 0
    %32 = vsyncpa [#allocation5], 0
    %s33 = scalar_lea.sflag [#allocation5], 1
    %34 = vsyncpa %s33, 0
    loop: start=0, step=1, limit=4
    $region2: #{tpu_custom_call.1} parent=1 // loop_pre_header
      _
    $region3: #{tpu_custom_call.1} parent=1 // loop_header
      %s36 = sphi 0, %s40
      %p37 = scmp.ge.s32.totalorder %s36, 4
      %s46 = sphi 0, %s48
      %s49 = sphi 0, %s46
      %s50 = sphi 0, %s49
      %s66 = sphi 0, %s50
      %s72 = sphi 0, %s74
      %s75 = sphi 0, %s72
      %s76 = sphi 0, %s75
      %s92 = sphi 0, %s76
      %s96 = sphi 0, %s96
      %s98 = sphi 0, %s96
      %s99 = sphi 0, %s98
      %s113 = sphi 0, %s99
      %s117 = sphi 0, %s117
      %s119 = sphi 0, %s117
      %s120 = sphi 0, %s119
      %s134 = sphi 0, %s120
      %s138 = sphi 0, %s138
      %s140 = sphi 0, %s138
      %s141 = sphi 0, %s140
      %s155 = sphi 0, %s141
      %s159 = sphi 0, %s159
      %s161 = sphi 0, %s159
      %s162 = sphi 0, %s161
      %s176 = sphi 0, %s162
      %s180 = sphi 0, %s180
      %s182 = sphi 0, %s180
      %s183 = sphi 0, %s182
      %s197 = sphi 0, %s183
      %s201 = sphi 0, %s201
      %s203 = sphi 0, %s201
      %s204 = sphi 0, %s203
      %s218 = sphi 0, %s204
      %s222 = sphi 0, %s222
      %s224 = sphi 0, %s222
      %s225 = sphi 0, %s224
      %s239 = sphi 0, %s225
      %s243 = sphi 0, %s243
      %s245 = sphi 0, %s243
      %s246 = sphi 0, %s245
      %s260 = sphi 0, %s246
      %s264 = sphi 0, %s264
      %s266 = sphi 0, %s264
      %s267 = sphi 0, %s266
      %s281 = sphi 0, %s267
      %s285 = sphi 0, %s285
      %s287 = sphi 0, %s285
      %s288 = sphi 0, %s287
      %s302 = sphi 0, %s288
      %s306 = sphi 0, %s306
      %s308 = sphi 0, %s306
      %s309 = sphi 0, %s308
      %s323 = sphi 0, %s309
      %s327 = sphi 0, %s327
      %s329 = sphi 0, %s327
      %s330 = sphi 0, %s329
      %s344 = sphi 0, %s330
      %s348 = sphi 0, %s348
      %s350 = sphi 0, %s348
      %s351 = sphi 0, %s350
      %s365 = sphi 0, %s351
      %s369 = sphi 0, %s369
      %s371 = sphi 0, %s369
      %s372 = sphi 0, %s371
      %s386 = sphi 0, %s372
      %s390 = sphi 0, %s390
      %s392 = sphi 0, %s390
      %s393 = sphi 0, %s392
      %s407 = sphi 0, %s393
      %s411 = sphi 0, %s411
      %s413 = sphi 0, %s411
      %s414 = sphi 0, %s413
      %s428 = sphi 0, %s414
      %s434 = sphi 0, %s436
      %s437 = sphi 0, %s434
      %s438 = sphi 0, %s437
      %s454 = sphi 0, %s438
    $region4: #{tpu_custom_call.1} parent=1 // loop_header_branch
      %39 = sbr.rel (%p37) target = $region8
    $region5: #{tpu_custom_call.1} parent=1 // loop_body
      %s41 = ssub.s32 %s36, 1
      %s42 = ssub.s32 %s36, 2
      %s43 = sadd.s32 %s36, 1
      %s44 = ssub.s32 %s36, %s43
      %p45 = scmp.eq.s32.totalorder %s44, 0
      %s47 = sadd.s32 %s46, 1
      %s48 = scalar_select %p45, %s46, %s47
      %p51 = pneg %p45
      %p52 = scmp.eq.s32.totalorder %s36, 1
      %p53 = por %p51, %p52
      %p54 = scmp.ne.s32.totalorder %s46, %s49
      %p55 = scmp.eq.s32.totalorder %s36, 0
      %p56 = por %p54, %p55
      %p57 = scmp.ne.s32.totalorder %s46, %s49
      %p58 = scmp.eq.s32.totalorder %s41, 1
      %p59 = por %p57, %p58
      %p60 = scmp.ne.s32.totalorder %s49, %s50
      %p61 = scmp.eq.s32.totalorder %s41, 0
      %p62 = por %p60, %p61
      %p63 = scmp.ne.s32.totalorder %s49, %s50
      %p64 = scmp.eq.s32.totalorder %s42, 1
      %p65 = por %p63, %p64
      %p67 = scmp.ne.s32.totalorder %s50, %s66
      %p68 = scmp.eq.s32.totalorder %s42, 0
      %p69 = por %p67, %p68
      %s70 = ssub.s32 %s36, %s43
      %p71 = scmp.eq.s32.totalorder %s70, 0
      %s73 = sadd.s32 %s72, 1
      %s74 = scalar_select %p71, %s72, %s73
      %p77 = pneg %p71
      %p78 = scmp.eq.s32.totalorder %s36, 1
      %p79 = por %p77, %p78
      %p80 = scmp.ne.s32.totalorder %s72, %s75
      %p81 = scmp.eq.s32.totalorder %s36, 0
      %p82 = por %p80, %p81
      %p83 = scmp.ne.s32.totalorder %s72, %s75
      %p84 = scmp.eq.s32.totalorder %s41, 1
      %p85 = por %p83, %p84
      %p86 = scmp.ne.s32.totalorder %s75, %s76
      %p87 = scmp.eq.s32.totalorder %s41, 0
      %p88 = por %p86, %p87
      %p89 = scmp.ne.s32.totalorder %s75, %s76
      %p90 = scmp.eq.s32.totalorder %s42, 1
      %p91 = por %p89, %p90
      %p93 = scmp.ne.s32.totalorder %s76, %s92
      %p94 = scmp.eq.s32.totalorder %s42, 0
      %p95 = por %p93, %p94
      %s97 = sadd.s32 %s96, 1
      %p100 = scmp.eq.s32.totalorder %s36, 1
      %p101 = scmp.ne.s32.totalorder %s96, %s98
      %p102 = scmp.eq.s32.totalorder %s36, 0
      %p103 = por %p101, %p102
      %p104 = scmp.ne.s32.totalorder %s96, %s98
      %p105 = scmp.eq.s32.totalorder %s41, 1
      %p106 = por %p104, %p105
      %p107 = scmp.ne.s32.totalorder %s98, %s99
      %p108 = scmp.eq.s32.totalorder %s41, 0
      %p109 = por %p107, %p108
      %p110 = scmp.ne.s32.totalorder %s98, %s99
      %p111 = scmp.eq.s32.totalorder %s42, 1
      %p112 = por %p110, %p111
      %p114 = scmp.ne.s32.totalorder %s99, %s113
      %p115 = scmp.eq.s32.totalorder %s42, 0
      %p116 = por %p114, %p115
      %s118 = sadd.s32 %s117, 1
      %p121 = scmp.eq.s32.totalorder %s36, 1
      %p122 = scmp.ne.s32.totalorder %s117, %s119
      %p123 = scmp.eq.s32.totalorder %s36, 0
      %p124 = por %p122, %p123
      %p125 = scmp.ne.s32.totalorder %s117, %s119
      %p126 = scmp.eq.s32.totalorder %s41, 1
      %p127 = por %p125, %p126
      %p128 = scmp.ne.s32.totalorder %s119, %s120
      %p129 = scmp.eq.s32.totalorder %s41, 0
      %p130 = por %p128, %p129
      %p131 = scmp.ne.s32.totalorder %s119, %s120
      %p132 = scmp.eq.s32.totalorder %s42, 1
      %p133 = por %p131, %p132
      %p135 = scmp.ne.s32.totalorder %s120, %s134
      %p136 = scmp.eq.s32.totalorder %s42, 0
      %p137 = por %p135, %p136
      %s139 = sadd.s32 %s138, 1
      %p142 = scmp.eq.s32.totalorder %s36, 1
      %p143 = scmp.ne.s32.totalorder %s138, %s140
      %p144 = scmp.eq.s32.totalorder %s36, 0
      %p145 = por %p143, %p144
      %p146 = scmp.ne.s32.totalorder %s138, %s140
      %p147 = scmp.eq.s32.totalorder %s41, 1
      %p148 = por %p146, %p147
      %p149 = scmp.ne.s32.totalorder %s140, %s141
      %p150 = scmp.eq.s32.totalorder %s41, 0
      %p151 = por %p149, %p150
      %p152 = scmp.ne.s32.totalorder %s140, %s141
      %p153 = scmp.eq.s32.totalorder %s42, 1
      %p154 = por %p152, %p153
      %p156 = scmp.ne.s32.totalorder %s141, %s155
      %p157 = scmp.eq.s32.totalorder %s42, 0
      %p158 = por %p156, %p157
      %s160 = sadd.s32 %s159, 1
      %p163 = scmp.eq.s32.totalorder %s36, 1
      %p164 = scmp.ne.s32.totalorder %s159, %s161
      %p165 = scmp.eq.s32.totalorder %s36, 0
      %p166 = por %p164, %p165
      %p167 = scmp.ne.s32.totalorder %s159, %s161
      %p168 = scmp.eq.s32.totalorder %s41, 1
      %p169 = por %p167, %p168
      %p170 = scmp.ne.s32.totalorder %s161, %s162
      %p171 = scmp.eq.s32.totalorder %s41, 0
      %p172 = por %p170, %p171
      %p173 = scmp.ne.s32.totalorder %s161, %s162
      %p174 = scmp.eq.s32.totalorder %s42, 1
      %p175 = por %p173, %p174
      %p177 = scmp.ne.s32.totalorder %s162, %s176
      %p178 = scmp.eq.s32.totalorder %s42, 0
      %p179 = por %p177, %p178
      %s181 = sadd.s32 %s180, 1
      %p184 = scmp.eq.s32.totalorder %s36, 1
      %p185 = scmp.ne.s32.totalorder %s180, %s182
      %p186 = scmp.eq.s32.totalorder %s36, 0
      %p187 = por %p185, %p186
      %p188 = scmp.ne.s32.totalorder %s180, %s182
      %p189 = scmp.eq.s32.totalorder %s41, 1
      %p190 = por %p188, %p189
      %p191 = scmp.ne.s32.totalorder %s182, %s183
      %p192 = scmp.eq.s32.totalorder %s41, 0
      %p193 = por %p191, %p192
      %p194 = scmp.ne.s32.totalorder %s182, %s183
      %p195 = scmp.eq.s32.totalorder %s42, 1
      %p196 = por %p194, %p195
      %p198 = scmp.ne.s32.totalorder %s183, %s197
      %p199 = scmp.eq.s32.totalorder %s42, 0
      %p200 = por %p198, %p199
      %s202 = sadd.s32 %s201, 1
      %p205 = scmp.eq.s32.totalorder %s36, 1
      %p206 = scmp.ne.s32.totalorder %s201, %s203
      %p207 = scmp.eq.s32.totalorder %s36, 0
      %p208 = por %p206, %p207
      %p209 = scmp.ne.s32.totalorder %s201, %s203
      %p210 = scmp.eq.s32.totalorder %s41, 1
      %p211 = por %p209, %p210
      %p212 = scmp.ne.s32.totalorder %s203, %s204
      %p213 = scmp.eq.s32.totalorder %s41, 0
      %p214 = por %p212, %p213
      %p215 = scmp.ne.s32.totalorder %s203, %s204
      %p216 = scmp.eq.s32.totalorder %s42, 1
      %p217 = por %p215, %p216
      %p219 = scmp.ne.s32.totalorder %s204, %s218
      %p220 = scmp.eq.s32.totalorder %s42, 0
      %p221 = por %p219, %p220
      %s223 = sadd.s32 %s222, 1
      %p226 = scmp.eq.s32.totalorder %s36, 1
      %p227 = scmp.ne.s32.totalorder %s222, %s224
      %p228 = scmp.eq.s32.totalorder %s36, 0
      %p229 = por %p227, %p228
      %p230 = scmp.ne.s32.totalorder %s222, %s224
      %p231 = scmp.eq.s32.totalorder %s41, 1
      %p232 = por %p230, %p231
      %p233 = scmp.ne.s32.totalorder %s224, %s225
      %p234 = scmp.eq.s32.totalorder %s41, 0
      %p235 = por %p233, %p234
      %p236 = scmp.ne.s32.totalorder %s224, %s225
      %p237 = scmp.eq.s32.totalorder %s42, 1
      %p238 = por %p236, %p237
      %p240 = scmp.ne.s32.totalorder %s225, %s239
      %p241 = scmp.eq.s32.totalorder %s42, 0
      %p242 = por %p240, %p241
      %s244 = sadd.s32 %s243, 1
      %p247 = scmp.eq.s32.totalorder %s36, 1
      %p248 = scmp.ne.s32.totalorder %s243, %s245
      %p249 = scmp.eq.s32.totalorder %s36, 0
      %p250 = por %p248, %p249
      %p251 = scmp.ne.s32.totalorder %s243, %s245
      %p252 = scmp.eq.s32.totalorder %s41, 1
      %p253 = por %p251, %p252
      %p254 = scmp.ne.s32.totalorder %s245, %s246
      %p255 = scmp.eq.s32.totalorder %s41, 0
      %p256 = por %p254, %p255
      %p257 = scmp.ne.s32.totalorder %s245, %s246
      %p258 = scmp.eq.s32.totalorder %s42, 1
      %p259 = por %p257, %p258
      %p261 = scmp.ne.s32.totalorder %s246, %s260
      %p262 = scmp.eq.s32.totalorder %s42, 0
      %p263 = por %p261, %p262
      %s265 = sadd.s32 %s264, 1
      %p268 = scmp.eq.s32.totalorder %s36, 1
      %p269 = scmp.ne.s32.totalorder %s264, %s266
      %p270 = scmp.eq.s32.totalorder %s36, 0
      %p271 = por %p269, %p270
      %p272 = scmp.ne.s32.totalorder %s264, %s266
      %p273 = scmp.eq.s32.totalorder %s41, 1
      %p274 = por %p272, %p273
      %p275 = scmp.ne.s32.totalorder %s266, %s267
      %p276 = scmp.eq.s32.totalorder %s41, 0
      %p277 = por %p275, %p276
      %p278 = scmp.ne.s32.totalorder %s266, %s267
      %p279 = scmp.eq.s32.totalorder %s42, 1
      %p280 = por %p278, %p279
      %p282 = scmp.ne.s32.totalorder %s267, %s281
      %p283 = scmp.eq.s32.totalorder %s42, 0
      %p284 = por %p282, %p283
      %s286 = sadd.s32 %s285, 1
      %p289 = scmp.eq.s32.totalorder %s36, 1
      %p290 = scmp.ne.s32.totalorder %s285, %s287
      %p291 = scmp.eq.s32.totalorder %s36, 0
      %p292 = por %p290, %p291
      %p293 = scmp.ne.s32.totalorder %s285, %s287
      %p294 = scmp.eq.s32.totalorder %s41, 1
      %p295 = por %p293, %p294
      %p296 = scmp.ne.s32.totalorder %s287, %s288
      %p297 = scmp.eq.s32.totalorder %s41, 0
      %p298 = por %p296, %p297
      %p299 = scmp.ne.s32.totalorder %s287, %s288
      %p300 = scmp.eq.s32.totalorder %s42, 1
      %p301 = por %p299, %p300
      %p303 = scmp.ne.s32.totalorder %s288, %s302
      %p304 = scmp.eq.s32.totalorder %s42, 0
      %p305 = por %p303, %p304
      %s307 = sadd.s32 %s306, 1
      %p310 = scmp.eq.s32.totalorder %s36, 1
      %p311 = scmp.ne.s32.totalorder %s306, %s308
      %p312 = scmp.eq.s32.totalorder %s36, 0
      %p313 = por %p311, %p312
      %p314 = scmp.ne.s32.totalorder %s306, %s308
      %p315 = scmp.eq.s32.totalorder %s41, 1
      %p316 = por %p314, %p315
      %p317 = scmp.ne.s32.totalorder %s308, %s309
      %p318 = scmp.eq.s32.totalorder %s41, 0
      %p319 = por %p317, %p318
      %p320 = scmp.ne.s32.totalorder %s308, %s309
      %p321 = scmp.eq.s32.totalorder %s42, 1
      %p322 = por %p320, %p321
      %p324 = scmp.ne.s32.totalorder %s309, %s323
      %p325 = scmp.eq.s32.totalorder %s42, 0
      %p326 = por %p324, %p325
      %s328 = sadd.s32 %s327, 1
      %p331 = scmp.eq.s32.totalorder %s36, 1
      %p332 = scmp.ne.s32.totalorder %s327, %s329
      %p333 = scmp.eq.s32.totalorder %s36, 0
      %p334 = por %p332, %p333
      %p335 = scmp.ne.s32.totalorder %s327, %s329
      %p336 = scmp.eq.s32.totalorder %s41, 1
      %p337 = por %p335, %p336
      %p338 = scmp.ne.s32.totalorder %s329, %s330
      %p339 = scmp.eq.s32.totalorder %s41, 0
      %p340 = por %p338, %p339
      %p341 = scmp.ne.s32.totalorder %s329, %s330
      %p342 = scmp.eq.s32.totalorder %s42, 1
      %p343 = por %p341, %p342
      %p345 = scmp.ne.s32.totalorder %s330, %s344
      %p346 = scmp.eq.s32.totalorder %s42, 0
      %p347 = por %p345, %p346
      %s349 = sadd.s32 %s348, 1
      %p352 = scmp.eq.s32.totalorder %s36, 1
      %p353 = scmp.ne.s32.totalorder %s348, %s350
      %p354 = scmp.eq.s32.totalorder %s36, 0
      %p355 = por %p353, %p354
      %p356 = scmp.ne.s32.totalorder %s348, %s350
      %p357 = scmp.eq.s32.totalorder %s41, 1
      %p358 = por %p356, %p357
      %p359 = scmp.ne.s32.totalorder %s350, %s351
      %p360 = scmp.eq.s32.totalorder %s41, 0
      %p361 = por %p359, %p360
      %p362 = scmp.ne.s32.totalorder %s350, %s351
      %p363 = scmp.eq.s32.totalorder %s42, 1
      %p364 = por %p362, %p363
      %p366 = scmp.ne.s32.totalorder %s351, %s365
      %p367 = scmp.eq.s32.totalorder %s42, 0
      %p368 = por %p366, %p367
      %s370 = sadd.s32 %s369, 1
      %p373 = scmp.eq.s32.totalorder %s36, 1
      %p374 = scmp.ne.s32.totalorder %s369, %s371
      %p375 = scmp.eq.s32.totalorder %s36, 0
      %p376 = por %p374, %p375
      %p377 = scmp.ne.s32.totalorder %s369, %s371
      %p378 = scmp.eq.s32.totalorder %s41, 1
      %p379 = por %p377, %p378
      %p380 = scmp.ne.s32.totalorder %s371, %s372
      %p381 = scmp.eq.s32.totalorder %s41, 0
      %p382 = por %p380, %p381
      %p383 = scmp.ne.s32.totalorder %s371, %s372
      %p384 = scmp.eq.s32.totalorder %s42, 1
      %p385 = por %p383, %p384
      %p387 = scmp.ne.s32.totalorder %s372, %s386
      %p388 = scmp.eq.s32.totalorder %s42, 0
      %p389 = por %p387, %p388
      %s391 = sadd.s32 %s390, 1
      %p394 = scmp.eq.s32.totalorder %s36, 1
      %p395 = scmp.ne.s32.totalorder %s390, %s392
      %p396 = scmp.eq.s32.totalorder %s36, 0
      %p397 = por %p395, %p396
      %p398 = scmp.ne.s32.totalorder %s390, %s392
      %p399 = scmp.eq.s32.totalorder %s41, 1
      %p400 = por %p398, %p399
      %p401 = scmp.ne.s32.totalorder %s392, %s393
      %p402 = scmp.eq.s32.totalorder %s41, 0
      %p403 = por %p401, %p402
      %p404 = scmp.ne.s32.totalorder %s392, %s393
      %p405 = scmp.eq.s32.totalorder %s42, 1
      %p406 = por %p404, %p405
      %p408 = scmp.ne.s32.totalorder %s393, %s407
      %p409 = scmp.eq.s32.totalorder %s42, 0
      %p410 = por %p408, %p409
      %s412 = sadd.s32 %s411, 1
      %p415 = scmp.eq.s32.totalorder %s36, 1
      %p416 = scmp.ne.s32.totalorder %s411, %s413
      %p417 = scmp.eq.s32.totalorder %s36, 0
      %p418 = por %p416, %p417
      %p419 = scmp.ne.s32.totalorder %s411, %s413
      %p420 = scmp.eq.s32.totalorder %s41, 1
      %p421 = por %p419, %p420
      %p422 = scmp.ne.s32.totalorder %s413, %s414
      %p423 = scmp.eq.s32.totalorder %s41, 0
      %p424 = por %p422, %p423
      %p425 = scmp.ne.s32.totalorder %s413, %s414
      %p426 = scmp.eq.s32.totalorder %s42, 1
      %p427 = por %p425, %p426
      %p429 = scmp.ne.s32.totalorder %s414, %s428
      %p430 = scmp.eq.s32.totalorder %s42, 0
      %p431 = por %p429, %p430
      %s432 = ssub.s32 %s36, %s43
      %p433 = scmp.eq.s32.totalorder %s432, 0
      %s435 = sadd.s32 %s434, 1
      %s436 = scalar_select %p433, %s434, %s435
      %p439 = pneg %p433
      %p440 = scmp.eq.s32.totalorder %s36, 1
      %p441 = por %p439, %p440
      %p442 = scmp.ne.s32.totalorder %s434, %s437
      %p443 = scmp.eq.s32.totalorder %s36, 0
      %p444 = por %p442, %p443
      %p445 = scmp.ne.s32.totalorder %s434, %s437
      %p446 = scmp.eq.s32.totalorder %s41, 1
      %p447 = por %p445, %p446
      %p448 = scmp.ne.s32.totalorder %s437, %s438
      %p449 = scmp.eq.s32.totalorder %s41, 0
      %p450 = por %p448, %p449
      %p451 = scmp.ne.s32.totalorder %s437, %s438
      %p452 = scmp.eq.s32.totalorder %s42, 1
      %p453 = por %p451, %p452
      %p455 = scmp.ne.s32.totalorder %s438, %s454
      %p456 = scmp.eq.s32.totalorder %s42, 0
      %p457 = por %p455, %p456
      %p458 = scmp.le.s32.totalorder 1, %s36
      %p459 = scmp.lt.s32.totalorder %s36, 3
      %p460 = pnand %p458, %p459
      %p461 = pneg %p460
      // Predicated region
      $region9: #{tpu_custom_call.1} parent=5 // pred_check
        _
      $region10: #{tpu_custom_call.1} parent=5 // pred_check_branch
        %463 = sbr.rel (%p460) target = $region12
      $region11: #{tpu_custom_call.1} parent=5 // pred_region
        %s464 = ssub.s32 %s36, 1
        // Predicated region
        $region13: #{tpu_custom_call.1} parent=11 // pred_check
          %p465 = pneg %p109
        $region14: #{tpu_custom_call.1} parent=11 // pred_check_branch
          %467 = sbr.rel (%p465) target = $region16
        $region15: #{tpu_custom_call.1} parent=11 // pred_region
          _
        $region16: #{tpu_custom_call.1} parent=11 // pred_fallthru
          _
        // Predicated region
        $region17: #{tpu_custom_call.1} parent=11 // pred_check
          %p468 = pneg %p130
        $region18: #{tpu_custom_call.1} parent=11 // pred_check_branch
          %470 = sbr.rel (%p468) target = $region20
        $region19: #{tpu_custom_call.1} parent=11 // pred_region
          _
        $region20: #{tpu_custom_call.1} parent=11 // pred_fallthru
          _
        // Predicated region
        $region21: #{tpu_custom_call.1} parent=11 // pred_check
          %p471 = pneg %p151
        $region22: #{tpu_custom_call.1} parent=11 // pred_check_branch
          %473 = sbr.rel (%p471) target = $region24
        $region23: #{tpu_custom_call.1} parent=11 // pred_region
          %s475 = ssub.s32 1024, 1024
          %476 = vsyncadd [#allocation7], %s475
          %s477 = sshll.u32 [#allocation8], 4
          %s478 = int_to_ptr.vmem [resolvable:$true] %s477
          %483 = dma.hbm_to_vmem [thread:$0]  %s4, 1024, %s478, [#allocation7], 64, 64, 4
        $region24: #{tpu_custom_call.1} parent=11 // pred_fallthru
          _
        // Predicated region
        $region25: #{tpu_custom_call.1} parent=11 // pred_check
          %p484 = pneg %p172
        $region26: #{tpu_custom_call.1} parent=11 // pred_check_branch
          %486 = sbr.rel (%p484) target = $region28
        $region27: #{tpu_custom_call.1} parent=11 // pred_region
          _
        $region28: #{tpu_custom_call.1} parent=11 // pred_fallthru
          _
        // Predicated region
        $region29: #{tpu_custom_call.1} parent=11 // pred_check
          %p487 = pneg %p193
        $region30: #{tpu_custom_call.1} parent=11 // pred_check_branch
          %489 = sbr.rel (%p487) target = $region32
        $region31: #{tpu_custom_call.1} parent=11 // pred_region
          %s491 = ssub.s32 1024, 1024
          %492 = vsyncadd [#allocation10], %s491
          %s493 = sshll.u32 [#allocation9], 4
          %s494 = int_to_ptr.vmem [resolvable:$true] %s493
          %499 = dma.hbm_to_vmem [thread:$0]  %s6, 1024, %s494, [#allocation10], 64, 64, 4
        $region32: #{tpu_custom_call.1} parent=11 // pred_fallthru
          _
        // Predicated region
        $region33: #{tpu_custom_call.1} parent=11 // pred_check
          %p500 = pneg %p214
        $region34: #{tpu_custom_call.1} parent=11 // pred_check_branch
          %502 = sbr.rel (%p500) target = $region36
        $region35: #{tpu_custom_call.1} parent=11 // pred_region
          _
        $region36: #{tpu_custom_call.1} parent=11 // pred_fallthru
          _
        // Predicated region
        $region37: #{tpu_custom_call.1} parent=11 // pred_check
          %p503 = pneg %p235
        $region38: #{tpu_custom_call.1} parent=11 // pred_check_branch
          %505 = sbr.rel (%p503) target = $region40
        $region39: #{tpu_custom_call.1} parent=11 // pred_region
          %s507 = ssub.s32 1024, 1024
          %508 = vsyncadd [#allocation10], %s507
          %s509 = sshll.u32 [#allocation11], 4
          %s510 = int_to_ptr.vmem [resolvable:$true] %s509
          %515 = dma.hbm_to_vmem [thread:$0]  %s8, 1024, %s510, [#allocation10], 64, 64, 4
        $region40: #{tpu_custom_call.1} parent=11 // pred_fallthru
          _
        // Predicated region
        $region41: #{tpu_custom_call.1} parent=11 // pred_check
          %p516 = pneg %p256
        $region42: #{tpu_custom_call.1} parent=11 // pred_check_branch
          %518 = sbr.rel (%p516) target = $region44
        $region43: #{tpu_custom_call.1} parent=11 // pred_region
          _
        $region44: #{tpu_custom_call.1} parent=11 // pred_fallthru
          _
        // Predicated region
        $region45: #{tpu_custom_call.1} parent=11 // pred_check
          %p519 = pneg %p277
        $region46: #{tpu_custom_call.1} parent=11 // pred_check_branch
          %521 = sbr.rel (%p519) target = $region48
        $region47: #{tpu_custom_call.1} parent=11 // pred_region
          %s523 = ssub.s32 1024, 1024
          %524 = vsyncadd [#allocation13], %s523
          %s525 = sshll.u32 [#allocation12], 4
          %s526 = int_to_ptr.vmem [resolvable:$true] %s525
          %531 = dma.hbm_to_vmem [thread:$0]  %s10, 1024, %s526, [#allocation13], 64, 64, 4
        $region48: #{tpu_custom_call.1} parent=11 // pred_fallthru
          _
        // Predicated region
        $region49: #{tpu_custom_call.1} parent=11 // pred_check
          %p532 = pneg %p298
        $region50: #{tpu_custom_call.1} parent=11 // pred_check_branch
          %534 = sbr.rel (%p532) target = $region52
        $region51: #{tpu_custom_call.1} parent=11 // pred_region
          _
        $region52: #{tpu_custom_call.1} parent=11 // pred_fallthru
          _
        // Predicated region
        $region53: #{tpu_custom_call.1} parent=11 // pred_check
          %p535 = pneg %p319
        $region54: #{tpu_custom_call.1} parent=11 // pred_check_branch
          %537 = sbr.rel (%p535) target = $region56
        $region55: #{tpu_custom_call.1} parent=11 // pred_region
          _
        $region56: #{tpu_custom_call.1} parent=11 // pred_fallthru
          _
        // Predicated region
        $region57: #{tpu_custom_call.1} parent=11 // pred_check
          %p538 = pneg %p340
        $region58: #{tpu_custom_call.1} parent=11 // pred_check_branch
          %540 = sbr.rel (%p538) target = $region60
        $region59: #{tpu_custom_call.1} parent=11 // pred_region
          _
        $region60: #{tpu_custom_call.1} parent=11 // pred_fallthru
          _
        // Predicated region
        $region61: #{tpu_custom_call.1} parent=11 // pred_check
          %p541 = pneg %p361
        $region62: #{tpu_custom_call.1} parent=11 // pred_check_branch
          %543 = sbr.rel (%p541) target = $region64
        $region63: #{tpu_custom_call.1} parent=11 // pred_region
          %s545 = ssub.s32 2048, 2048
          %546 = vsyncadd [#allocation13], %s545
          %s547 = sshll.u32 [#allocation14], 4
          %s548 = int_to_ptr.vmem [resolvable:$true] %s547
          %553 = dma.hbm_to_vmem [thread:$0]  %s14, 2048, %s548, [#allocation13], 128, 128, 8
        $region64: #{tpu_custom_call.1} parent=11 // pred_fallthru
          _
        // Predicated region
        $region65: #{tpu_custom_call.1} parent=11 // pred_check
          %p554 = pneg %p382
        $region66: #{tpu_custom_call.1} parent=11 // pred_check_branch
          %556 = sbr.rel (%p554) target = $region68
        $region67: #{tpu_custom_call.1} parent=11 // pred_region
          _
        $region68: #{tpu_custom_call.1} parent=11 // pred_fallthru
          _
        // Predicated region
        $region69: #{tpu_custom_call.1} parent=11 // pred_check
          %p557 = pneg %p403
        $region70: #{tpu_custom_call.1} parent=11 // pred_check_branch
          %559 = sbr.rel (%p557) target = $region72
        $region71: #{tpu_custom_call.1} parent=11 // pred_region
          %s561 = ssub.s32 1024, 1024
          %562 = vsyncadd [#allocation16], %s561
          %s563 = sshll.u32 [#allocation15], 4
          %s564 = int_to_ptr.vmem [resolvable:$true] %s563
          %569 = dma.hbm_to_vmem [thread:$0]  %s16, 1024, %s564, [#allocation16], 64, 64, 4
        $region72: #{tpu_custom_call.1} parent=11 // pred_fallthru
          _
        // Predicated region
        $region73: #{tpu_custom_call.1} parent=11 // pred_check
          %p570 = pneg %p424
        $region74: #{tpu_custom_call.1} parent=11 // pred_check_branch
          %572 = sbr.rel (%p570) target = $region76
        $region75: #{tpu_custom_call.1} parent=11 // pred_region
          _
        $region76: #{tpu_custom_call.1} parent=11 // pred_fallthru
          _
      $region12: #{tpu_custom_call.1} parent=5 // pred_fallthru
        _
      %p573 = scmp.lt.s32.totalorder %s36, 2
      // Predicated region
      $region77: #{tpu_custom_call.1} parent=5 // pred_check
        %p574 = pneg %p573
      $region78: #{tpu_custom_call.1} parent=5 // pred_check_branch
        %576 = sbr.rel (%p574) target = $region80
      $region79: #{tpu_custom_call.1} parent=5 // pred_region
        // Predicated region
        $region81: #{tpu_custom_call.1} parent=79 // pred_check
          %p577 = pneg %p56
        $region82: #{tpu_custom_call.1} parent=79 // pred_check_branch
          %579 = sbr.rel (%p577) target = $region84
        $region83: #{tpu_custom_call.1} parent=79 // pred_region
          %s580 = sand.u32 %s46, 1
          %s581 = scalar_lea.sflag [#allocation4], %s580
          %s582 = sand.u32 %s46, 1
          %s583 = smul.addr %s582, 8
          %s584 = scalar_lea.vmem [#allocation3], %s583
          %s586 = ssub.s32 128, 128
          %587 = vsyncadd %s581, %s586
          %s588 = smul.addr %s36, 128
          %s589 = scalar_lea.hbm %s0, %s588
          %s591 = sshll.u32 %s584, 4
          %s592 = int_to_ptr.vmem [resolvable:$true] %s591
          %594 = dma.hbm_to_vmem [thread:$0]  %s589, 128, %s592, %s581
        $region84: #{tpu_custom_call.1} parent=79 // pred_fallthru
          _
        // Predicated region
        $region85: #{tpu_custom_call.1} parent=79 // pred_check
          %p595 = pneg %p82
        $region86: #{tpu_custom_call.1} parent=79 // pred_check_branch
          %597 = sbr.rel (%p595) target = $region88
        $region87: #{tpu_custom_call.1} parent=79 // pred_region
          %s598 = sand.u32 %s36, 1
          %s599 = scalar_lea.sflag [#allocation7], %s598
          %s600 = sand.u32 %s72, 1
          %s601 = smul.addr %s600, 16
          %s602 = scalar_lea.vmem [#allocation6], %s601
          %s604 = ssub.s32 256, 256
          %605 = vsyncadd %s599, %s604
          %s606 = smul.addr %s36, 2
          %s607 = smul.addr %s606, 128
          %s608 = scalar_lea.hbm %s1, %s607
          %s609 = sshll.u32 %s602, 4
          %s610 = int_to_ptr.vmem [resolvable:$true] %s609
          %615 = dma.hbm_to_vmem [thread:$0]  %s608, 256, %s610, %s599, 128, 128, 8
        $region88: #{tpu_custom_call.1} parent=79 // pred_fallthru
          _
      $region80: #{tpu_custom_call.1} parent=5 // pred_fallthru
        _
      %p616 = scmp.le.s32.totalorder 1, %s36
      %p617 = scmp.lt.s32.totalorder %s36, 3
      %p618 = pnand %p616, %p617
      %p619 = pneg %p618
      // Predicated region
      $region89: #{tpu_custom_call.1} parent=5 // pred_check
        _
      $region90: #{tpu_custom_call.1} parent=5 // pred_check_branch
        %621 = sbr.rel (%p618) target = $region92
      $region91: #{tpu_custom_call.1} parent=5 // pred_region
        %s622 = ssub.s32 %s36, 1
        %s623 = sand.u32 %s49, 1
        %s624 = scalar_lea.sflag [#allocation4], %s623
        %s625 = sand.u32 %s49, 1
        %s626 = smul.addr %s625, 8
        %s627 = scalar_lea.vmem [#allocation3], %s626
        // Predicated region
        $region93: #{tpu_custom_call.1} parent=91 // pred_check
          %p628 = pneg %p62
        $region94: #{tpu_custom_call.1} parent=91 // pred_check_branch
          %630 = sbr.rel (%p628) target = $region96
        $region95: #{tpu_custom_call.1} parent=91 // pred_region
          %631 = dma.done %s624, 128
        $region96: #{tpu_custom_call.1} parent=91 // pred_fallthru
          _
        %s632 = sand.u32 %s41, 1
        %s633 = scalar_lea.sflag [#allocation7], %s632
        %s634 = sand.u32 %s75, 1
        %s635 = smul.addr %s634, 16
        %s636 = scalar_lea.vmem [#allocation6], %s635
        // Predicated region
        $region97: #{tpu_custom_call.1} parent=91 // pred_check
          %p637 = pneg %p88
        $region98: #{tpu_custom_call.1} parent=91 // pred_check_branch
          %639 = sbr.rel (%p637) target = $region100
        $region99: #{tpu_custom_call.1} parent=91 // pred_region
          %640 = dma.done %s633, 256
        $region100: #{tpu_custom_call.1} parent=91 // pred_fallthru
          _
        // Predicated region
        $region101: #{tpu_custom_call.1} parent=91 // pred_check
          %p641 = pneg %p151
        $region102: #{tpu_custom_call.1} parent=91 // pred_check_branch
          %643 = sbr.rel (%p641) target = $region104
        $region103: #{tpu_custom_call.1} parent=91 // pred_region
          %644 = dma.done [#allocation7], 1024
        $region104: #{tpu_custom_call.1} parent=91 // pred_fallthru
          _
        // Predicated region
        $region105: #{tpu_custom_call.1} parent=91 // pred_check
          %p645 = pneg %p193
        $region106: #{tpu_custom_call.1} parent=91 // pred_check_branch
          %647 = sbr.rel (%p645) target = $region108
        $region107: #{tpu_custom_call.1} parent=91 // pred_region
          %648 = dma.done [#allocation10], 1024
        $region108: #{tpu_custom_call.1} parent=91 // pred_fallthru
          _
        // Predicated region
        $region109: #{tpu_custom_call.1} parent=91 // pred_check
          %p649 = pneg %p235
        $region110: #{tpu_custom_call.1} parent=91 // pred_check_branch
          %651 = sbr.rel (%p649) target = $region112
        $region111: #{tpu_custom_call.1} parent=91 // pred_region
          %652 = dma.done [#allocation10], 1024
        $region112: #{tpu_custom_call.1} parent=91 // pred_fallthru
          _
        // Predicated region
        $region113: #{tpu_custom_call.1} parent=91 // pred_check
          %p653 = pneg %p277
        $region114: #{tpu_custom_call.1} parent=91 // pred_check_branch
          %655 = sbr.rel (%p653) target = $region116
        $region115: #{tpu_custom_call.1} parent=91 // pred_region
          %656 = dma.done [#allocation13], 1024
        $region116: #{tpu_custom_call.1} parent=91 // pred_fallthru
          _
        // Predicated region
        $region117: #{tpu_custom_call.1} parent=91 // pred_check
          %p657 = pneg %p361
        $region118: #{tpu_custom_call.1} parent=91 // pred_check_branch
          %659 = sbr.rel (%p657) target = $region120
        $region119: #{tpu_custom_call.1} parent=91 // pred_region
          %660 = dma.done [#allocation13], 2048
        $region120: #{tpu_custom_call.1} parent=91 // pred_fallthru
          _
        // Predicated region
        $region121: #{tpu_custom_call.1} parent=91 // pred_check
          %p661 = pneg %p403
        $region122: #{tpu_custom_call.1} parent=91 // pred_check_branch
          %663 = sbr.rel (%p661) target = $region124
        $region123: #{tpu_custom_call.1} parent=91 // pred_region
          %664 = dma.done [#allocation16], 1024
        $region124: #{tpu_custom_call.1} parent=91 // pred_fallthru
          _
        %s665 = sand.u32 %s49, 1
        %s666 = scalar_lea.sflag [#allocation4], %s665
        %s667 = sand.u32 %s49, 1
        %s668 = smul.addr %s667, 8
        %s669 = scalar_lea.vmem [#allocation3], %s668
        %p670 = pneg %p62
        %p671 = pneg %p59
        %s672 = sand.u32 %s41, 1
        %s673 = scalar_lea.sflag [#allocation7], %s672
        %s674 = sand.u32 %s75, 1
        %s675 = smul.addr %s674, 16
        %s676 = scalar_lea.vmem [#allocation6], %s675
        %p677 = pneg %p88
        %p678 = pneg %p85
        %p679 = pneg %p109
        %p680 = pneg %p106
        %p681 = pneg %p130
        %p682 = pneg %p127
        %p683 = pneg %p151
        %p684 = pneg %p148
        %p685 = pneg %p172
        %p686 = pneg %p169
        %p687 = pneg %p193
        %p688 = pneg %p190
        %p689 = pneg %p214
        %p690 = pneg %p211
        %p691 = pneg %p235
        %p692 = pneg %p232
        %p693 = pneg %p256
        %p694 = pneg %p253
        %p695 = pneg %p277
        %p696 = pneg %p274
        %p697 = pneg %p298
        %p698 = pneg %p295
        %p699 = pneg %p319
        %p700 = pneg %p316
        %p701 = pneg %p340
        %p702 = pneg %p337
        %p703 = pneg %p361
        %p704 = pneg %p358
        %p705 = pneg %p382
        %p706 = pneg %p379
        %p707 = pneg %p403
        %p708 = pneg %p400
        %p709 = pneg %p424
        %p710 = pneg %p421
        %p711 = pneg %p450
        %p712 = pneg %p447
        %s713 = sand.u32 %s437, 1
        %s714 = scalar_lea.sflag [#allocation5], %s713
        %s715 = sand.u32 %s437, 1
        %s716 = smul.addr %s715, 8
        %s717 = scalar_lea.vmem [#allocation17], %s716
        %v719 = vld [vmem:[%s627] sm:$0xff]
        %v720 = vld [vmem:[%s636] sm:$0xff]
        %v721 = vld [vmem:[%s636 + $0x8] sm:$0xff]
        %v722 = vld [vmem:[%s2] sm:$0x1]
        %v723 = vld [vmem:[%s3] sm:$0x1]
        %724 = vadd.xlane.f32.xlu0 %v719
        %v725 = vpop.xlane.xlu0 %724
        %v726 = vrcp.pop 128.0
        %v727 = vmul.f32 %v725, %v726
        %v728 = vsub.f32 %v719, %v727
        %v729 = vmul.f32 %v728, %v728
        %730 = vadd.xlane.f32.xlu0 %v729
        %v731 = vpop.xlane.xlu0 %730
        %v732 = vmul.f32 %v731, %v726
        %v733 = vadd.f32 %v732, 1e-05
        %v734 = vrsqrt.pop %v733
        %v735 = vmul.f32 %v728, %v734
        %v737 = vlaneseq
        %v738 = vshrl.u32 %v737, 7
        %v739 = vsub.s32 0, %v738
        %v740 = vrot.slane %v722, %v739
        %v742 = vmul.f32 %v735, %v740
        %v744 = vlaneseq
        %v745 = vshrl.u32 %v744, 7
        %v746 = vsub.s32 0, %v745
        %v747 = vrot.slane %v723, %v746
        %v749 = vadd.f32 %v742, %v747
        %v750 = vpack.c.bf16 %v749, %v749
        %v751 = vpack.c.bf16 %v721, %v720
        %v752 = vld [vmem:[#allocation8] sm:$0xf]
        %v753 = vld [vmem:[#allocation8 + $0x4] sm:$0xf]
        %v754 = vld [vmem:[#allocation8 + $0x8] sm:$0xf]
        %v755 = vld [vmem:[#allocation8 + $0xc] sm:$0xf]
        %v756 = vld [vmem:[#allocation8 + $0x10] sm:$0xf]
        %v757 = vld [vmem:[#allocation8 + $0x14] sm:$0xf]
        %v758 = vld [vmem:[#allocation8 + $0x18] sm:$0xf]
        %v759 = vld [vmem:[#allocation8 + $0x1c] sm:$0xf]
        %v760 = vld [vmem:[#allocation8 + $0x20] sm:$0xf]
        %v761 = vld [vmem:[#allocation8 + $0x24] sm:$0xf]
        %v762 = vld [vmem:[#allocation8 + $0x28] sm:$0xf]
        %v763 = vld [vmem:[#allocation8 + $0x2c] sm:$0xf]
        %v764 = vld [vmem:[#allocation8 + $0x30] sm:$0xf]
        %v765 = vld [vmem:[#allocation8 + $0x34] sm:$0xf]
        %v766 = vld [vmem:[#allocation8 + $0x38] sm:$0xf]
        %v767 = vld [vmem:[#allocation8 + $0x3c] sm:$0xf]
        %v768 = vld [vmem:[%s5] sm:$0x1]
        %v770 = vlaneseq
        %v771 = vshrl.u32 %v770, 7
        %v772 = vsub.s32 0, %v771
        %v773 = vrot.slane %v768, %v772
        %v791 = vunpack.c.l.b16 %v752
        %v792 = vunpack.c.l.b16 %v753
        %v793 = vunpack.c.l.b16 %v754
        %v794 = vunpack.c.l.b16 %v755
        %v795 = vunpack.c.l.b16 %v756
        %v796 = vunpack.c.l.b16 %v757
        %v797 = vunpack.c.l.b16 %v758
        %v798 = vunpack.c.l.b16 %v759
        %v799 = vunpack.c.l.b16 %v760
        %v800 = vunpack.c.l.b16 %v761
        %v801 = vunpack.c.l.b16 %v762
        %v802 = vunpack.c.l.b16 %v763
        %v803 = vunpack.c.l.b16 %v764
        %v804 = vunpack.c.l.b16 %v765
        %v805 = vunpack.c.l.b16 %v766
        %v806 = vunpack.c.l.b16 %v767
        %v807 = vpack.c.b16 %v792, %v791
        %v808 = vpack.c.b16 %v794, %v793
        %v809 = vpack.c.b16 %v796, %v795
        %v810 = vpack.c.b16 %v798, %v797
        %v811 = vpack.c.b16 %v800, %v799
        %v812 = vpack.c.b16 %v802, %v801
        %v813 = vpack.c.b16 %v804, %v803
        %v814 = vpack.c.b16 %v806, %v805
        %823 = vmatprep.subr.bf16.mxu0 0
        %824 = vmatpush1.bf16.msra.mxu0 %v814
        %825 = vmatprep.subr.bf16.mxu0 0
        %826 = vmatpush1.bf16.msra.mxu0 %v813
        %827 = vmatprep.subr.bf16.mxu0 0
        %828 = vmatpush1.bf16.msra.mxu0 %v812
        %829 = vmatprep.subr.bf16.mxu0 0
        %830 = vmatpush1.bf16.msra.mxu0 %v811
        %831 = vmatprep.subr.bf16.mxu0 0
        %832 = vmatpush1.bf16.msra.mxu0 %v810
        %833 = vmatprep.subr.bf16.mxu0 0
        %834 = vmatpush1.bf16.msra.mxu0 %v809
        %835 = vmatprep.subr.bf16.mxu0 0
        %836 = vmatpush1.bf16.msra.mxu0 %v808
        %837 = vmatprep.subr.bf16.mxu0 0
        %838 = vmatpush1.bf16.msra.mxu0 %v807
        %839 = vmatprep.subr.bf16.mxu0 0
        %840 = vmatpush2.bf16.msra.mxu0 0
        %841 = vmatprep.subr.bf16.mxu0 0
        %842 = vmatpush2.bf16.msra.mxu0 0
        %843 = vmatprep.subr.bf16.mxu0 0
        %844 = vmatpush2.bf16.msra.mxu0 0
        %845 = vmatprep.subr.bf16.mxu0 0
        %846 = vmatpush2.bf16.msra.mxu0 0
        %847 = vmatprep.subr.bf16.mxu0 0
        %848 = vmatpush2.bf16.msra.mxu0 0
        %849 = vmatprep.subr.bf16.mxu0 0
        %850 = vmatpush2.bf16.msra.mxu0 0
        %851 = vmatprep.subr.bf16.mxu0 0
        %852 = vmatpush2.bf16.msra.mxu0 0
        %853 = vmatprep.subr.bf16.mxu0 0
        %854 = vmatpush2.bf16.msra.mxu0 0
        %855 = vmatprep.mubr.bf16.mxu0 0
        %856 = vmatmul.mubr.bf16.gmra.mxu0 %v750
        %v857 = vpop.f32.mrf.mxu0
        %v858 = vadd.f32 %v773, %v857
        %v859 = vpop.f32.mrf.mxu0
        %v860 = vpop.f32.mrf.mxu0
        %v861 = vpop.f32.mrf.mxu0
        %862 = vdwg.mxu0
        %v863 = vld [vmem:[#allocation9] sm:$0xf]
        %v864 = vld [vmem:[#allocation9 + $0x4] sm:$0xf]
        %v865 = vld [vmem:[#allocation9 + $0x8] sm:$0xf]
        %v866 = vld [vmem:[#allocation9 + $0xc] sm:$0xf]
        %v867 = vld [vmem:[#allocation9 + $0x10] sm:$0xf]
        %v868 = vld [vmem:[#allocation9 + $0x14] sm:$0xf]
        %v869 = vld [vmem:[#allocation9 + $0x18] sm:$0xf]
        %v870 = vld [vmem:[#allocation9 + $0x1c] sm:$0xf]
        %v871 = vld [vmem:[#allocation9 + $0x20] sm:$0xf]
        %v872 = vld [vmem:[#allocation9 + $0x24] sm:$0xf]
        %v873 = vld [vmem:[#allocation9 + $0x28] sm:$0xf]
        %v874 = vld [vmem:[#allocation9 + $0x2c] sm:$0xf]
        %v875 = vld [vmem:[#allocation9 + $0x30] sm:$0xf]
        %v876 = vld [vmem:[#allocation9 + $0x34] sm:$0xf]
        %v877 = vld [vmem:[#allocation9 + $0x38] sm:$0xf]
        %v878 = vld [vmem:[#allocation9 + $0x3c] sm:$0xf]
        %v879 = vld [vmem:[%s7] sm:$0x1]
        %v881 = vlaneseq
        %v882 = vshrl.u32 %v881, 7
        %v883 = vsub.s32 0, %v882
        %v884 = vrot.slane %v879, %v883
        %v902 = vunpack.c.l.b16 %v863
        %v903 = vunpack.c.l.b16 %v864
        %v904 = vunpack.c.l.b16 %v865
        %v905 = vunpack.c.l.b16 %v866
        %v906 = vunpack.c.l.b16 %v867
        %v907 = vunpack.c.l.b16 %v868
        %v908 = vunpack.c.l.b16 %v869
        %v909 = vunpack.c.l.b16 %v870
        %v910 = vunpack.c.l.b16 %v871
        %v911 = vunpack.c.l.b16 %v872
        %v912 = vunpack.c.l.b16 %v873
        %v913 = vunpack.c.l.b16 %v874
        %v914 = vunpack.c.l.b16 %v875
        %v915 = vunpack.c.l.b16 %v876
        %v916 = vunpack.c.l.b16 %v877
        %v917 = vunpack.c.l.b16 %v878
        %v918 = vpack.c.b16 %v903, %v902
        %v919 = vpack.c.b16 %v905, %v904
        %v920 = vpack.c.b16 %v907, %v906
        %v921 = vpack.c.b16 %v909, %v908
        %v922 = vpack.c.b16 %v911, %v910
        %v923 = vpack.c.b16 %v913, %v912
        %v924 = vpack.c.b16 %v915, %v914
        %v925 = vpack.c.b16 %v917, %v916
        %934 = vmatprep.subr.bf16.mxu0 0
        %935 = vmatpush1.bf16.msra.mxu0 %v925
        %936 = vmatprep.subr.bf16.mxu0 0
        %937 = vmatpush1.bf16.msra.mxu0 %v924
        %938 = vmatprep.subr.bf16.mxu0 0
        %939 = vmatpush1.bf16.msra.mxu0 %v923
        %940 = vmatprep.subr.bf16.mxu0 0
        %941 = vmatpush1.bf16.msra.mxu0 %v922
        %942 = vmatprep.subr.bf16.mxu0 0
        %943 = vmatpush1.bf16.msra.mxu0 %v921
        %944 = vmatprep.subr.bf16.mxu0 0
        %945 = vmatpush1.bf16.msra.mxu0 %v920
        %946 = vmatprep.subr.bf16.mxu0 0
        %947 = vmatpush1.bf16.msra.mxu0 %v919
        %948 = vmatprep.subr.bf16.mxu0 0
        %949 = vmatpush1.bf16.msra.mxu0 %v918
        %950 = vmatprep.subr.bf16.mxu0 0
        %951 = vmatpush2.bf16.msra.mxu0 0
        %952 = vmatprep.subr.bf16.mxu0 0
        %953 = vmatpush2.bf16.msra.mxu0 0
        %954 = vmatprep.subr.bf16.mxu0 0
        %955 = vmatpush2.bf16.msra.mxu0 0
        %956 = vmatprep.subr.bf16.mxu0 0
        %957 = vmatpush2.bf16.msra.mxu0 0
        %958 = vmatprep.subr.bf16.mxu0 0
        %959 = vmatpush2.bf16.msra.mxu0 0
        %960 = vmatprep.subr.bf16.mxu0 0
        %961 = vmatpush2.bf16.msra.mxu0 0
        %962 = vmatprep.subr.bf16.mxu0 0
        %963 = vmatpush2.bf16.msra.mxu0 0
        %964 = vmatprep.subr.bf16.mxu0 0
        %965 = vmatpush2.bf16.msra.mxu0 0
        %966 = vmatprep.mubr.bf16.mxu0 0
        %967 = vmatmul.mubr.bf16.gmra.mxu0 %v751
        %v968 = vpop.f32.mrf.mxu0
        %v969 = vadd.f32 %v884, %v968
        %v970 = vpop.f32.mrf.mxu0
        %v971 = vpop.f32.mrf.mxu0
        %v972 = vadd.f32 %v884, %v971
        %v973 = vpop.f32.mrf.mxu0
        %974 = vdwg.mxu0
        %v975 = vld [vmem:[#allocation11] sm:$0xf]
        %v976 = vld [vmem:[#allocation11 + $0x4] sm:$0xf]
        %v977 = vld [vmem:[#allocation11 + $0x8] sm:$0xf]
        %v978 = vld [vmem:[#allocation11 + $0xc] sm:$0xf]
        %v979 = vld [vmem:[#allocation11 + $0x10] sm:$0xf]
        %v980 = vld [vmem:[#allocation11 + $0x14] sm:$0xf]
        %v981 = vld [vmem:[#allocation11 + $0x18] sm:$0xf]
        %v982 = vld [vmem:[#allocation11 + $0x1c] sm:$0xf]
        %v983 = vld [vmem:[#allocation11 + $0x20] sm:$0xf]
        %v984 = vld [vmem:[#allocation11 + $0x24] sm:$0xf]
        %v985 = vld [vmem:[#allocation11 + $0x28] sm:$0xf]
        %v986 = vld [vmem:[#allocation11 + $0x2c] sm:$0xf]
        %v987 = vld [vmem:[#allocation11 + $0x30] sm:$0xf]
        %v988 = vld [vmem:[#allocation11 + $0x34] sm:$0xf]
        %v989 = vld [vmem:[#allocation11 + $0x38] sm:$0xf]
        %v990 = vld [vmem:[#allocation11 + $0x3c] sm:$0xf]
        %v991 = vld [vmem:[%s9] sm:$0x1]
        %v993 = vlaneseq
        %v994 = vshrl.u32 %v993, 7
        %v995 = vsub.s32 0, %v994
        %v996 = vrot.slane %v991, %v995
        %v1014 = vunpack.c.l.b16 %v975
        %v1015 = vunpack.c.l.b16 %v976
        %v1016 = vunpack.c.l.b16 %v977
        %v1017 = vunpack.c.l.b16 %v978
        %v1018 = vunpack.c.l.b16 %v979
        %v1019 = vunpack.c.l.b16 %v980
        %v1020 = vunpack.c.l.b16 %v981
        %v1021 = vunpack.c.l.b16 %v982
        %v1022 = vunpack.c.l.b16 %v983
        %v1023 = vunpack.c.l.b16 %v984
        %v1024 = vunpack.c.l.b16 %v985
        %v1025 = vunpack.c.l.b16 %v986
        %v1026 = vunpack.c.l.b16 %v987
        %v1027 = vunpack.c.l.b16 %v988
        %v1028 = vunpack.c.l.b16 %v989
        %v1029 = vunpack.c.l.b16 %v990
        %v1030 = vpack.c.b16 %v1015, %v1014
        %v1031 = vpack.c.b16 %v1017, %v1016
        %v1032 = vpack.c.b16 %v1019, %v1018
        %v1033 = vpack.c.b16 %v1021, %v1020
        %v1034 = vpack.c.b16 %v1023, %v1022
        %v1035 = vpack.c.b16 %v1025, %v1024
        %v1036 = vpack.c.b16 %v1027, %v1026
        %v1037 = vpack.c.b16 %v1029, %v1028
        %1046 = vmatprep.subr.bf16.mxu0 0
        %1047 = vmatpush1.bf16.msra.mxu0 %v1037
        %1048 = vmatprep.subr.bf16.mxu0 0
        %1049 = vmatpush1.bf16.msra.mxu0 %v1036
        %1050 = vmatprep.subr.bf16.mxu0 0
        %1051 = vmatpush1.bf16.msra.mxu0 %v1035
        %1052 = vmatprep.subr.bf16.mxu0 0
        %1053 = vmatpush1.bf16.msra.mxu0 %v1034
        %1054 = vmatprep.subr.bf16.mxu0 0
        %1055 = vmatpush1.bf16.msra.mxu0 %v1033
        %1056 = vmatprep.subr.bf16.mxu0 0
        %1057 = vmatpush1.bf16.msra.mxu0 %v1032
        %1058 = vmatprep.subr.bf16.mxu0 0
        %1059 = vmatpush1.bf16.msra.mxu0 %v1031
        %1060 = vmatprep.subr.bf16.mxu0 0
        %1061 = vmatpush1.bf16.msra.mxu0 %v1030
        %1062 = vmatprep.subr.bf16.mxu0 0
        %1063 = vmatpush2.bf16.msra.mxu0 0
        %1064 = vmatprep.subr.bf16.mxu0 0
        %1065 = vmatpush2.bf16.msra.mxu0 0
        %1066 = vmatprep.subr.bf16.mxu0 0
        %1067 = vmatpush2.bf16.msra.mxu0 0
        %1068 = vmatprep.subr.bf16.mxu0 0
        %1069 = vmatpush2.bf16.msra.mxu0 0
        %1070 = vmatprep.subr.bf16.mxu0 0
        %1071 = vmatpush2.bf16.msra.mxu0 0
        %1072 = vmatprep.subr.bf16.mxu0 0
        %1073 = vmatpush2.bf16.msra.mxu0 0
        %1074 = vmatprep.subr.bf16.mxu0 0
        %1075 = vmatpush2.bf16.msra.mxu0 0
        %1076 = vmatprep.subr.bf16.mxu0 0
        %1077 = vmatpush2.bf16.msra.mxu0 0
        %1078 = vmatprep.mubr.bf16.mxu0 0
        %1079 = vmatmul.mubr.bf16.gmra.mxu0 %v751
        %v1080 = vpop.f32.mrf.mxu0
        %v1081 = vadd.f32 %v996, %v1080
        %v1082 = vpop.f32.mrf.mxu0
        %v1083 = vpop.f32.mrf.mxu0
        %v1084 = vadd.f32 %v996, %v1083
        %v1085 = vpop.f32.mrf.mxu0
        %1086 = vdwg.mxu0
        %1088 = vrot.lane.b32.xlu0 %v858, 96
        %v1089 = vpop.permute.xlu0 %1088
        %1091 = vrot.lane.b32.xlu0 %v858, 64
        %v1092 = vpop.permute.xlu0 %1091
        %1094 = vrot.lane.b32.xlu0 %v858, 32
        %v1095 = vpop.permute.xlu0 %1094
        %v1097 = vpack.c.bf16 %v858, %v858
        %v1098 = vpack.c.bf16 %v1089, %v1089
        %v1099 = vpack.c.bf16 %v1092, %v1092
        %v1100 = vpack.c.bf16 %v1095, %v1095
        %1103 = vrot.lane.b32.xlu0 %v969, 96
        %v1104 = vpop.permute.xlu0 %1103
        %1105 = vrot.lane.b32.xlu0 %v972, 96
        %v1106 = vpop.permute.xlu0 %1105
        %1109 = vrot.lane.b32.xlu0 %v969, 64
        %v1110 = vpop.permute.xlu0 %1109
        %1111 = vrot.lane.b32.xlu0 %v972, 64
        %v1112 = vpop.permute.xlu0 %1111
        %1115 = vrot.lane.b32.xlu0 %v969, 32
        %v1116 = vpop.permute.xlu0 %1115
        %1117 = vrot.lane.b32.xlu0 %v972, 32
        %v1118 = vpop.permute.xlu0 %1117
        %v1121 = vpack.c.bf16 %v972, %v969
        %v1122 = vpack.c.bf16 %v1106, %v1104
        %v1123 = vpack.c.bf16 %v1112, %v1110
        %v1124 = vpack.c.bf16 %v1118, %v1116
        %1127 = vrot.lane.b32.xlu0 %v1081, 96
        %v1128 = vpop.permute.xlu0 %1127
        %1129 = vrot.lane.b32.xlu0 %v1084, 96
        %v1130 = vpop.permute.xlu0 %1129
        %1133 = vrot.lane.b32.xlu0 %v1081, 64
        %v1134 = vpop.permute.xlu0 %1133
        %1135 = vrot.lane.b32.xlu0 %v1084, 64
        %v1136 = vpop.permute.xlu0 %1135
        %1139 = vrot.lane.b32.xlu0 %v1081, 32
        %v1140 = vpop.permute.xlu0 %1139
        %1141 = vrot.lane.b32.xlu0 %v1084, 32
        %v1142 = vpop.permute.xlu0 %1141
        %v1145 = vpack.c.bf16 %v1084, %v1081
        %v1146 = vpack.c.bf16 %v1130, %v1128
        %v1147 = vpack.c.bf16 %v1136, %v1134
        %v1148 = vpack.c.bf16 %v1142, %v1140
        %vm1149 = vcmask 261120
        %v1151 = vsel %vm1149, %v1097, 0
        %v1154 = vsel %vm1149, %v1121, 0
        %1156 = vmatprep.subr.bf16.mxu0 0
        %1157 = vmatpush1.bf16.xpose.msra.mxu0 0
        %1158 = vmatprep.subr.bf16.mxu0 0
        %1159 = vmatpush1.bf16.xpose.msra.mxu0 0
        %1160 = vmatprep.subr.bf16.mxu0 0
        %1161 = vmatpush1.bf16.xpose.msra.mxu0 0
        %1162 = vmatprep.subr.bf16.mxu0 0
        %1163 = vmatpush1.bf16.xpose.msra.mxu0 0
        %1164 = vmatprep.subr.bf16.mxu0 0
        %1165 = vmatpush1.bf16.xpose.msra.mxu0 0
        %1166 = vmatprep.subr.bf16.mxu0 0
        %1167 = vmatpush1.bf16.xpose.msra.mxu0 0
        %1168 = vmatprep.subr.bf16.mxu0 0
        %1169 = vmatpush1.bf16.xpose.msra.mxu0 0
        %1170 = vmatprep.subr.bf16.mxu0 0
        %1171 = vmatpush1.bf16.xpose.msra.mxu0 %v1154
        %1172 = vmatprep.subr.bf16.mxu0 0
        %1173 = vmatpush2.bf16.xpose.msra.mxu0 0
        %1174 = vmatprep.subr.bf16.mxu0 0
        %1175 = vmatpush2.bf16.xpose.msra.mxu0 0
        %1176 = vmatprep.subr.bf16.mxu0 0
        %1177 = vmatpush2.bf16.xpose.msra.mxu0 0
        %1178 = vmatprep.subr.bf16.mxu0 0
        %1179 = vmatpush2.bf16.xpose.msra.mxu0 0
        %1180 = vmatprep.subr.bf16.mxu0 0
        %1181 = vmatpush2.bf16.xpose.msra.mxu0 0
        %1182 = vmatprep.subr.bf16.mxu0 0
        %1183 = vmatpush2.bf16.xpose.msra.mxu0 0
        %1184 = vmatprep.subr.bf16.mxu0 0
        %1185 = vmatpush2.bf16.xpose.msra.mxu0 0
        %1186 = vmatprep.subr.bf16.mxu0 0
        %1187 = vmatpush2.bf16.xpose.msra.mxu0 0
        %1188 = vmatprep.mubr.bf16.mxu0 0
        %1189 = vmatmul.mubr.bf16.gmra.mxu0 %v1151
        %v1190 = vpop.f32.mrf.mxu0
        %v1191 = vadd.f32 0.0, %v1190
        %v1192 = vpop.f32.mrf.mxu0
        %v1193 = vpop.f32.mrf.mxu0
        %v1194 = vpop.f32.mrf.mxu0
        %1195 = vdwg.mxu0
        %v1197 = vsel %vm1149, %v1098, 0
        %v1200 = vsel %vm1149, %v1122, 0
        %1202 = vmatprep.subr.bf16.mxu0 0
        %1203 = vmatpush1.bf16.xpose.msra.mxu0 0
        %1204 = vmatprep.subr.bf16.mxu0 0
        %1205 = vmatpush1.bf16.xpose.msra.mxu0 0
        %1206 = vmatprep.subr.bf16.mxu0 0
        %1207 = vmatpush1.bf16.xpose.msra.mxu0 0
        %1208 = vmatprep.subr.bf16.mxu0 0
        %1209 = vmatpush1.bf16.xpose.msra.mxu0 0
        %1210 = vmatprep.subr.bf16.mxu0 0
        %1211 = vmatpush1.bf16.xpose.msra.mxu0 0
        %1212 = vmatprep.subr.bf16.mxu0 0
        %1213 = vmatpush1.bf16.xpose.msra.mxu0 0
        %1214 = vmatprep.subr.bf16.mxu0 0
        %1215 = vmatpush1.bf16.xpose.msra.mxu0 0
        %1216 = vmatprep.subr.bf16.mxu0 0
        %1217 = vmatpush1.bf16.xpose.msra.mxu0 %v1200
        %1218 = vmatprep.subr.bf16.mxu0 0
        %1219 = vmatpush2.bf16.xpose.msra.mxu0 0
        %1220 = vmatprep.subr.bf16.mxu0 0
        %1221 = vmatpush2.bf16.xpose.msra.mxu0 0
        %1222 = vmatprep.subr.bf16.mxu0 0
        %1223 = vmatpush2.bf16.xpose.msra.mxu0 0
        %1224 = vmatprep.subr.bf16.mxu0 0
        %1225 = vmatpush2.bf16.xpose.msra.mxu0 0
        %1226 = vmatprep.subr.bf16.mxu0 0
        %1227 = vmatpush2.bf16.xpose.msra.mxu0 0
        %1228 = vmatprep.subr.bf16.mxu0 0
        %1229 = vmatpush2.bf16.xpose.msra.mxu0 0
        %1230 = vmatprep.subr.bf16.mxu0 0
        %1231 = vmatpush2.bf16.xpose.msra.mxu0 0
        %1232 = vmatprep.subr.bf16.mxu0 0
        %1233 = vmatpush2.bf16.xpose.msra.mxu0 0
        %1234 = vmatprep.mubr.bf16.mxu0 0
        %1235 = vmatmul.mubr.bf16.gmra.mxu0 %v1197
        %v1236 = vpop.f32.mrf.mxu0
        %v1237 = vadd.f32 0.0, %v1236
        %v1238 = vpop.f32.mrf.mxu0
        %v1239 = vpop.f32.mrf.mxu0
        %v1240 = vpop.f32.mrf.mxu0
        %1241 = vdwg.mxu0
        %v1243 = vsel %vm1149, %v1099, 0
        %v1246 = vsel %vm1149, %v1123, 0
        %1248 = vmatprep.subr.bf16.mxu0 0
        %1249 = vmatpush1.bf16.xpose.msra.mxu0 0
        %1250 = vmatprep.subr.bf16.mxu0 0
        %1251 = vmatpush1.bf16.xpose.msra.mxu0 0
        %1252 = vmatprep.subr.bf16.mxu0 0
        %1253 = vmatpush1.bf16.xpose.msra.mxu0 0
        %1254 = vmatprep.subr.bf16.mxu0 0
        %1255 = vmatpush1.bf16.xpose.msra.mxu0 0
        %1256 = vmatprep.subr.bf16.mxu0 0
        %1257 = vmatpush1.bf16.xpose.msra.mxu0 0
        %1258 = vmatprep.subr.bf16.mxu0 0
        %1259 = vmatpush1.bf16.xpose.msra.mxu0 0
        %1260 = vmatprep.subr.bf16.mxu0 0
        %1261 = vmatpush1.bf16.xpose.msra.mxu0 0
        %1262 = vmatprep.subr.bf16.mxu0 0
        %1263 = vmatpush1.bf16.xpose.msra.mxu0 %v1246
        %1264 = vmatprep.subr.bf16.mxu0 0
        %1265 = vmatpush2.bf16.xpose.msra.mxu0 0
        %1266 = vmatprep.subr.bf16.mxu0 0
        %1267 = vmatpush2.bf16.xpose.msra.mxu0 0
        %1268 = vmatprep.subr.bf16.mxu0 0
        %1269 = vmatpush2.bf16.xpose.msra.mxu0 0
        %1270 = vmatprep.subr.bf16.mxu0 0
        %1271 = vmatpush2.bf16.xpose.msra.mxu0 0
        %1272 = vmatprep.subr.bf16.mxu0 0
        %1273 = vmatpush2.bf16.xpose.msra.mxu0 0
        %1274 = vmatprep.subr.bf16.mxu0 0
        %1275 = vmatpush2.bf16.xpose.msra.mxu0 0
        %1276 = vmatprep.subr.bf16.mxu0 0
        %1277 = vmatpush2.bf16.xpose.msra.mxu0 0
        %1278 = vmatprep.subr.bf16.mxu0 0
        %1279 = vmatpush2.bf16.xpose.msra.mxu0 0
        %1280 = vmatprep.mubr.bf16.mxu0 0
        %1281 = vmatmul.mubr.bf16.gmra.mxu0 %v1243
        %v1282 = vpop.f32.mrf.mxu0
        %v1283 = vadd.f32 0.0, %v1282
        %v1284 = vpop.f32.mrf.mxu0
        %v1285 = vpop.f32.mrf.mxu0
        %v1286 = vpop.f32.mrf.mxu0
        %1287 = vdwg.mxu0
        %v1289 = vsel %vm1149, %v1100, 0
        %v1292 = vsel %vm1149, %v1124, 0
        %1294 = vmatprep.subr.bf16.mxu0 0
        %1295 = vmatpush1.bf16.xpose.msra.mxu0 0
        %1296 = vmatprep.subr.bf16.mxu0 0
        %1297 = vmatpush1.bf16.xpose.msra.mxu0 0
        %1298 = vmatprep.subr.bf16.mxu0 0
        %1299 = vmatpush1.bf16.xpose.msra.mxu0 0
        %1300 = vmatprep.subr.bf16.mxu0 0
        %1301 = vmatpush1.bf16.xpose.msra.mxu0 0
        %1302 = vmatprep.subr.bf16.mxu0 0
        %1303 = vmatpush1.bf16.xpose.msra.mxu0 0
        %1304 = vmatprep.subr.bf16.mxu0 0
        %1305 = vmatpush1.bf16.xpose.msra.mxu0 0
        %1306 = vmatprep.subr.bf16.mxu0 0
        %1307 = vmatpush1.bf16.xpose.msra.mxu0 0
        %1308 = vmatprep.subr.bf16.mxu0 0
        %1309 = vmatpush1.bf16.xpose.msra.mxu0 %v1292
        %1310 = vmatprep.subr.bf16.mxu0 0
        %1311 = vmatpush2.bf16.xpose.msra.mxu0 0
        %1312 = vmatprep.subr.bf16.mxu0 0
        %1313 = vmatpush2.bf16.xpose.msra.mxu0 0
        %1314 = vmatprep.subr.bf16.mxu0 0
        %1315 = vmatpush2.bf16.xpose.msra.mxu0 0
        %1316 = vmatprep.subr.bf16.mxu0 0
        %1317 = vmatpush2.bf16.xpose.msra.mxu0 0
        %1318 = vmatprep.subr.bf16.mxu0 0
        %1319 = vmatpush2.bf16.xpose.msra.mxu0 0
        %1320 = vmatprep.subr.bf16.mxu0 0
        %1321 = vmatpush2.bf16.xpose.msra.mxu0 0
        %1322 = vmatprep.subr.bf16.mxu0 0
        %1323 = vmatpush2.bf16.xpose.msra.mxu0 0
        %1324 = vmatprep.subr.bf16.mxu0 0
        %1325 = vmatpush2.bf16.xpose.msra.mxu0 0
        %1326 = vmatprep.mubr.bf16.mxu0 0
        %1327 = vmatmul.mubr.bf16.gmra.mxu0 %v1289
        %v1328 = vpop.f32.mrf.mxu0
        %v1329 = vadd.f32 0.0, %v1328
        %v1330 = vpop.f32.mrf.mxu0
        %v1331 = vpop.f32.mrf.mxu0
        %v1332 = vpop.f32.mrf.mxu0
        %1333 = vdwg.mxu0
        %vm1334 = vcmask 130048
        %v1335 = vsel %vm1334, %v1191, -inf
        %1336 = vmax.xlane.f32.xlu0 %v1335
        %v1337 = vpop.xlane.xlu0 %1336
        %v1338 = vsel %vm1334, %v1237, -inf
        %1339 = vmax.xlane.f32.xlu0 %v1338
        %v1340 = vpop.xlane.xlu0 %1339
        %v1341 = vsel %vm1334, %v1283, -inf
        %1342 = vmax.xlane.f32.xlu0 %v1341
        %v1343 = vpop.xlane.xlu0 %1342
        %v1344 = vsel %vm1334, %v1329, -inf
        %1345 = vmax.xlane.f32.xlu0 %v1344
        %v1346 = vpop.xlane.xlu0 %1345
        %v1347 = vsub.f32 %v1191, %v1337
        %v1348 = vsub.f32 %v1237, %v1340
        %v1349 = vsub.f32 %v1283, %v1343
        %v1350 = vsub.f32 %v1329, %v1346
        %v1351 = vmul.f32 %v1347, 1.442695
        %v1352 = vpow.pop %v1351
        %v1353 = vmul.f32 %v1348, 1.442695
        %v1354 = vpow.pop %v1353
        %v1355 = vmul.f32 %v1349, 1.442695
        %v1356 = vpow.pop %v1355
        %v1357 = vmul.f32 %v1350, 1.442695
        %v1358 = vpow.pop %v1357
        %v1359 = vsel %vm1334, %v1352, 0.0
        %1360 = vadd.xlane.f32.xlu0 %v1359
        %v1361 = vpop.xlane.xlu0 %1360
        %v1362 = vsel %vm1334, %v1354, 0.0
        %1363 = vadd.xlane.f32.xlu0 %v1362
        %v1364 = vpop.xlane.xlu0 %1363
        %v1365 = vsel %vm1334, %v1356, 0.0
        %1366 = vadd.xlane.f32.xlu0 %v1365
        %v1367 = vpop.xlane.xlu0 %1366
        %v1368 = vsel %vm1334, %v1358, 0.0
        %1369 = vadd.xlane.f32.xlu0 %v1368
        %v1370 = vpop.xlane.xlu0 %1369
        %v1371 = vrcp.pop %v1361
        %v1372 = vrcp.pop %v1364
        %v1373 = vrcp.pop %v1367
        %v1374 = vrcp.pop %v1370
        %v1375 = vmul.f32 %v1352, %v1371
        %v1376 = vmul.f32 %v1354, %v1372
        %v1377 = vmul.f32 %v1356, %v1373
        %v1378 = vmul.f32 %v1358, %v1374
        %v1379 = vpack.c.bf16 %v1375, %v1375
        %v1380 = vpack.c.bf16 %v1376, %v1376
        %v1381 = vpack.c.bf16 %v1377, %v1377
        %v1382 = vpack.c.bf16 %v1378, %v1378
        %v1384 = vsel %vm1334, %v1379, 0
        %1386 = vmatprep.subr.bf16.mxu0 0
        %1387 = vmatpush1.bf16.msra.mxu0 0
        %1388 = vmatprep.subr.bf16.mxu0 0
        %1389 = vmatpush1.bf16.msra.mxu0 0
        %1390 = vmatprep.subr.bf16.mxu0 0
        %1391 = vmatpush1.bf16.msra.mxu0 0
        %1392 = vmatprep.subr.bf16.mxu0 0
        %1393 = vmatpush1.bf16.msra.mxu0 0
        %1394 = vmatprep.subr.bf16.mxu0 0
        %1395 = vmatpush1.bf16.msra.mxu0 0
        %1396 = vmatprep.subr.bf16.mxu0 0
        %1397 = vmatpush1.bf16.msra.mxu0 0
        %1398 = vmatprep.subr.bf16.mxu0 0
        %1399 = vmatpush1.bf16.msra.mxu0 0
        %1400 = vmatprep.subr.bf16.mxu0 0
        %1401 = vmatpush1.bf16.msra.mxu0 %v1145
        %1402 = vmatprep.subr.bf16.mxu0 0
        %1403 = vmatpush2.bf16.msra.mxu0 0
        %1404 = vmatprep.subr.bf16.mxu0 0
        %1405 = vmatpush2.bf16.msra.mxu0 0
        %1406 = vmatprep.subr.bf16.mxu0 0
        %1407 = vmatpush2.bf16.msra.mxu0 0
        %1408 = vmatprep.subr.bf16.mxu0 0
        %1409 = vmatpush2.bf16.msra.mxu0 0
        %1410 = vmatprep.subr.bf16.mxu0 0
        %1411 = vmatpush2.bf16.msra.mxu0 0
        %1412 = vmatprep.subr.bf16.mxu0 0
        %1413 = vmatpush2.bf16.msra.mxu0 0
        %1414 = vmatprep.subr.bf16.mxu0 0
        %1415 = vmatpush2.bf16.msra.mxu0 0
        %1416 = vmatprep.subr.bf16.mxu0 0
        %1417 = vmatpush2.bf16.msra.mxu0 0
        %1418 = vmatprep.mubr.bf16.mxu0 0
        %1419 = vmatmul.mubr.bf16.gmra.mxu0 %v1384
        %v1420 = vpop.f32.mrf.mxu0
        %v1421 = vadd.f32 0.0, %v1420
        %v1422 = vpop.f32.mrf.mxu0
        %v1423 = vpop.f32.mrf.mxu0
        %v1424 = vpop.f32.mrf.mxu0
        %1425 = vdwg.mxu0
        %v1427 = vsel %vm1334, %v1380, 0
        %1429 = vmatprep.subr.bf16.mxu0 0
        %1430 = vmatpush1.bf16.msra.mxu0 0
        %1431 = vmatprep.subr.bf16.mxu0 0
        %1432 = vmatpush1.bf16.msra.mxu0 0
        %1433 = vmatprep.subr.bf16.mxu0 0
        %1434 = vmatpush1.bf16.msra.mxu0 0
        %1435 = vmatprep.subr.bf16.mxu0 0
        %1436 = vmatpush1.bf16.msra.mxu0 0
        %1437 = vmatprep.subr.bf16.mxu0 0
        %1438 = vmatpush1.bf16.msra.mxu0 0
        %1439 = vmatprep.subr.bf16.mxu0 0
        %1440 = vmatpush1.bf16.msra.mxu0 0
        %1441 = vmatprep.subr.bf16.mxu0 0
        %1442 = vmatpush1.bf16.msra.mxu0 0
        %1443 = vmatprep.subr.bf16.mxu0 0
        %1444 = vmatpush1.bf16.msra.mxu0 %v1146
        %1445 = vmatprep.subr.bf16.mxu0 0
        %1446 = vmatpush2.bf16.msra.mxu0 0
        %1447 = vmatprep.subr.bf16.mxu0 0
        %1448 = vmatpush2.bf16.msra.mxu0 0
        %1449 = vmatprep.subr.bf16.mxu0 0
        %1450 = vmatpush2.bf16.msra.mxu0 0
        %1451 = vmatprep.subr.bf16.mxu0 0
        %1452 = vmatpush2.bf16.msra.mxu0 0
        %1453 = vmatprep.subr.bf16.mxu0 0
        %1454 = vmatpush2.bf16.msra.mxu0 0
        %1455 = vmatprep.subr.bf16.mxu0 0
        %1456 = vmatpush2.bf16.msra.mxu0 0
        %1457 = vmatprep.subr.bf16.mxu0 0
        %1458 = vmatpush2.bf16.msra.mxu0 0
        %1459 = vmatprep.subr.bf16.mxu0 0
        %1460 = vmatpush2.bf16.msra.mxu0 0
        %1461 = vmatprep.mubr.bf16.mxu0 0
        %1462 = vmatmul.mubr.bf16.gmra.mxu0 %v1427
        %v1463 = vpop.f32.mrf.mxu0
        %v1464 = vadd.f32 0.0, %v1463
        %v1465 = vpop.f32.mrf.mxu0
        %v1466 = vpop.f32.mrf.mxu0
        %v1467 = vpop.f32.mrf.mxu0
        %1468 = vdwg.mxu0
        %v1470 = vsel %vm1334, %v1381, 0
        %1472 = vmatprep.subr.bf16.mxu0 0
        %1473 = vmatpush1.bf16.msra.mxu0 0
        %1474 = vmatprep.subr.bf16.mxu0 0
        %1475 = vmatpush1.bf16.msra.mxu0 0
        %1476 = vmatprep.subr.bf16.mxu0 0
        %1477 = vmatpush1.bf16.msra.mxu0 0
        %1478 = vmatprep.subr.bf16.mxu0 0
        %1479 = vmatpush1.bf16.msra.mxu0 0
        %1480 = vmatprep.subr.bf16.mxu0 0
        %1481 = vmatpush1.bf16.msra.mxu0 0
        %1482 = vmatprep.subr.bf16.mxu0 0
        %1483 = vmatpush1.bf16.msra.mxu0 0
        %1484 = vmatprep.subr.bf16.mxu0 0
        %1485 = vmatpush1.bf16.msra.mxu0 0
        %1486 = vmatprep.subr.bf16.mxu0 0
        %1487 = vmatpush1.bf16.msra.mxu0 %v1147
        %1488 = vmatprep.subr.bf16.mxu0 0
        %1489 = vmatpush2.bf16.msra.mxu0 0
        %1490 = vmatprep.subr.bf16.mxu0 0
        %1491 = vmatpush2.bf16.msra.mxu0 0
        %1492 = vmatprep.subr.bf16.mxu0 0
        %1493 = vmatpush2.bf16.msra.mxu0 0
        %1494 = vmatprep.subr.bf16.mxu0 0
        %1495 = vmatpush2.bf16.msra.mxu0 0
        %1496 = vmatprep.subr.bf16.mxu0 0
        %1497 = vmatpush2.bf16.msra.mxu0 0
        %1498 = vmatprep.subr.bf16.mxu0 0
        %1499 = vmatpush2.bf16.msra.mxu0 0
        %1500 = vmatprep.subr.bf16.mxu0 0
        %1501 = vmatpush2.bf16.msra.mxu0 0
        %1502 = vmatprep.subr.bf16.mxu0 0
        %1503 = vmatpush2.bf16.msra.mxu0 0
        %1504 = vmatprep.mubr.bf16.mxu0 0
        %1505 = vmatmul.mubr.bf16.gmra.mxu0 %v1470
        %v1506 = vpop.f32.mrf.mxu0
        %v1507 = vadd.f32 0.0, %v1506
        %v1508 = vpop.f32.mrf.mxu0
        %v1509 = vpop.f32.mrf.mxu0
        %v1510 = vpop.f32.mrf.mxu0
        %1511 = vdwg.mxu0
        %v1513 = vsel %vm1334, %v1382, 0
        %1515 = vmatprep.subr.bf16.mxu0 0
        %1516 = vmatpush1.bf16.msra.mxu0 0
        %1517 = vmatprep.subr.bf16.mxu0 0
        %1518 = vmatpush1.bf16.msra.mxu0 0
        %1519 = vmatprep.subr.bf16.mxu0 0
        %1520 = vmatpush1.bf16.msra.mxu0 0
        %1521 = vmatprep.subr.bf16.mxu0 0
        %1522 = vmatpush1.bf16.msra.mxu0 0
        %1523 = vmatprep.subr.bf16.mxu0 0
        %1524 = vmatpush1.bf16.msra.mxu0 0
        %1525 = vmatprep.subr.bf16.mxu0 0
        %1526 = vmatpush1.bf16.msra.mxu0 0
        %1527 = vmatprep.subr.bf16.mxu0 0
        %1528 = vmatpush1.bf16.msra.mxu0 0
        %1529 = vmatprep.subr.bf16.mxu0 0
        %1530 = vmatpush1.bf16.msra.mxu0 %v1148
        %1531 = vmatprep.subr.bf16.mxu0 0
        %1532 = vmatpush2.bf16.msra.mxu0 0
        %1533 = vmatprep.subr.bf16.mxu0 0
        %1534 = vmatpush2.bf16.msra.mxu0 0
        %1535 = vmatprep.subr.bf16.mxu0 0
        %1536 = vmatpush2.bf16.msra.mxu0 0
        %1537 = vmatprep.subr.bf16.mxu0 0
        %1538 = vmatpush2.bf16.msra.mxu0 0
        %1539 = vmatprep.subr.bf16.mxu0 0
        %1540 = vmatpush2.bf16.msra.mxu0 0
        %1541 = vmatprep.subr.bf16.mxu0 0
        %1542 = vmatpush2.bf16.msra.mxu0 0
        %1543 = vmatprep.subr.bf16.mxu0 0
        %1544 = vmatpush2.bf16.msra.mxu0 0
        %1545 = vmatprep.subr.bf16.mxu0 0
        %1546 = vmatpush2.bf16.msra.mxu0 0
        %1547 = vmatprep.mubr.bf16.mxu0 0
        %1548 = vmatmul.mubr.bf16.gmra.mxu0 %v1513
        %v1549 = vpop.f32.mrf.mxu0
        %v1550 = vadd.f32 0.0, %v1549
        %v1551 = vpop.f32.mrf.mxu0
        %v1552 = vpop.f32.mrf.mxu0
        %v1553 = vpop.f32.mrf.mxu0
        %1554 = vdwg.mxu0
        %1555 = vst.msk [vmem:[#allocation2] sm:$0xff] %vm1149, %v1421
        %1557 = vrot.lane.b32.xlu0 %v1464, 32
        %v1558 = vpop.permute.xlu0 %1557
        %vm1560 = vcmask 523520
        %1561 = vst.msk [vmem:[#allocation2] sm:$0xff] %vm1560, %v1558
        %1563 = vrot.lane.b32.xlu0 %v1507, 64
        %v1564 = vpop.permute.xlu0 %1563
        %vm1566 = vcmask 785920
        %1567 = vst.msk [vmem:[#allocation2] sm:$0xff] %vm1566, %v1564
        %1569 = vrot.lane.b32.xlu0 %v1550, 96
        %v1570 = vpop.permute.xlu0 %1569
        %vm1572 = vcmask 1048320
        %1573 = vst.msk [vmem:[#allocation2] sm:$0xff] %vm1572, %v1570
        %v1574 = vld [vmem:[#allocation2] sm:$0xff]
        %v1575 = vpack.c.bf16 %v1574, %v1574
        %v1576 = vld [vmem:[#allocation12] sm:$0xf]
        %v1577 = vld [vmem:[#allocation12 + $0x4] sm:$0xf]
        %v1578 = vld [vmem:[#allocation12 + $0x8] sm:$0xf]
        %v1579 = vld [vmem:[#allocation12 + $0xc] sm:$0xf]
        %v1580 = vld [vmem:[#allocation12 + $0x10] sm:$0xf]
        %v1581 = vld [vmem:[#allocation12 + $0x14] sm:$0xf]
        %v1582 = vld [vmem:[#allocation12 + $0x18] sm:$0xf]
        %v1583 = vld [vmem:[#allocation12 + $0x1c] sm:$0xf]
        %v1584 = vld [vmem:[#allocation12 + $0x20] sm:$0xf]
        %v1585 = vld [vmem:[#allocation12 + $0x24] sm:$0xf]
        %v1586 = vld [vmem:[#allocation12 + $0x28] sm:$0xf]
        %v1587 = vld [vmem:[#allocation12 + $0x2c] sm:$0xf]
        %v1588 = vld [vmem:[#allocation12 + $0x30] sm:$0xf]
        %v1589 = vld [vmem:[#allocation12 + $0x34] sm:$0xf]
        %v1590 = vld [vmem:[#allocation12 + $0x38] sm:$0xf]
        %v1591 = vld [vmem:[#allocation12 + $0x3c] sm:$0xf]
        %v1592 = vld [vmem:[%s11] sm:$0x1]
        %v1594 = vlaneseq
        %v1595 = vshrl.u32 %v1594, 7
        %v1596 = vsub.s32 0, %v1595
        %v1597 = vrot.slane %v1592, %v1596
        %v1615 = vunpack.c.l.b16 %v1576
        %v1616 = vunpack.c.l.b16 %v1577
        %v1617 = vunpack.c.l.b16 %v1578
        %v1618 = vunpack.c.l.b16 %v1579
        %v1619 = vunpack.c.l.b16 %v1580
        %v1620 = vunpack.c.l.b16 %v1581
        %v1621 = vunpack.c.l.b16 %v1582
        %v1622 = vunpack.c.l.b16 %v1583
        %v1623 = vunpack.c.l.b16 %v1584
        %v1624 = vunpack.c.l.b16 %v1585
        %v1625 = vunpack.c.l.b16 %v1586
        %v1626 = vunpack.c.l.b16 %v1587
        %v1627 = vunpack.c.l.b16 %v1588
        %v1628 = vunpack.c.l.b16 %v1589
        %v1629 = vunpack.c.l.b16 %v1590
        %v1630 = vunpack.c.l.b16 %v1591
        %v1631 = vpack.c.b16 %v1616, %v1615
        %v1632 = vpack.c.b16 %v1618, %v1617
        %v1633 = vpack.c.b16 %v1620, %v1619
        %v1634 = vpack.c.b16 %v1622, %v1621
        %v1635 = vpack.c.b16 %v1624, %v1623
        %v1636 = vpack.c.b16 %v1626, %v1625
        %v1637 = vpack.c.b16 %v1628, %v1627
        %v1638 = vpack.c.b16 %v1630, %v1629
        %1647 = vmatprep.subr.bf16.mxu0 0
        %1648 = vmatpush1.bf16.msra.mxu0 %v1638
        %1649 = vmatprep.subr.bf16.mxu0 0
        %1650 = vmatpush1.bf16.msra.mxu0 %v1637
        %1651 = vmatprep.subr.bf16.mxu0 0
        %1652 = vmatpush1.bf16.msra.mxu0 %v1636
        %1653 = vmatprep.subr.bf16.mxu0 0
        %1654 = vmatpush1.bf16.msra.mxu0 %v1635
        %1655 = vmatprep.subr.bf16.mxu0 0
        %1656 = vmatpush1.bf16.msra.mxu0 %v1634
        %1657 = vmatprep.subr.bf16.mxu0 0
        %1658 = vmatpush1.bf16.msra.mxu0 %v1633
        %1659 = vmatprep.subr.bf16.mxu0 0
        %1660 = vmatpush1.bf16.msra.mxu0 %v1632
        %1661 = vmatprep.subr.bf16.mxu0 0
        %1662 = vmatpush1.bf16.msra.mxu0 %v1631
        %1663 = vmatprep.subr.bf16.mxu0 0
        %1664 = vmatpush2.bf16.msra.mxu0 0
        %1665 = vmatprep.subr.bf16.mxu0 0
        %1666 = vmatpush2.bf16.msra.mxu0 0
        %1667 = vmatprep.subr.bf16.mxu0 0
        %1668 = vmatpush2.bf16.msra.mxu0 0
        %1669 = vmatprep.subr.bf16.mxu0 0
        %1670 = vmatpush2.bf16.msra.mxu0 0
        %1671 = vmatprep.subr.bf16.mxu0 0
        %1672 = vmatpush2.bf16.msra.mxu0 0
        %1673 = vmatprep.subr.bf16.mxu0 0
        %1674 = vmatpush2.bf16.msra.mxu0 0
        %1675 = vmatprep.subr.bf16.mxu0 0
        %1676 = vmatpush2.bf16.msra.mxu0 0
        %1677 = vmatprep.subr.bf16.mxu0 0
        %1678 = vmatpush2.bf16.msra.mxu0 0
        %1679 = vmatprep.mubr.bf16.mxu0 0
        %1680 = vmatmul.mubr.bf16.gmra.mxu0 %v1575
        %v1681 = vpop.f32.mrf.mxu0
        %v1682 = vadd.f32 %v1597, %v1681
        %v1683 = vpop.f32.mrf.mxu0
        %v1684 = vpop.f32.mrf.mxu0
        %v1685 = vpop.f32.mrf.mxu0
        %1686 = vdwg.mxu0
        %v1687 = vadd.f32 %v749, %v1682
        %v1688 = vld [vmem:[%s12] sm:$0x1]
        %v1689 = vld [vmem:[%s13] sm:$0x1]
        %1690 = vadd.xlane.f32.xlu0 %v1687
        %v1691 = vpop.xlane.xlu0 %1690
        %v1692 = vmul.f32 %v1691, %v726
        %v1693 = vsub.f32 %v1687, %v1692
        %v1694 = vmul.f32 %v1693, %v1693
        %1695 = vadd.xlane.f32.xlu0 %v1694
        %v1696 = vpop.xlane.xlu0 %1695
        %v1697 = vmul.f32 %v1696, %v726
        %v1698 = vadd.f32 %v1697, 1e-05
        %v1699 = vrsqrt.pop %v1698
        %v1700 = vmul.f32 %v1693, %v1699
        %v1702 = vlaneseq
        %v1703 = vshrl.u32 %v1702, 7
        %v1704 = vsub.s32 0, %v1703
        %v1705 = vrot.slane %v1688, %v1704
        %v1707 = vmul.f32 %v1700, %v1705
        %v1709 = vlaneseq
        %v1710 = vshrl.u32 %v1709, 7
        %v1711 = vsub.s32 0, %v1710
        %v1712 = vrot.slane %v1689, %v1711
        %v1714 = vadd.f32 %v1707, %v1712
        %v1715 = vpack.c.bf16 %v1714, %v1714
        %v1716 = vld [vmem:[#allocation14] sm:$0xff]
        %v1717 = vld [vmem:[#allocation14 + $0x8] sm:$0xff]
        %v1718 = vld [vmem:[#allocation14 + $0x10] sm:$0xff]
        %v1719 = vld [vmem:[#allocation14 + $0x18] sm:$0xff]
        %v1720 = vld [vmem:[#allocation14 + $0x20] sm:$0xff]
        %v1721 = vld [vmem:[#allocation14 + $0x28] sm:$0xff]
        %v1722 = vld [vmem:[#allocation14 + $0x30] sm:$0xff]
        %v1723 = vld [vmem:[#allocation14 + $0x38] sm:$0xff]
        %v1724 = vld [vmem:[#allocation14 + $0x40] sm:$0xff]
        %v1725 = vld [vmem:[#allocation14 + $0x48] sm:$0xff]
        %v1726 = vld [vmem:[#allocation14 + $0x50] sm:$0xff]
        %v1727 = vld [vmem:[#allocation14 + $0x58] sm:$0xff]
        %v1728 = vld [vmem:[#allocation14 + $0x60] sm:$0xff]
        %v1729 = vld [vmem:[#allocation14 + $0x68] sm:$0xff]
        %v1730 = vld [vmem:[#allocation14 + $0x70] sm:$0xff]
        %v1731 = vld [vmem:[#allocation14 + $0x78] sm:$0xff]
        %v1732 = vld [vmem:[%s15] sm:$0x3]
        %v1734 = vlaneseq
        %v1735 = vshrl.u32 %v1734, 7
        %v1736 = vsub.s32 0, %v1735
        %v1737 = vrot.slane %v1732, %v1736
        %v1738 = vlaneseq
        %v1739 = vshrl.u32 %v1738, 7
        %v1740 = vsub.s32 1, %v1739
        %v1741 = vrot.slane %v1732, %v1740
        %v1760 = vunpack.c.l.b16 %v1716
        %v1761 = vunpack.c.h.b16 %v1716
        %v1762 = vunpack.c.l.b16 %v1717
        %v1763 = vunpack.c.h.b16 %v1717
        %v1764 = vunpack.c.l.b16 %v1718
        %v1765 = vunpack.c.h.b16 %v1718
        %v1766 = vunpack.c.l.b16 %v1719
        %v1767 = vunpack.c.h.b16 %v1719
        %v1768 = vunpack.c.l.b16 %v1720
        %v1769 = vunpack.c.h.b16 %v1720
        %v1770 = vunpack.c.l.b16 %v1721
        %v1771 = vunpack.c.h.b16 %v1721
        %v1772 = vunpack.c.l.b16 %v1722
        %v1773 = vunpack.c.h.b16 %v1722
        %v1774 = vunpack.c.l.b16 %v1723
        %v1775 = vunpack.c.h.b16 %v1723
        %v1776 = vunpack.c.l.b16 %v1724
        %v1777 = vunpack.c.h.b16 %v1724
        %v1778 = vunpack.c.l.b16 %v1725
        %v1779 = vunpack.c.h.b16 %v1725
        %v1780 = vunpack.c.l.b16 %v1726
        %v1781 = vunpack.c.h.b16 %v1726
        %v1782 = vunpack.c.l.b16 %v1727
        %v1783 = vunpack.c.h.b16 %v1727
        %v1784 = vunpack.c.l.b16 %v1728
        %v1785 = vunpack.c.h.b16 %v1728
        %v1786 = vunpack.c.l.b16 %v1729
        %v1787 = vunpack.c.h.b16 %v1729
        %v1788 = vunpack.c.l.b16 %v1730
        %v1789 = vunpack.c.h.b16 %v1730
        %v1790 = vunpack.c.l.b16 %v1731
        %v1791 = vunpack.c.h.b16 %v1731
        %v1792 = vpack.c.b16 %v1762, %v1760
        %v1793 = vpack.c.b16 %v1763, %v1761
        %v1794 = vpack.c.b16 %v1766, %v1764
        %v1795 = vpack.c.b16 %v1767, %v1765
        %v1796 = vpack.c.b16 %v1770, %v1768
        %v1797 = vpack.c.b16 %v1771, %v1769
        %v1798 = vpack.c.b16 %v1774, %v1772
        %v1799 = vpack.c.b16 %v1775, %v1773
        %v1800 = vpack.c.b16 %v1778, %v1776
        %v1801 = vpack.c.b16 %v1779, %v1777
        %v1802 = vpack.c.b16 %v1782, %v1780
        %v1803 = vpack.c.b16 %v1783, %v1781
        %v1804 = vpack.c.b16 %v1786, %v1784
        %v1805 = vpack.c.b16 %v1787, %v1785
        %v1806 = vpack.c.b16 %v1790, %v1788
        %v1807 = vpack.c.b16 %v1791, %v1789
        %1824 = vmatprep.subr.bf16.mxu0 %v1807
        %1825 = vmatpush1.bf16.msra.mxu0 %v1806
        %1826 = vmatprep.subr.bf16.mxu0 %v1805
        %1827 = vmatpush1.bf16.msra.mxu0 %v1804
        %1828 = vmatprep.subr.bf16.mxu0 %v1803
        %1829 = vmatpush1.bf16.msra.mxu0 %v1802
        %1830 = vmatprep.subr.bf16.mxu0 %v1801
        %1831 = vmatpush1.bf16.msra.mxu0 %v1800
        %1832 = vmatprep.subr.bf16.mxu0 %v1799
        %1833 = vmatpush1.bf16.msra.mxu0 %v1798
        %1834 = vmatprep.subr.bf16.mxu0 %v1797
        %1835 = vmatpush1.bf16.msra.mxu0 %v1796
        %1836 = vmatprep.subr.bf16.mxu0 %v1795
        %1837 = vmatpush1.bf16.msra.mxu0 %v1794
        %1838 = vmatprep.subr.bf16.mxu0 %v1793
        %1839 = vmatpush1.bf16.msra.mxu0 %v1792
        %1840 = vmatprep.subr.bf16.mxu0 0
        %1841 = vmatpush2.bf16.msra.mxu0 0
        %1842 = vmatprep.subr.bf16.mxu0 0
        %1843 = vmatpush2.bf16.msra.mxu0 0
        %1844 = vmatprep.subr.bf16.mxu0 0
        %1845 = vmatpush2.bf16.msra.mxu0 0
        %1846 = vmatprep.subr.bf16.mxu0 0
        %1847 = vmatpush2.bf16.msra.mxu0 0
        %1848 = vmatprep.subr.bf16.mxu0 0
        %1849 = vmatpush2.bf16.msra.mxu0 0
        %1850 = vmatprep.subr.bf16.mxu0 0
        %1851 = vmatpush2.bf16.msra.mxu0 0
        %1852 = vmatprep.subr.bf16.mxu0 0
        %1853 = vmatpush2.bf16.msra.mxu0 0
        %1854 = vmatprep.subr.bf16.mxu0 0
        %1855 = vmatpush2.bf16.msra.mxu0 0
        %1856 = vmatprep.mubr.bf16.mxu0 0
        %1857 = vmatmul.mubr.bf16.gmra.mxu0 %v1715
        %v1858 = vpop.f32.mrf.mxu0
        %v1859 = vadd.f32 %v1737, %v1858
        %v1860 = vpop.f32.mrf.mxu0
        %v1861 = vadd.f32 %v1741, %v1860
        %v1862 = vpop.f32.mrf.mxu0
        %v1863 = vpop.f32.mrf.mxu0
        %1864 = vdwg.mxu0
        %v1865 = vxor.u32 %v1861, 2147483648
        %v1866 = vmul.f32 %v1865, 1.442695
        %v1867 = vpow.pop %v1866
        %v1868 = vadd.f32 %v1867, 1.0
        %v1869 = vrcp.pop %v1868
        %v1870 = vmul.f32 1.0, %v1869
        %v1871 = vmul.f32 %v1859, %v1870
        %v1872 = vpack.c.bf16 %v1871, %v1871
        %v1873 = vld [vmem:[#allocation15] sm:$0xf]
        %v1874 = vld [vmem:[#allocation15 + $0x4] sm:$0xf]
        %v1875 = vld [vmem:[#allocation15 + $0x8] sm:$0xf]
        %v1876 = vld [vmem:[#allocation15 + $0xc] sm:$0xf]
        %v1877 = vld [vmem:[#allocation15 + $0x10] sm:$0xf]
        %v1878 = vld [vmem:[#allocation15 + $0x14] sm:$0xf]
        %v1879 = vld [vmem:[#allocation15 + $0x18] sm:$0xf]
        %v1880 = vld [vmem:[#allocation15 + $0x1c] sm:$0xf]
        %v1881 = vld [vmem:[#allocation15 + $0x20] sm:$0xf]
        %v1882 = vld [vmem:[#allocation15 + $0x24] sm:$0xf]
        %v1883 = vld [vmem:[#allocation15 + $0x28] sm:$0xf]
        %v1884 = vld [vmem:[#allocation15 + $0x2c] sm:$0xf]
        %v1885 = vld [vmem:[#allocation15 + $0x30] sm:$0xf]
        %v1886 = vld [vmem:[#allocation15 + $0x34] sm:$0xf]
        %v1887 = vld [vmem:[#allocation15 + $0x38] sm:$0xf]
        %v1888 = vld [vmem:[#allocation15 + $0x3c] sm:$0xf]
        %v1889 = vld [vmem:[%s17] sm:$0x1]
        %v1891 = vlaneseq
        %v1892 = vshrl.u32 %v1891, 7
        %v1893 = vsub.s32 0, %v1892
        %v1894 = vrot.slane %v1889, %v1893
        %v1912 = vunpack.c.l.b16 %v1873
        %v1913 = vunpack.c.l.b16 %v1874
        %v1914 = vunpack.c.l.b16 %v1875
        %v1915 = vunpack.c.l.b16 %v1876
        %v1916 = vunpack.c.l.b16 %v1877
        %v1917 = vunpack.c.l.b16 %v1878
        %v1918 = vunpack.c.l.b16 %v1879
        %v1919 = vunpack.c.l.b16 %v1880
        %v1920 = vunpack.c.l.b16 %v1881
        %v1921 = vunpack.c.l.b16 %v1882
        %v1922 = vunpack.c.l.b16 %v1883
        %v1923 = vunpack.c.l.b16 %v1884
        %v1924 = vunpack.c.l.b16 %v1885
        %v1925 = vunpack.c.l.b16 %v1886
        %v1926 = vunpack.c.l.b16 %v1887
        %v1927 = vunpack.c.l.b16 %v1888
        %v1928 = vpack.c.b16 %v1913, %v1912
        %v1929 = vpack.c.b16 %v1915, %v1914
        %v1930 = vpack.c.b16 %v1917, %v1916
        %v1931 = vpack.c.b16 %v1919, %v1918
        %v1932 = vpack.c.b16 %v1921, %v1920
        %v1933 = vpack.c.b16 %v1923, %v1922
        %v1934 = vpack.c.b16 %v1925, %v1924
        %v1935 = vpack.c.b16 %v1927, %v1926
        %1944 = vmatprep.subr.bf16.mxu0 0
        %1945 = vmatpush1.bf16.msra.mxu0 %v1935
        %1946 = vmatprep.subr.bf16.mxu0 0
        %1947 = vmatpush1.bf16.msra.mxu0 %v1934
        %1948 = vmatprep.subr.bf16.mxu0 0
        %1949 = vmatpush1.bf16.msra.mxu0 %v1933
        %1950 = vmatprep.subr.bf16.mxu0 0
        %1951 = vmatpush1.bf16.msra.mxu0 %v1932
        %1952 = vmatprep.subr.bf16.mxu0 0
        %1953 = vmatpush1.bf16.msra.mxu0 %v1931
        %1954 = vmatprep.subr.bf16.mxu0 0
        %1955 = vmatpush1.bf16.msra.mxu0 %v1930
        %1956 = vmatprep.subr.bf16.mxu0 0
        %1957 = vmatpush1.bf16.msra.mxu0 %v1929
        %1958 = vmatprep.subr.bf16.mxu0 0
        %1959 = vmatpush1.bf16.msra.mxu0 %v1928
        %1960 = vmatprep.subr.bf16.mxu0 0
        %1961 = vmatpush2.bf16.msra.mxu0 0
        %1962 = vmatprep.subr.bf16.mxu0 0
        %1963 = vmatpush2.bf16.msra.mxu0 0
        %1964 = vmatprep.subr.bf16.mxu0 0
        %1965 = vmatpush2.bf16.msra.mxu0 0
        %1966 = vmatprep.subr.bf16.mxu0 0
        %1967 = vmatpush2.bf16.msra.mxu0 0
        %1968 = vmatprep.subr.bf16.mxu0 0
        %1969 = vmatpush2.bf16.msra.mxu0 0
        %1970 = vmatprep.subr.bf16.mxu0 0
        %1971 = vmatpush2.bf16.msra.mxu0 0
        %1972 = vmatprep.subr.bf16.mxu0 0
        %1973 = vmatpush2.bf16.msra.mxu0 0
        %1974 = vmatprep.subr.bf16.mxu0 0
        %1975 = vmatpush2.bf16.msra.mxu0 0
        %1976 = vmatprep.mubr.bf16.mxu0 0
        %1977 = vmatmul.mubr.bf16.gmra.mxu0 %v1872
        %v1978 = vpop.f32.mrf.mxu0
        %v1979 = vadd.f32 %v1894, %v1978
        %v1980 = vpop.f32.mrf.mxu0
        %v1981 = vpop.f32.mrf.mxu0
        %v1982 = vpop.f32.mrf.mxu0
        %1983 = vdwg.mxu0
        %v1984 = vadd.f32 %v1714, %v1979
        %1985 = vst [vmem:[%s717] sm:$0xff] %v1984
        %s1986 = sand.u32 %s437, 1
        %s1987 = scalar_lea.sflag [#allocation5], %s1986
        %s1988 = sand.u32 %s437, 1
        %s1989 = smul.addr %s1988, 8
        %s1990 = scalar_lea.vmem [#allocation17], %s1989
        // Predicated region
        $region125: #{tpu_custom_call.1} parent=91 // pred_check
          %p1991 = pneg %p447
        $region126: #{tpu_custom_call.1} parent=91 // pred_check_branch
          %1993 = sbr.rel (%p1991) target = $region128
        $region127: #{tpu_custom_call.1} parent=91 // pred_region
          %s1995 = ssub.s32 128, 128
          %1996 = vsyncadd %s1987, %s1995
          %s1997 = smul.addr %s41, 128
          %s1998 = scalar_lea.hbm %s18, %s1997
          %s2000 = sshll.u32 %s1990, 4
          %s2001 = int_to_ptr.vmem [resolvable:$true] %s2000
          %2003 = dma.vmem_to_hbm [thread:$0]  %s2001, 128, %s1998, %s1987
        $region128: #{tpu_custom_call.1} parent=91 // pred_fallthru
          _
      $region92: #{tpu_custom_call.1} parent=5 // pred_fallthru
        _
      %p2004 = scmp.le.s32.totalorder 2, %s36
      // Predicated region
      $region129: #{tpu_custom_call.1} parent=5 // pred_check
        %p2005 = pneg %p2004
      $region130: #{tpu_custom_call.1} parent=5 // pred_check_branch
        %2007 = sbr.rel (%p2005) target = $region132
      $region131: #{tpu_custom_call.1} parent=5 // pred_region
        %s2008 = ssub.s32 %s36, 2
        // Predicated region
        $region133: #{tpu_custom_call.1} parent=131 // pred_check
          %p2009 = pneg %p453
        $region134: #{tpu_custom_call.1} parent=131 // pred_check_branch
          %2011 = sbr.rel (%p2009) target = $region136
        $region135: #{tpu_custom_call.1} parent=131 // pred_region
          %s2012 = sand.u32 %s438, 1
          %s2013 = scalar_lea.sflag [#allocation5], %s2012
          %s2014 = sand.u32 %s438, 1
          %s2015 = smul.addr %s2014, 8
          %s2016 = scalar_lea.vmem [#allocation17], %s2015
          %2017 = dma.done %s2013, 128
        $region136: #{tpu_custom_call.1} parent=131 // pred_fallthru
          _
      $region132: #{tpu_custom_call.1} parent=5 // pred_fallthru
        _
    $region6: #{tpu_custom_call.1} parent=1 // loop_footer
      %s40 = sadd.s32 1, %s36
    $region7: #{tpu_custom_call.1} parent=1 // loop_footer_branch
      %35 = sbr.rel target = $region3
    $region8: #{tpu_custom_call.1} parent=1 // loop_exit
      _
    %2018 = vsyncpa [#allocation4], 1
    %s2019 = scalar_lea.sflag [#allocation4], 1
    %2020 = vsyncpa %s2019, 1
    %2021 = vsyncpa [#allocation7], 1
    %s2022 = scalar_lea.sflag [#allocation7], 1
    %2023 = vsyncpa %s2022, 1
    %2024 = vsyncpa [#allocation10], 1
    %2025 = vsyncpa [#allocation13], 1
    %2026 = vsyncpa [#allocation16], 1
    %2027 = vsyncpa [#allocation5], 1
    %s2028 = scalar_lea.sflag [#allocation5], 1
    %2029 = vsyncpa %s2028, 1

</llo_original>
